<compile_context>
chip_gen: v6e
topology: v6e:2x2x1
jax: 0.10.0
libtpu: 0.0.40
codegen_flags: <defaults>
</compile_context>

<pallas_src>
import jax
import jax.numpy as jnp
from jax import lax
from jax.experimental import pallas as pl
from jax.experimental.pallas import tpu as pltpu


_LANE = 128
_VMEM_LIMIT = 48 * 1024 * 1024      # > v5e/v6e scoped defaults (16/32 MiB), < v7x 64 MiB
_REC_VMEM_BUDGET = 32 * 1024 * 1024  # budget for the recurrence pipeline buffers


def _round_up(x, m):
    return ((x + m - 1) // m) * m


# ---------------------------------------------------------------------------
# One-time parameter preparation (hoisted out of the forward pass)
# ---------------------------------------------------------------------------
def _reorder_and_pad_gates(w, H, Hp):
    """Last (4H) axis: PyTorch order (i,f,g,o) -> (i,f,o,g), each gate padded H->Hp."""
    gates = [w[..., 0 * H:1 * H],      # i
             w[..., 1 * H:2 * H],      # f
             w[..., 3 * H:4 * H],      # o
             w[..., 2 * H:3 * H]]      # g
    pad = [(0, 0)] * (w.ndim - 1) + [(0, Hp - H)]
    return jnp.concatenate([jnp.pad(g, pad) for g in gates], axis=-1)


def _pad_row_halves(w, H, Hp):
    """Rows laid out [fwd H | bwd H] -> [fwd Hp | bwd Hp] (zero padded)."""
    return jnp.concatenate([jnp.pad(w[:H], ((0, Hp - H), (0, 0))),
                            jnp.pad(w[H:], ((0, Hp - H), (0, 0)))], axis=0)


def prepare_params(params):
    """Permute/pad/fuse/cast the PyTorch-layout parameters once, outside the hot path."""
    H = params["lstm"][0]["whh_f"].shape[0]
    Hp = _round_up(H, _LANE)
    prepped = {"lstm": []}
    for li, layer in enumerate(params["lstm"]):
        wih_f = _reorder_and_pad_gates(layer["wih_f"], H, Hp)
        wih_b = _reorder_and_pad_gates(layer["wih_b"], H, Hp)
        if li > 0:
            wih_f = _pad_row_halves(wih_f, H, Hp)
            wih_b = _pad_row_halves(wih_b, H, Hp)
        wih = jnp.concatenate([wih_f, wih_b], axis=1).astype(jnp.bfloat16)  # (d_in, 8Hp)
        whh_f = jnp.pad(_reorder_and_pad_gates(layer["whh_f"], H, Hp),
                        ((0, Hp - H), (0, 0))).astype(jnp.bfloat16)
        whh_b = jnp.pad(_reorder_and_pad_gates(layer["whh_b"], H, Hp),
                        ((0, Hp - H), (0, 0))).astype(jnp.bfloat16)
        b = jnp.concatenate([_reorder_and_pad_gates(layer["b_f"], H, Hp),
                             _reorder_and_pad_gates(layer["b_b"], H, Hp)],
                            axis=1).astype(jnp.float32)                      # (1, 8Hp)
        entry = {"whh_f": whh_f, "whh_b": whh_b, "b": b}
        if li == 0:
            entry["wih"] = wih
        else:
            entry["wih_top"] = wih[:Hp]   # rows fed by previous-layer fwd outputs
            entry["wih_bot"] = wih[Hp:]   # rows fed by previous-layer bwd outputs
        prepped["lstm"].append(entry)

    fc_w = _pad_row_halves(params["fc_w"], H, Hp).astype(jnp.bfloat16)       # (2Hp, O)
    prepped["fc_w_top"] = fc_w[:Hp]
    prepped["fc_w_bot"] = fc_w[Hp:]
    prepped["fc_b"] = params["fc_b"].reshape(1, -1).astype(jnp.float32)
    return prepped


# ---------------------------------------------------------------------------
# Pallas kernels: hoisted projections (bf16 MXU, f32 accumulate)
# ---------------------------------------------------------------------------
def _proj1_kernel(x_ref, w_ref, b_ref, o_ref):
    """o = x @ w + b  (layer-0 input projection, fwd+bwd gates fused in w)."""
    acc = jnp.dot(x_ref[...].astype(jnp.bfloat16), w_ref[...],
                  preferred_element_type=jnp.float32)
    o_ref[...] = (acc + b_ref[...]).astype(o_ref.dtype)


def _proj2_kernel(xa_ref, xb_ref, wa_ref, wb_ref, b_ref, o_ref):
    """o = xa @ wa + xb @ wb + b  (== concat(xa, xb) @ W + b without the concat)."""
    acc = jnp.dot(xa_ref[...].astype(jnp.bfloat16), wa_ref[...],
                  preferred_element_type=jnp.float32)
    acc = acc + jnp.dot(xb_ref[...].astype(jnp.bfloat16), wb_ref[...],
                        preferred_element_type=jnp.float32)
    o_ref[...] = (acc + b_ref[...]).astype(o_ref.dtype)


def _pick_row_block(M, max_bm=512):
    """Largest divisor of M (multiple of 8) that is <= max_bm."""
    if M <= max_bm:
        return M
    best = 8
    for cand in range(8, max_bm + 1, 8):
        if M % cand == 0:
            best = cand
    return best


def _proj_call(kernel, xs, ws, b, *, out_dtype=jnp.float32, block_m=512):
    """Row-blocked matmul-with-bias dispatcher for the projection kernels."""
    M = xs[0].shape[0]
    N = ws[0].shape[1]
    bm = _pick_row_block(M, block_m)
    grid = (M // bm,)

    in_specs = [pl.BlockSpec((bm, x.shape[1]), lambda i: (i, 0)) for x in xs]
    in_specs += [pl.BlockSpec((w.shape[0], N), lambda i: (0, 0)) for w in ws]
    in_specs += [pl.BlockSpec((1, N), lambda i: (0, 0))]

    return pl.pallas_call(
        kernel,
        out_shape=jax.ShapeDtypeStruct((M, N), out_dtype),
        grid=grid,
        in_specs=in_specs,
        out_specs=pl.BlockSpec((bm, N), lambda i: (i, 0)),
        compiler_params=pltpu.CompilerParams(
            dimension_semantics=("parallel",),
            vmem_limit_bytes=_VMEM_LIMIT),
    )(*xs, *ws, b)


# ---------------------------------------------------------------------------
# Pallas kernel: fused bidirectional LSTM recurrence
# ---------------------------------------------------------------------------
def _bilstm_rec_kernel(pgf_ref, pgb_ref, whhf_ref, whhb_ref,
                       outf_ref, outb_ref, hf_sc, cf_sc, hb_sc, cb_sc):
    """Fused fwd+bwd LSTM recurrence over one time block (Tb timesteps).

    pgf_ref : (Tb, B, 4Hp) bf16 forward pre-gates (view of the fused (T,B,8Hp) array)
    pgb_ref : (Tb, B, 4Hp) bf16 backward pre-gates (time-reversed block view)
    whh*    : (Hp, 4Hp)   bf16 hidden->gate weights (gate columns: i, f, o, g)
    out*    : (Tb, B, Hp) bf16 hidden-state outputs (bwd uses reversed block map)
    h*/c*   : (B, Hp) f32 VMEM scratch carrying state across grid steps
    """
    g = pl.program_id(0)

    @pl.when(g == 0)
    def _():
        hf_sc[...] = jnp.zeros_like(hf_sc)
        cf_sc[...] = jnp.zeros_like(cf_sc)
        hb_sc[...] = jnp.zeros_like(hb_sc)
        cb_sc[...] = jnp.zeros_like(cb_sc)

    Tb = pgf_ref.shape[0]
    Hp = hf_sc.shape[1]
    whh_f = whhf_ref[...]
    whh_b = whhb_ref[...]

    def cell(gates, c_prev):
        sig = jax.nn.sigmoid(gates[:, :3 * Hp])     # i, f, o in one contiguous slab
        g_t = jnp.tanh(gates[:, 3 * Hp:])
        i_t = sig[:, 0 * Hp:1 * Hp]
        f_t = sig[:, 1 * Hp:2 * Hp]
        o_t = sig[:, 2 * Hp:3 * Hp]
        c_new = f_t * c_prev + i_t * g_t
        h_new = o_t * jnp.tanh(c_new)
        return h_new, c_new

    def step(tt, carry):
        hf, cf, hb, cb = carry                     # live in vregs across the unroll
        rb = Tb - 1 - tt                           # local index for the bwd direction
        gates_f = pgf_ref[tt].astype(jnp.float32) + jnp.dot(
            hf.astype(jnp.bfloat16), whh_f, preferred_element_type=jnp.float32)
        gates_b = pgb_ref[rb].astype(jnp.float32) + jnp.dot(
            hb.astype(jnp.bfloat16), whh_b, preferred_element_type=jnp.float32)

        hf_new, cf_new = cell(gates_f, cf)
        hb_new, cb_new = cell(gates_b, cb)

        outf_ref[tt] = hf_new.astype(outf_ref.dtype)
        outb_ref[rb] = hb_new.astype(outb_ref.dtype)
        return (hf_new, cf_new, hb_new, cb_new)

    carry = (hf_sc[...], cf_sc[...], hb_sc[...], cb_sc[...])
    hf, cf, hb, cb = lax.fori_loop(0, Tb, step, carry, unroll=True)
    hf_sc[...] = hf
    cf_sc[...] = cf
    hb_sc[...] = hb
    cb_sc[...] = cb


def _pick_time_block(T, B, Hp, *, vmem_budget=_REC_VMEM_BUDGET, max_tb=32):
    """Timesteps per grid step, sized from the double-buffered bf16 working set."""
    per_t = (2 * 2 * B * 4 * Hp * 2      # pre-gates: 2 dirs x 2 bufs x B x 4Hp x bf16
             + 2 * 2 * B * Hp * 2)       # outputs:   2 dirs x 2 bufs x B x  Hp x bf16
    return int(max(1, min(max_tb, vmem_budget // per_t, T)))


def bilstm_recurrence(pg, whh_f, whh_b, *, Hp, tb):
    """Run the fused fwd+bwd recurrence on fused pre-gates pg: (T_pad, B, 8Hp) bf16."""
    T_pad, B, _ = pg.shape
    nb = T_pad // tb
    G = 4 * Hp

    fwd_pg_map = lambda g: (g, 0, 0)            # fwd gate columns, forward in time
    bwd_pg_map = lambda g: (nb - 1 - g, 0, 1)   # bwd gate columns, reversed time
    fwd_out_map = lambda g: (g, 0, 0)
    bwd_out_map = lambda g: (nb - 1 - g, 0, 0)

    return pl.pallas_call(
        _bilstm_rec_kernel,
        out_shape=(jax.ShapeDtypeStruct((T_pad, B, Hp), jnp.bfloat16),
                   jax.ShapeDtypeStruct((T_pad, B, Hp), jnp.bfloat16)),
        grid_spec=pltpu.PrefetchScalarGridSpec(
            num_scalar_prefetch=0,
            grid=(nb,),
            in_specs=[
                pl.BlockSpec((tb, B, G), fwd_pg_map),
                pl.BlockSpec((tb, B, G), bwd_pg_map),
                pl.BlockSpec((Hp, G), lambda g: (0, 0)),
                pl.BlockSpec((Hp, G), lambda g: (0, 0)),
            ],
            out_specs=(
                pl.BlockSpec((tb, B, Hp), fwd_out_map),
                pl.BlockSpec((tb, B, Hp), bwd_out_map),
            ),
            scratch_shapes=[pltpu.VMEM((B, Hp), jnp.float32)] * 4,
        ),
        compiler_params=pltpu.CompilerParams(
            dimension_semantics=("arbitrary",),     # sequential recurrence
            vmem_limit_bytes=_VMEM_LIMIT),
    )(pg, pg, whh_f, whh_b)


# ---------------------------------------------------------------------------
# BiLSTM forward (matches the PyTorch module semantics)
# ---------------------------------------------------------------------------
def bilstm_forward(x, prepped):
    """x: (B, T, input_dim) batch_first, like the PyTorch module. prepped = prepare_params()."""
    Hp = prepped["lstm"][0]["whh_f"].shape[0]
    B, T, D = x.shape
    Bp = _round_up(B, 8)                        # sublane-align the batch dim
    if Bp != B:
        x = jnp.pad(x, ((0, Bp - B), (0, 0), (0, 0)))
    x_tm = jnp.transpose(x, (1, 0, 2))          # time-major (T, Bp, D)

    tb = _pick_time_block(T, Bp, Hp)
    T_pad = _round_up(T, tb)

    fwd = bwd = None
    for li, layer in enumerate(prepped["lstm"]):
        if li == 0:
            x_flat = x_tm.reshape(T * Bp, D)
            pg = _proj_call(_proj1_kernel, [x_flat], [layer["wih"]], layer["b"],
                            out_dtype=jnp.bfloat16)
        else:
            f_flat = fwd.reshape(T * Bp, Hp)
            r_flat = bwd.reshape(T * Bp, Hp)
            pg = _proj_call(_proj2_kernel, [f_flat, r_flat],
                            [layer["wih_top"], layer["wih_bot"]], layer["b"],
                            out_dtype=jnp.bfloat16)

        pg = pg.reshape(T, Bp, 8 * Hp)
        if T_pad != T:
            # Zero pre-gates are neutral given the zero initial state (c stays 0, h stays 0),
            # so padding at the end is safe for the backward direction's carry.
            pg = jnp.pad(pg, ((0, T_pad - T), (0, 0), (0, 0)))

        fwd, bwd = bilstm_recurrence(pg, layer["whh_f"], layer["whh_b"], Hp=Hp, tb=tb)
        if T_pad != T:
            fwd = fwd[:T]
            bwd = bwd[:T]

    # Head on out[:, -1, :] without materializing the fwd/bwd concat.
    h_f_last = fwd[-1]                          # (Bp, Hp) bf16
    h_b_last = bwd[-1]                          # (Bp, Hp) bf16 = bwd state at t = T-1
    logits = _proj_call(_proj2_kernel, [h_f_last, h_b_last],
                        [prepped["fc_w_top"], prepped["fc_w_bot"]],
                        prepped["fc_b"], out_dtype=jnp.float32)
    return logits[:B]


# ---------------------------------------------------------------------------
# Pure-JAX reference (lax.scan, f32) for correctness checking
# ---------------------------------------------------------------------------
def _lstm_layer_ref(x_tm, wih, whh, b):
    T, B, D = x_tm.shape
    H = whh.shape[0]

    def step(carry, x_t):
        h, c = carry
        gates = x_t @ wih + h @ whh + b
        i_g = jax.nn.sigmoid(gates[:, :H])
        f_g = jax.nn.sigmoid(gates[:, H:2 * H])
        g_g = jnp.tanh(gates[:, 2 * H:3 * H])
        o_g = jax.nn.sigmoid(gates[:, 3 * H:])
        c = f_g * c + i_g * g_g
        h = o_g * jnp.tanh(c)
        return (h, c), h

    init = (jnp.zeros((B, H), jnp.float32), jnp.zeros((B, H), jnp.float32))
    _, hs = jax.lax.scan(step, init, x_tm)
    return hs


def bilstm_forward_ref(x, params):
    layer_in = jnp.transpose(x, (1, 0, 2))
    for layer in params["lstm"]:
        fwd = _lstm_layer_ref(layer_in, layer["wih_f"], layer["whh_f"], layer["b_f"])
        bwd = _lstm_layer_ref(layer_in[::-1], layer["wih_b"], layer["whh_b"],
                              layer["b_b"])[::-1]
        layer_in = jnp.concatenate([fwd, bwd], axis=-1)
    last = layer_in[-1]
    return last @ params["fc_w"] + params["fc_b"]


# ---------------------------------------------------------------------------
# Deterministic synthetic parameters (shapes follow nn.LSTM / nn.Linear)
# ---------------------------------------------------------------------------
def init_params(key, input_dim, hidden_dim, num_layers, output_dim):
    k = 1.0 / jnp.sqrt(hidden_dim)
    params = {"lstm": []}
    for layer in range(num_layers):
        d_in = input_dim if layer == 0 else 2 * hidden_dim
        layer_params = {}
        for tag in ("f", "b"):   # forward / reverse directions
            key, k1, k2, k3, k4 = jax.random.split(key, 5)
            # weight_ih_l{k}: (4H, d_in) in torch; stored transposed (d_in, 4H)
            layer_params[f"wih_{tag}"] = jax.random.uniform(
                k1, (d_in, 4 * hidden_dim), jnp.float32, -k, k)
            layer_params[f"whh_{tag}"] = jax.random.uniform(
                k2, (hidden_dim, 4 * hidden_dim), jnp.float32, -k, k)
            b_ih = jax.random.uniform(k3, (4 * hidden_dim,), jnp.float32, -k, k)
            b_hh = jax.random.uniform(k4, (4 * hidden_dim,), jnp.float32, -k, k)
            layer_params[f"b_{tag}"] = (b_ih + b_hh).reshape(1, 4 * hidden_dim)
        params["lstm"].append(layer_params)
    key, k1, k2 = jax.random.split(key, 3)
    kf = 1.0 / jnp.sqrt(2 * hidden_dim)
    params["fc_w"] = jax.random.uniform(
        k1, (2 * hidden_dim, output_dim), jnp.float32, -kf, kf)
    params["fc_b"] = jax.random.uniform(k2, (output_dim,), jnp.float32, -kf, kf)
    return params


if __name__ == "__main__":
    batch, seq_len = 2, 8
    input_dim, hidden_dim, num_layers, output_dim = 16, 32, 2, 4

    key = jax.random.PRNGKey(0)
    key, xkey, pkey = jax.random.split(key, 3)
    x = jax.random.normal(xkey, (batch, seq_len, input_dim), jnp.float32)
    params = init_params(pkey, input_dim, hidden_dim, num_layers, output_dim)
    prepped = prepare_params(params)            # one-time parameter prep (hoisted)

    out = jax.block_until_ready(jax.jit(bilstm_forward)(x, prepped))
    ref = jax.block_until_ready(bilstm_forward_ref(x, params))

    assert out.shape == (batch, output_dim)
    # bf16 MXU operands / bf16 pre-gate & hidden storage -> looser tolerance than f32.
    assert jnp.allclose(out, ref, rtol=5e-2, atol=5e-2), (out, ref)
    print("KERNEL_OK")
</pallas_src>

<mosaic_0001>
module attributes {stable_mosaic.version = 11 : i64} {
  func.func @_proj1_kernel(%arg0: i32, %arg1: memref<64x16xf32, #tpu.memory_space<vmem>>, %arg2: memref<16x1024xbf16, #tpu.memory_space<vmem>>, %arg3: memref<1x1024xf32, #tpu.memory_space<vmem>>, %arg4: memref<64x1024xbf16, #tpu.memory_space<vmem>>) attributes {dimension_semantics = [#tpu.dimension_semantics<parallel>], iteration_bounds = array<i64: 1>, scalar_prefetch = 0 : i64, scratch_operands = 0 : i64, tpu.core_type = #tpu.core_type<tc>, window_params = [{transform_indices = @transform_0, window_bounds = array<i64: 64, 16>}, {pipeline_mode = #tpu.pipeline_mode<synchronous>, transform_indices = @transform_1, window_bounds = array<i64: 16, 1024>}, {pipeline_mode = #tpu.pipeline_mode<synchronous>, transform_indices = @transform_2, window_bounds = array<i64: 1, 1024>}, {transform_indices = @transform_3, window_bounds = array<i64: 64, 1024>}]} {
    %c0 = arith.constant 0 : index
    %c0_0 = arith.constant 0 : index
    %0 = vector.load %arg1[%c0, %c0_0] : memref<64x16xf32, #tpu.memory_space<vmem>>, vector<64x16xf32>
    %1 = arith.truncf %0 : vector<64x16xf32> to vector<64x16xbf16>
    %c0_1 = arith.constant 0 : index
    %c0_2 = arith.constant 0 : index
    %2 = vector.load %arg2[%c0_1, %c0_2] : memref<16x1024xbf16, #tpu.memory_space<vmem>>, vector<16x1024xbf16>
    %cst = arith.constant dense<0.000000e+00> : vector<64x1024xf32>
    %3 = tpu.matmul %1, %2, %cst {dimension_numbers = #tpu.dot_dimension_numbers<[1], [0], [0], [1], [0, 0, 1, 1], [], []>} : vector<64x16xbf16>, vector<16x1024xbf16>, vector<64x1024xf32> -> vector<64x1024xf32>
    %c0_3 = arith.constant 0 : index
    %c0_4 = arith.constant 0 : index
    %4 = vector.load %arg3[%c0_3, %c0_4] : memref<1x1024xf32, #tpu.memory_space<vmem>>, vector<1x1024xf32>
    %5 = vector.broadcast %4 : vector<1x1024xf32> to vector<64x1024xf32>
    %6 = arith.addf %3, %5 : vector<64x1024xf32>
    %7 = arith.truncf %6 : vector<64x1024xf32> to vector<64x1024xbf16>
    %c0_5 = arith.constant 0 : index
    %c0_6 = arith.constant 0 : index
    %8 = vector.load %arg4[%c0_5, %c0_6] : memref<64x1024xbf16, #tpu.memory_space<vmem>>, vector<64x1024xbf16>
    tpu.vector_store %arg4[%c0_5, %c0_6], %7 {strides = array<i32>} : memref<64x1024xbf16, #tpu.memory_space<vmem>>, vector<64x1024xbf16>,
    return
  }
  func.func @transform_0(%arg0: i32) -> (i32, i32) {
    %c0_i32 = arith.constant 0 : i32
    %c0_i32_0 = arith.constant 0 : i32
    return %arg0, %c0_i32 : i32, i32
  }
  func.func @transform_1(%arg0: i32) -> (i32, i32) {
    %c0_i32 = arith.constant 0 : i32
    %c0_i32_0 = arith.constant 0 : i32
    %c0_i32_1 = arith.constant 0 : i32
    return %c0_i32, %c0_i32_0 : i32, i32
  }
  func.func @transform_2(%arg0: i32) -> (i32, i32) {
    %c0_i32 = arith.constant 0 : i32
    %c0_i32_0 = arith.constant 0 : i32
    %c0_i32_1 = arith.constant 0 : i32
    return %c0_i32, %c0_i32_0 : i32, i32
  }
  func.func @transform_3(%arg0: i32) -> (i32, i32) {
    %c0_i32 = arith.constant 0 : i32
    %c0_i32_0 = arith.constant 0 : i32
    return %arg0, %c0_i32 : i32, i32
  }
}

module attributes {stable_mosaic.version = 11 : i64} {
  func.func @_bilstm_rec_kernel(%arg0: i32, %arg1: memref<8x8x512xbf16, #tpu.memory_space<vmem>>, %arg2: memref<8x8x512xbf16, #tpu.memory_space<vmem>>, %arg3: memref<128x512xbf16, #tpu.memory_space<vmem>>, %arg4: memref<128x512xbf16, #tpu.memory_space<vmem>>, %arg5: memref<8x8x128xbf16, #tpu.memory_space<vmem>>, %arg6: memref<8x8x128xbf16, #tpu.memory_space<vmem>>, %arg7: memref<8x128xf32, #tpu.memory_space<vmem>>, %arg8: memref<8x128xf32, #tpu.memory_space<vmem>>, %arg9: memref<8x128xf32, #tpu.memory_space<vmem>>, %arg10: memref<8x128xf32, #tpu.memory_space<vmem>>) attributes {dimension_semantics = [#tpu.dimension_semantics<arbitrary>], iteration_bounds = array<i64: 1>, scalar_prefetch = 0 : i64, scratch_operands = 4 : i64, tpu.core_type = #tpu.core_type<tc>, window_params = [{transform_indices = @transform_0, window_bounds = array<i64: 8, 8, 512>}, {transform_indices = @transform_1, window_bounds = array<i64: 8, 8, 512>}, {pipeline_mode = #tpu.pipeline_mode<synchronous>, transform_indices = @transform_2, window_bounds = array<i64: 128, 512>}, {pipeline_mode = #tpu.pipeline_mode<synchronous>, transform_indices = @transform_3, window_bounds = array<i64: 128, 512>}, {transform_indices = @transform_4, window_bounds = array<i64: 8, 8, 128>}, {transform_indices = @transform_5, window_bounds = array<i64: 8, 8, 128>}]} {
    %c0_i32 = arith.constant 0 : i32
    %0 = arith.cmpi eq, %arg0, %c0_i32 : i32
    %1 = arith.extui %0 : i1 to i32
    %c0_i32_0 = arith.constant 0 : i32
    %2 = arith.cmpi ne, %1, %c0_i32_0 : i32
    scf.if %2 {
      %cst_124 = arith.constant 0.000000e+00 : f32
      %469 = vector.broadcast %cst_124 : f32 to vector<8x128xf32>
      %c0_125 = arith.constant 0 : index
      %c0_126 = arith.constant 0 : index
      %470 = vector.load %arg7[%c0_125, %c0_126] : memref<8x128xf32, #tpu.memory_space<vmem>>, vector<8x128xf32>
      tpu.vector_store %arg7[%c0_125, %c0_126], %469 {strides = array<i32>} : memref<8x128xf32, #tpu.memory_space<vmem>>, vector<8x128xf32>,
      %cst_127 = arith.constant 0.000000e+00 : f32
      %471 = vector.broadcast %cst_127 : f32 to vector<8x128xf32>
      %c0_128 = arith.constant 0 : index
      %c0_129 = arith.constant 0 : index
      %472 = vector.load %arg8[%c0_128, %c0_129] : memref<8x128xf32, #tpu.memory_space<vmem>>, vector<8x128xf32>
      tpu.vector_store %arg8[%c0_128, %c0_129], %471 {strides = array<i32>} : memref<8x128xf32, #tpu.memory_space<vmem>>, vector<8x128xf32>,
      %cst_130 = arith.constant 0.000000e+00 : f32
      %473 = vector.broadcast %cst_130 : f32 to vector<8x128xf32>
      %c0_131 = arith.constant 0 : index
      %c0_132 = arith.constant 0 : index
      %474 = vector.load %arg9[%c0_131, %c0_132] : memref<8x128xf32, #tpu.memory_space<vmem>>, vector<8x128xf32>
      tpu.vector_store %arg9[%c0_131, %c0_132], %473 {strides = array<i32>} : memref<8x128xf32, #tpu.memory_space<vmem>>, vector<8x128xf32>,
      %cst_133 = arith.constant 0.000000e+00 : f32
      %475 = vector.broadcast %cst_133 : f32 to vector<8x128xf32>
      %c0_134 = arith.constant 0 : index
      %c0_135 = arith.constant 0 : index
      %476 = vector.load %arg10[%c0_134, %c0_135] : memref<8x128xf32, #tpu.memory_space<vmem>>, vector<8x128xf32>
      tpu.vector_store %arg10[%c0_134, %c0_135], %475 {strides = array<i32>} : memref<8x128xf32, #tpu.memory_space<vmem>>, vector<8x128xf32>,
    } else {
    }
    %c0 = arith.constant 0 : index
    %c0_1 = arith.constant 0 : index
    %3 = vector.load %arg3[%c0, %c0_1] : memref<128x512xbf16, #tpu.memory_space<vmem>>, vector<128x512xbf16>
    %c0_2 = arith.constant 0 : index
    %c0_3 = arith.constant 0 : index
    %4 = vector.load %arg4[%c0_2, %c0_3] : memref<128x512xbf16, #tpu.memory_space<vmem>>, vector<128x512xbf16>
    %c0_4 = arith.constant 0 : index
    %c0_5 = arith.constant 0 : index
    %5 = vector.load %arg7[%c0_4, %c0_5] : memref<8x128xf32, #tpu.memory_space<vmem>>, vector<8x128xf32>
    %c0_6 = arith.constant 0 : index
    %c0_7 = arith.constant 0 : index
    %6 = vector.load %arg8[%c0_6, %c0_7] : memref<8x128xf32, #tpu.memory_space<vmem>>, vector<8x128xf32>
    %c0_8 = arith.constant 0 : index
    %c0_9 = arith.constant 0 : index
    %7 = vector.load %arg9[%c0_8, %c0_9] : memref<8x128xf32, #tpu.memory_space<vmem>>, vector<8x128xf32>
    %c0_10 = arith.constant 0 : index
    %c0_11 = arith.constant 0 : index
    %8 = vector.load %arg10[%c0_10, %c0_11] : memref<8x128xf32, #tpu.memory_space<vmem>>, vector<8x128xf32>
    %c0_i32_12 = arith.constant 0 : i32
    %c7_i32 = arith.constant 7 : i32
    %9 = arith.subi %c7_i32, %c0_i32_12 : i32
    %10 = arith.index_cast %c0_i32_12 : i32 to index
    %c0_13 = arith.constant 0 : index
    %c0_14 = arith.constant 0 : index
    %11 = vector.load %arg1[%10, %c0_13, %c0_14] : memref<8x8x512xbf16, #tpu.memory_space<vmem>>, vector<1x8x512xbf16>
    %12 = vector.shape_cast %11 : vector<1x8x512xbf16> to vector<8x512xbf16>
    %13 = arith.extf %12 : vector<8x512xbf16> to vector<8x512xf32>
    %14 = arith.truncf %5 : vector<8x128xf32> to vector<8x128xbf16>
    %cst = arith.constant dense<0.000000e+00> : vector<8x512xf32>
    %15 = tpu.matmul %14, %3, %cst {dimension_numbers = #tpu.dot_dimension_numbers<[1], [0], [0], [1], [0, 0, 1, 1], [], []>} : vector<8x128xbf16>, vector<128x512xbf16>, vector<8x512xf32> -> vector<8x512xf32>
    %16 = arith.addf %13, %15 : vector<8x512xf32>
    %17 = arith.index_cast %9 : i32 to index
    %c0_15 = arith.constant 0 : index
    %c0_16 = arith.constant 0 : index
    %18 = vector.load %arg2[%17, %c0_15, %c0_16] : memref<8x8x512xbf16, #tpu.memory_space<vmem>>, vector<1x8x512xbf16>
    %19 = vector.shape_cast %18 : vector<1x8x512xbf16> to vector<8x512xbf16>
    %20 = arith.extf %19 : vector<8x512xbf16> to vector<8x512xf32>
    %21 = arith.truncf %7 : vector<8x128xf32> to vector<8x128xbf16>
    %cst_17 = arith.constant dense<0.000000e+00> : vector<8x512xf32>
    %22 = tpu.matmul %21, %4, %cst_17 {dimension_numbers = #tpu.dot_dimension_numbers<[1], [0], [0], [1], [0, 0, 1, 1], [], []>} : vector<8x128xbf16>, vector<128x512xbf16>, vector<8x512xf32> -> vector<8x512xf32>
    %23 = arith.addf %20, %22 : vector<8x512xf32>
    %24 = vector.extract_strided_slice %16 {offsets = [0, 0], sizes = [8, 384], strides = [1, 1]} : vector<8x512xf32> to vector<8x384xf32>
    %25 = arith.negf %24 : vector<8x384xf32>
    %26 = math.exp %25 : vector<8x384xf32>
    %cst_18 = arith.constant 1.000000e+00 : f32
    %27 = vector.broadcast %cst_18 : f32 to vector<8x384xf32>
    %28 = arith.addf %27, %26 : vector<8x384xf32>
    %29 = arith.divf %27, %28 : vector<8x384xf32>
    %30 = vector.extract_strided_slice %16 {offsets = [0, 384], sizes = [8, 128], strides = [1, 1]} : vector<8x512xf32> to vector<8x128xf32>
    %31 = math.tanh %30 : vector<8x128xf32>
    %32 = vector.extract_strided_slice %29 {offsets = [0, 0], sizes = [8, 128], strides = [1, 1]} : vector<8x384xf32> to vector<8x128xf32>
    %33 = vector.extract_strided_slice %29 {offsets = [0, 128], sizes = [8, 128], strides = [1, 1]} : vector<8x384xf32> to vector<8x128xf32>
    %34 = vector.extract_strided_slice %29 {offsets = [0, 256], sizes = [8, 128], strides = [1, 1]} : vector<8x384xf32> to vector<8x128xf32>
    %35 = arith.mulf %33, %6 : vector<8x128xf32>
    %36 = arith.mulf %32, %31 : vector<8x128xf32>
    %37 = arith.addf %35, %36 : vector<8x128xf32>
    %38 = math.tanh %37 : vector<8x128xf32>
    %39 = arith.mulf %34, %38 : vector<8x128xf32>
    %40 = vector.extract_strided_slice %23 {offsets = [0, 0], sizes = [8, 384], strides = [1, 1]} : vector<8x512xf32> to vector<8x384xf32>
    %41 = arith.negf %40 : vector<8x384xf32>
    %42 = math.exp %41 : vector<8x384xf32>
    %cst_19 = arith.constant 1.000000e+00 : f32
    %43 = vector.broadcast %cst_19 : f32 to vector<8x384xf32>
    %44 = arith.addf %43, %42 : vector<8x384xf32>
    %45 = arith.divf %43, %44 : vector<8x384xf32>
    %46 = vector.extract_strided_slice %23 {offsets = [0, 384], sizes = [8, 128], strides = [1, 1]} : vector<8x512xf32> to vector<8x128xf32>
    %47 = math.tanh %46 : vector<8x128xf32>
    %48 = vector.extract_strided_slice %45 {offsets = [0, 0], sizes = [8, 128], strides = [1, 1]} : vector<8x384xf32> to vector<8x128xf32>
    %49 = vector.extract_strided_slice %45 {offsets = [0, 128], sizes = [8, 128], strides = [1, 1]} : vector<8x384xf32> to vector<8x128xf32>
    %50 = vector.extract_strided_slice %45 {offsets = [0, 256], sizes = [8, 128], strides = [1, 1]} : vector<8x384xf32> to vector<8x128xf32>
    %51 = arith.mulf %49, %8 : vector<8x128xf32>
    %52 = arith.mulf %48, %47 : vector<8x128xf32>
    %53 = arith.addf %51, %52 : vector<8x128xf32>
    %54 = math.tanh %53 : vector<8x128xf32>
    %55 = arith.mulf %50, %54 : vector<8x128xf32>
    %56 = arith.truncf %39 : vector<8x128xf32> to vector<8x128xbf16>
    %57 = arith.index_cast %c0_i32_12 : i32 to index
    %c0_20 = arith.constant 0 : index
    %c0_21 = arith.constant 0 : index
    %58 = vector.load %arg5[%57, %c0_20, %c0_21] : memref<8x8x128xbf16, #tpu.memory_space<vmem>>, vector<1x8x128xbf16>
    %59 = vector.shape_cast %58 : vector<1x8x128xbf16> to vector<8x128xbf16>
    %60 = vector.shape_cast %56 : vector<8x128xbf16> to vector<1x8x128xbf16>
    tpu.vector_store %arg5[%57, %c0_20, %c0_21], %60 {strides = array<i32>} : memref<8x8x128xbf16, #tpu.memory_space<vmem>>, vector<1x8x128xbf16>,
    %61 = arith.truncf %55 : vector<8x128xf32> to vector<8x128xbf16>
    %62 = arith.index_cast %9 : i32 to index
    %c0_22 = arith.constant 0 : index
    %c0_23 = arith.constant 0 : index
    %63 = vector.load %arg6[%62, %c0_22, %c0_23] : memref<8x8x128xbf16, #tpu.memory_space<vmem>>, vector<1x8x128xbf16>
    %64 = vector.shape_cast %63 : vector<1x8x128xbf16> to vector<8x128xbf16>
    %65 = vector.shape_cast %61 : vector<8x128xbf16> to vector<1x8x128xbf16>
    tpu.vector_store %arg6[%62, %c0_22, %c0_23], %65 {strides = array<i32>} : memref<8x8x128xbf16, #tpu.memory_space<vmem>>, vector<1x8x128xbf16>,
    %c1_i32 = arith.constant 1 : i32
    %c7_i32_24 = arith.constant 7 : i32
    %66 = arith.subi %c7_i32_24, %c1_i32 : i32
    %67 = arith.index_cast %c1_i32 : i32 to index
    %c0_25 = arith.constant 0 : index
    %c0_26 = arith.constant 0 : index
    %68 = vector.load %arg1[%67, %c0_25, %c0_26] : memref<8x8x512xbf16, #tpu.memory_space<vmem>>, vector<1x8x512xbf16>
    %69 = vector.shape_cast %68 : vector<1x8x512xbf16> to vector<8x512xbf16>
    %70 = arith.extf %69 : vector<8x512xbf16> to vector<8x512xf32>
    %71 = arith.truncf %39 : vector<8x128xf32> to vector<8x128xbf16>
    %cst_27 = arith.constant dense<0.000000e+00> : vector<8x512xf32>
    %72 = tpu.matmul %71, %3, %cst_27 {dimension_numbers = #tpu.dot_dimension_numbers<[1], [0], [0], [1], [0, 0, 1, 1], [], []>} : vector<8x128xbf16>, vector<128x512xbf16>, vector<8x512xf32> -> vector<8x512xf32>
    %73 = arith.addf %70, %72 : vector<8x512xf32>
    %74 = arith.index_cast %66 : i32 to index
    %c0_28 = arith.constant 0 : index
    %c0_29 = arith.constant 0 : index
    %75 = vector.load %arg2[%74, %c0_28, %c0_29] : memref<8x8x512xbf16, #tpu.memory_space<vmem>>, vector<1x8x512xbf16>
    %76 = vector.shape_cast %75 : vector<1x8x512xbf16> to vector<8x512xbf16>
    %77 = arith.extf %76 : vector<8x512xbf16> to vector<8x512xf32>
    %78 = arith.truncf %55 : vector<8x128xf32> to vector<8x128xbf16>
    %cst_30 = arith.constant dense<0.000000e+00> : vector<8x512xf32>
    %79 = tpu.matmul %78, %4, %cst_30 {dimension_numbers = #tpu.dot_dimension_numbers<[1], [0], [0], [1], [0, 0, 1, 1], [], []>} : vector<8x128xbf16>, vector<128x512xbf16>, vector<8x512xf32> -> vector<8x512xf32>
    %80 = arith.addf %77, %79 : vector<8x512xf32>
    %81 = vector.extract_strided_slice %73 {offsets = [0, 0], sizes = [8, 384], strides = [1, 1]} : vector<8x512xf32> to vector<8x384xf32>
    %82 = arith.negf %81 : vector<8x384xf32>
    %83 = math.exp %82 : vector<8x384xf32>
    %cst_31 = arith.constant 1.000000e+00 : f32
    %84 = vector.broadcast %cst_31 : f32 to vector<8x384xf32>
    %85 = arith.addf %84, %83 : vector<8x384xf32>
    %86 = arith.divf %84, %85 : vector<8x384xf32>
    %87 = vector.extract_strided_slice %73 {offsets = [0, 384], sizes = [8, 128], strides = [1, 1]} : vector<8x512xf32> to vector<8x128xf32>
    %88 = math.tanh %87 : vector<8x128xf32>
    %89 = vector.extract_strided_slice %86 {offsets = [0, 0], sizes = [8, 128], strides = [1, 1]} : vector<8x384xf32> to vector<8x128xf32>
    %90 = vector.extract_strided_slice %86 {offsets = [0, 128], sizes = [8, 128], strides = [1, 1]} : vector<8x384xf32> to vector<8x128xf32>
    %91 = vector.extract_strided_slice %86 {offsets = [0, 256], sizes = [8, 128], strides = [1, 1]} : vector<8x384xf32> to vector<8x128xf32>
    %92 = arith.mulf %90, %37 : vector<8x128xf32>
    %93 = arith.mulf %89, %88 : vector<8x128xf32>
    %94 = arith.addf %92, %93 : vector<8x128xf32>
    %95 = math.tanh %94 : vector<8x128xf32>
    %96 = arith.mulf %91, %95 : vector<8x128xf32>
    %97 = vector.extract_strided_slice %80 {offsets = [0, 0], sizes = [8, 384], strides = [1, 1]} : vector<8x512xf32> to vector<8x384xf32>
    %98 = arith.negf %97 : vector<8x384xf32>
    %99 = math.exp %98 : vector<8x384xf32>
    %cst_32 = arith.constant 1.000000e+00 : f32
    %100 = vector.broadcast %cst_32 : f32 to vector<8x384xf32>
    %101 = arith.addf %100, %99 : vector<8x384xf32>
    %102 = arith.divf %100, %101 : vector<8x384xf32>
    %103 = vector.extract_strided_slice %80 {offsets = [0, 384], sizes = [8, 128], strides = [1, 1]} : vector<8x512xf32> to vector<8x128xf32>
    %104 = math.tanh %103 : vector<8x128xf32>
    %105 = vector.extract_strided_slice %102 {offsets = [0, 0], sizes = [8, 128], strides = [1, 1]} : vector<8x384xf32> to vector<8x128xf32>
    %106 = vector.extract_strided_slice %102 {offsets = [0, 128], sizes = [8, 128], strides = [1, 1]} : vector<8x384xf32> to vector<8x128xf32>
    %107 = vector.extract_strided_slice %102 {offsets = [0, 256], sizes = [8, 128], strides = [1, 1]} : vector<8x384xf32> to vector<8x128xf32>
    %108 = arith.mulf %106, %53 : vector<8x128xf32>
    %109 = arith.mulf %105, %104 : vector<8x128xf32>
    %110 = arith.addf %108, %109 : vector<8x128xf32>
    %111 = math.tanh %110 : vector<8x128xf32>
    %112 = arith.mulf %107, %111 : vector<8x128xf32>
    %113 = arith.truncf %96 : vector<8x128xf32> to vector<8x128xbf16>
    %114 = arith.index_cast %c1_i32 : i32 to index
    %c0_33 = arith.constant 0 : index
    %c0_34 = arith.constant 0 : index
    %115 = vector.load %arg5[%114, %c0_33, %c0_34] : memref<8x8x128xbf16, #tpu.memory_space<vmem>>, vector<1x8x128xbf16>
    %116 = vector.shape_cast %115 : vector<1x8x128xbf16> to vector<8x128xbf16>
    %117 = vector.shape_cast %113 : vector<8x128xbf16> to vector<1x8x128xbf16>
    tpu.vector_store %arg5[%114, %c0_33, %c0_34], %117 {strides = array<i32>} : memref<8x8x128xbf16, #tpu.memory_space<vmem>>, vector<1x8x128xbf16>,
    %118 = arith.truncf %112 : vector<8x128xf32> to vector<8x128xbf16>
    %119 = arith.index_cast %66 : i32 to index
    %c0_35 = arith.constant 0 : index
    %c0_36 = arith.constant 0 : index
    %120 = vector.load %arg6[%119, %c0_35, %c0_36] : memref<8x8x128xbf16, #tpu.memory_space<vmem>>, vector<1x8x128xbf16>
    %121 = vector.shape_cast %120 : vector<1x8x128xbf16> to vector<8x128xbf16>
    %122 = vector.shape_cast %118 : vector<8x128xbf16> to vector<1x8x128xbf16>
    tpu.vector_store %arg6[%119, %c0_35, %c0_36], %122 {strides = array<i32>} : memref<8x8x128xbf16, #tpu.memory_space<vmem>>, vector<1x8x128xbf16>,
    %c2_i32 = arith.constant 2 : i32
    %c7_i32_37 = arith.constant 7 : i32
    %123 = arith.subi %c7_i32_37, %c2_i32 : i32
    %124 = arith.index_cast %c2_i32 : i32 to index
    %c0_38 = arith.constant 0 : index
    %c0_39 = arith.constant 0 : index
    %125 = vector.load %arg1[%124, %c0_38, %c0_39] : memref<8x8x512xbf16, #tpu.memory_space<vmem>>, vector<1x8x512xbf16>
    %126 = vector.shape_cast %125 : vector<1x8x512xbf16> to vector<8x512xbf16>
    %127 = arith.extf %126 : vector<8x512xbf16> to vector<8x512xf32>
    %128 = arith.truncf %96 : vector<8x128xf32> to vector<8x128xbf16>
    %cst_40 = arith.constant dense<0.000000e+00> : vector<8x512xf32>
    %129 = tpu.matmul %128, %3, %cst_40 {dimension_numbers = #tpu.dot_dimension_numbers<[1], [0], [0], [1], [0, 0, 1, 1], [], []>} : vector<8x128xbf16>, vector<128x512xbf16>, vector<8x512xf32> -> vector<8x512xf32>
    %130 = arith.addf %127, %129 : vector<8x512xf32>
    %131 = arith.index_cast %123 : i32 to index
    %c0_41 = arith.constant 0 : index
    %c0_42 = arith.constant 0 : index
    %132 = vector.load %arg2[%131, %c0_41, %c0_42] : memref<8x8x512xbf16, #tpu.memory_space<vmem>>, vector<1x8x512xbf16>
    %133 = vector.shape_cast %132 : vector<1x8x512xbf16> to vector<8x512xbf16>
    %134 = arith.extf %133 : vector<8x512xbf16> to vector<8x512xf32>
    %135 = arith.truncf %112 : vector<8x128xf32> to vector<8x128xbf16>
    %cst_43 = arith.constant dense<0.000000e+00> : vector<8x512xf32>
    %136 = tpu.matmul %135, %4, %cst_43 {dimension_numbers = #tpu.dot_dimension_numbers<[1], [0], [0], [1], [0, 0, 1, 1], [], []>} : vector<8x128xbf16>, vector<128x512xbf16>, vector<8x512xf32> -> vector<8x512xf32>
    %137 = arith.addf %134, %136 : vector<8x512xf32>
    %138 = vector.extract_strided_slice %130 {offsets = [0, 0], sizes = [8, 384], strides = [1, 1]} : vector<8x512xf32> to vector<8x384xf32>
    %139 = arith.negf %138 : vector<8x384xf32>
    %140 = math.exp %139 : vector<8x384xf32>
    %cst_44 = arith.constant 1.000000e+00 : f32
    %141 = vector.broadcast %cst_44 : f32 to vector<8x384xf32>
    %142 = arith.addf %141, %140 : vector<8x384xf32>
    %143 = arith.divf %141, %142 : vector<8x384xf32>
    %144 = vector.extract_strided_slice %130 {offsets = [0, 384], sizes = [8, 128], strides = [1, 1]} : vector<8x512xf32> to vector<8x128xf32>
    %145 = math.tanh %144 : vector<8x128xf32>
    %146 = vector.extract_strided_slice %143 {offsets = [0, 0], sizes = [8, 128], strides = [1, 1]} : vector<8x384xf32> to vector<8x128xf32>
    %147 = vector.extract_strided_slice %143 {offsets = [0, 128], sizes = [8, 128], strides = [1, 1]} : vector<8x384xf32> to vector<8x128xf32>
    %148 = vector.extract_strided_slice %143 {offsets = [0, 256], sizes = [8, 128], strides = [1, 1]} : vector<8x384xf32> to vector<8x128xf32>
    %149 = arith.mulf %147, %94 : vector<8x128xf32>
    %150 = arith.mulf %146, %145 : vector<8x128xf32>
    %151 = arith.addf %149, %150 : vector<8x128xf32>
    %152 = math.tanh %151 : vector<8x128xf32>
    %153 = arith.mulf %148, %152 : vector<8x128xf32>
    %154 = vector.extract_strided_slice %137 {offsets = [0, 0], sizes = [8, 384], strides = [1, 1]} : vector<8x512xf32> to vector<8x384xf32>
    %155 = arith.negf %154 : vector<8x384xf32>
    %156 = math.exp %155 : vector<8x384xf32>
    %cst_45 = arith.constant 1.000000e+00 : f32
    %157 = vector.broadcast %cst_45 : f32 to vector<8x384xf32>
    %158 = arith.addf %157, %156 : vector<8x384xf32>
    %159 = arith.divf %157, %158 : vector<8x384xf32>
    %160 = vector.extract_strided_slice %137 {offsets = [0, 384], sizes = [8, 128], strides = [1, 1]} : vector<8x512xf32> to vector<8x128xf32>
    %161 = math.tanh %160 : vector<8x128xf32>
    %162 = vector.extract_strided_slice %159 {offsets = [0, 0], sizes = [8, 128], strides = [1, 1]} : vector<8x384xf32> to vector<8x128xf32>
    %163 = vector.extract_strided_slice %159 {offsets = [0, 128], sizes = [8, 128], strides = [1, 1]} : vector<8x384xf32> to vector<8x128xf32>
    %164 = vector.extract_strided_slice %159 {offsets = [0, 256], sizes = [8, 128], strides = [1, 1]} : vector<8x384xf32> to vector<8x128xf32>
    %165 = arith.mulf %163, %110 : vector<8x128xf32>
    %166 = arith.mulf %162, %161 : vector<8x128xf32>
    %167 = arith.addf %165, %166 : vector<8x128xf32>
    %168 = math.tanh %167 : vector<8x128xf32>
    %169 = arith.mulf %164, %168 : vector<8x128xf32>
    %170 = arith.truncf %153 : vector<8x128xf32> to vector<8x128xbf16>
    %171 = arith.index_cast %c2_i32 : i32 to index
    %c0_46 = arith.constant 0 : index
    %c0_47 = arith.constant 0 : index
    %172 = vector.load %arg5[%171, %c0_46, %c0_47] : memref<8x8x128xbf16, #tpu.memory_space<vmem>>, vector<1x8x128xbf16>
    %173 = vector.shape_cast %172 : vector<1x8x128xbf16> to vector<8x128xbf16>
    %174 = vector.shape_cast %170 : vector<8x128xbf16> to vector<1x8x128xbf16>
    tpu.vector_store %arg5[%171, %c0_46, %c0_47], %174 {strides = array<i32>} : memref<8x8x128xbf16, #tpu.memory_space<vmem>>, vector<1x8x128xbf16>,
    %175 = arith.truncf %169 : vector<8x128xf32> to vector<8x128xbf16>
    %176 = arith.index_cast %123 : i32 to index
    %c0_48 = arith.constant 0 : index
    %c0_49 = arith.constant 0 : index
    %177 = vector.load %arg6[%176, %c0_48, %c0_49] : memref<8x8x128xbf16, #tpu.memory_space<vmem>>, vector<1x8x128xbf16>
    %178 = vector.shape_cast %177 : vector<1x8x128xbf16> to vector<8x128xbf16>
    %179 = vector.shape_cast %175 : vector<8x128xbf16> to vector<1x8x128xbf16>
    tpu.vector_store %arg6[%176, %c0_48, %c0_49], %179 {strides = array<i32>} : memref<8x8x128xbf16, #tpu.memory_space<vmem>>, vector<1x8x128xbf16>,
    %c3_i32 = arith.constant 3 : i32
    %c7_i32_50 = arith.constant 7 : i32
    %180 = arith.subi %c7_i32_50, %c3_i32 : i32
    %181 = arith.index_cast %c3_i32 : i32 to index
    %c0_51 = arith.constant 0 : index
    %c0_52 = arith.constant 0 : index
    %182 = vector.load %arg1[%181, %c0_51, %c0_52] : memref<8x8x512xbf16, #tpu.memory_space<vmem>>, vector<1x8x512xbf16>
    %183 = vector.shape_cast %182 : vector<1x8x512xbf16> to vector<8x512xbf16>
    %184 = arith.extf %183 : vector<8x512xbf16> to vector<8x512xf32>
    %185 = arith.truncf %153 : vector<8x128xf32> to vector<8x128xbf16>
    %cst_53 = arith.constant dense<0.000000e+00> : vector<8x512xf32>
    %186 = tpu.matmul %185, %3, %cst_53 {dimension_numbers = #tpu.dot_dimension_numbers<[1], [0], [0], [1], [0, 0, 1, 1], [], []>} : vector<8x128xbf16>, vector<128x512xbf16>, vector<8x512xf32> -> vector<8x512xf32>
    %187 = arith.addf %184, %186 : vector<8x512xf32>
    %188 = arith.index_cast %180 : i32 to index
    %c0_54 = arith.constant 0 : index
    %c0_55 = arith.constant 0 : index
    %189 = vector.load %arg2[%188, %c0_54, %c0_55] : memref<8x8x512xbf16, #tpu.memory_space<vmem>>, vector<1x8x512xbf16>
    %190 = vector.shape_cast %189 : vector<1x8x512xbf16> to vector<8x512xbf16>
    %191 = arith.extf %190 : vector<8x512xbf16> to vector<8x512xf32>
    %192 = arith.truncf %169 : vector<8x128xf32> to vector<8x128xbf16>
    %cst_56 = arith.constant dense<0.000000e+00> : vector<8x512xf32>
    %193 = tpu.matmul %192, %4, %cst_56 {dimension_numbers = #tpu.dot_dimension_numbers<[1], [0], [0], [1], [0, 0, 1, 1], [], []>} : vector<8x128xbf16>, vector<128x512xbf16>, vector<8x512xf32> -> vector<8x512xf32>
    %194 = arith.addf %191, %193 : vector<8x512xf32>
    %195 = vector.extract_strided_slice %187 {offsets = [0, 0], sizes = [8, 384], strides = [1, 1]} : vector<8x512xf32> to vector<8x384xf32>
    %196 = arith.negf %195 : vector<8x384xf32>
    %197 = math.exp %196 : vector<8x384xf32>
    %cst_57 = arith.constant 1.000000e+00 : f32
    %198 = vector.broadcast %cst_57 : f32 to vector<8x384xf32>
    %199 = arith.addf %198, %197 : vector<8x384xf32>
    %200 = arith.divf %198, %199 : vector<8x384xf32>
    %201 = vector.extract_strided_slice %187 {offsets = [0, 384], sizes = [8, 128], strides = [1, 1]} : vector<8x512xf32> to vector<8x128xf32>
    %202 = math.tanh %201 : vector<8x128xf32>
    %203 = vector.extract_strided_slice %200 {offsets = [0, 0], sizes = [8, 128], strides = [1, 1]} : vector<8x384xf32> to vector<8x128xf32>
    %204 = vector.extract_strided_slice %200 {offsets = [0, 128], sizes = [8, 128], strides = [1, 1]} : vector<8x384xf32> to vector<8x128xf32>
    %205 = vector.extract_strided_slice %200 {offsets = [0, 256], sizes = [8, 128], strides = [1, 1]} : vector<8x384xf32> to vector<8x128xf32>
    %206 = arith.mulf %204, %151 : vector<8x128xf32>
    %207 = arith.mulf %203, %202 : vector<8x128xf32>
    %208 = arith.addf %206, %207 : vector<8x128xf32>
    %209 = math.tanh %208 : vector<8x128xf32>
    %210 = arith.mulf %205, %209 : vector<8x128xf32>
    %211 = vector.extract_strided_slice %194 {offsets = [0, 0], sizes = [8, 384], strides = [1, 1]} : vector<8x512xf32> to vector<8x384xf32>
    %212 = arith.negf %211 : vector<8x384xf32>
    %213 = math.exp %212 : vector<8x384xf32>
    %cst_58 = arith.constant 1.000000e+00 : f32
    %214 = vector.broadcast %cst_58 : f32 to vector<8x384xf32>
    %215 = arith.addf %214, %213 : vector<8x384xf32>
    %216 = arith.divf %214, %215 : vector<8x384xf32>
    %217 = vector.extract_strided_slice %194 {offsets = [0, 384], sizes = [8, 128], strides = [1, 1]} : vector<8x512xf32> to vector<8x128xf32>
    %218 = math.tanh %217 : vector<8x128xf32>
    %219 = vector.extract_strided_slice %216 {offsets = [0, 0], sizes = [8, 128], strides = [1, 1]} : vector<8x384xf32> to vector<8x128xf32>
    %220 = vector.extract_strided_slice %216 {offsets = [0, 128], sizes = [8, 128], strides = [1, 1]} : vector<8x384xf32> to vector<8x128xf32>
    %221 = vector.extract_strided_slice %216 {offsets = [0, 256], sizes = [8, 128], strides = [1, 1]} : vector<8x384xf32> to vector<8x128xf32>
    %222 = arith.mulf %220, %167 : vector<8x128xf32>
    %223 = arith.mulf %219, %218 : vector<8x128xf32>
    %224 = arith.addf %222, %223 : vector<8x128xf32>
    %225 = math.tanh %224 : vector<8x128xf32>
    %226 = arith.mulf %221, %225 : vector<8x128xf32>
    %227 = arith.truncf %210 : vector<8x128xf32> to vector<8x128xbf16>
    %228 = arith.index_cast %c3_i32 : i32 to index
    %c0_59 = arith.constant 0 : index
    %c0_60 = arith.constant 0 : index
    %229 = vector.load %arg5[%228, %c0_59, %c0_60] : memref<8x8x128xbf16, #tpu.memory_space<vmem>>, vector<1x8x128xbf16>
    %230 = vector.shape_cast %229 : vector<1x8x128xbf16> to vector<8x128xbf16>
    %231 = vector.shape_cast %227 : vector<8x128xbf16> to vector<1x8x128xbf16>
    tpu.vector_store %arg5[%228, %c0_59, %c0_60], %231 {strides = array<i32>} : memref<8x8x128xbf16, #tpu.memory_space<vmem>>, vector<1x8x128xbf16>,
    %232 = arith.truncf %226 : vector<8x128xf32> to vector<8x128xbf16>
    %233 = arith.index_cast %180 : i32 to index
    %c0_61 = arith.constant 0 : index
    %c0_62 = arith.constant 0 : index
    %234 = vector.load %arg6[%233, %c0_61, %c0_62] : memref<8x8x128xbf16, #tpu.memory_space<vmem>>, vector<1x8x128xbf16>
    %235 = vector.shape_cast %234 : vector<1x8x128xbf16> to vector<8x128xbf16>
    %236 = vector.shape_cast %232 : vector<8x128xbf16> to vector<1x8x128xbf16>
    tpu.vector_store %arg6[%233, %c0_61, %c0_62], %236 {strides = array<i32>} : memref<8x8x128xbf16, #tpu.memory_space<vmem>>, vector<1x8x128xbf16>,
    %c4_i32 = arith.constant 4 : i32
    %c7_i32_63 = arith.constant 7 : i32
    %237 = arith.subi %c7_i32_63, %c4_i32 : i32
    %238 = arith.index_cast %c4_i32 : i32 to index
    %c0_64 = arith.constant 0 : index
    %c0_65 = arith.constant 0 : index
    %239 = vector.load %arg1[%238, %c0_64, %c0_65] : memref<8x8x512xbf16, #tpu.memory_space<vmem>>, vector<1x8x512xbf16>
    %240 = vector.shape_cast %239 : vector<1x8x512xbf16> to vector<8x512xbf16>
    %241 = arith.extf %240 : vector<8x512xbf16> to vector<8x512xf32>
    %242 = arith.truncf %210 : vector<8x128xf32> to vector<8x128xbf16>
    %cst_66 = arith.constant dense<0.000000e+00> : vector<8x512xf32>
    %243 = tpu.matmul %242, %3, %cst_66 {dimension_numbers = #tpu.dot_dimension_numbers<[1], [0], [0], [1], [0, 0, 1, 1], [], []>} : vector<8x128xbf16>, vector<128x512xbf16>, vector<8x512xf32> -> vector<8x512xf32>
    %244 = arith.addf %241, %243 : vector<8x512xf32>
    %245 = arith.index_cast %237 : i32 to index
    %c0_67 = arith.constant 0 : index
    %c0_68 = arith.constant 0 : index
    %246 = vector.load %arg2[%245, %c0_67, %c0_68] : memref<8x8x512xbf16, #tpu.memory_space<vmem>>, vector<1x8x512xbf16>
    %247 = vector.shape_cast %246 : vector<1x8x512xbf16> to vector<8x512xbf16>
    %248 = arith.extf %247 : vector<8x512xbf16> to vector<8x512xf32>
    %249 = arith.truncf %226 : vector<8x128xf32> to vector<8x128xbf16>
    %cst_69 = arith.constant dense<0.000000e+00> : vector<8x512xf32>
    %250 = tpu.matmul %249, %4, %cst_69 {dimension_numbers = #tpu.dot_dimension_numbers<[1], [0], [0], [1], [0, 0, 1, 1], [], []>} : vector<8x128xbf16>, vector<128x512xbf16>, vector<8x512xf32> -> vector<8x512xf32>
    %251 = arith.addf %248, %250 : vector<8x512xf32>
    %252 = vector.extract_strided_slice %244 {offsets = [0, 0], sizes = [8, 384], strides = [1, 1]} : vector<8x512xf32> to vector<8x384xf32>
    %253 = arith.negf %252 : vector<8x384xf32>
    %254 = math.exp %253 : vector<8x384xf32>
    %cst_70 = arith.constant 1.000000e+00 : f32
    %255 = vector.broadcast %cst_70 : f32 to vector<8x384xf32>
    %256 = arith.addf %255, %254 : vector<8x384xf32>
    %257 = arith.divf %255, %256 : vector<8x384xf32>
    %258 = vector.extract_strided_slice %244 {offsets = [0, 384], sizes = [8, 128], strides = [1, 1]} : vector<8x512xf32> to vector<8x128xf32>
    %259 = math.tanh %258 : vector<8x128xf32>
    %260 = vector.extract_strided_slice %257 {offsets = [0, 0], sizes = [8, 128], strides = [1, 1]} : vector<8x384xf32> to vector<8x128xf32>
    %261 = vector.extract_strided_slice %257 {offsets = [0, 128], sizes = [8, 128], strides = [1, 1]} : vector<8x384xf32> to vector<8x128xf32>
    %262 = vector.extract_strided_slice %257 {offsets = [0, 256], sizes = [8, 128], strides = [1, 1]} : vector<8x384xf32> to vector<8x128xf32>
    %263 = arith.mulf %261, %208 : vector<8x128xf32>
    %264 = arith.mulf %260, %259 : vector<8x128xf32>
    %265 = arith.addf %263, %264 : vector<8x128xf32>
    %266 = math.tanh %265 : vector<8x128xf32>
    %267 = arith.mulf %262, %266 : vector<8x128xf32>
    %268 = vector.extract_strided_slice %251 {offsets = [0, 0], sizes = [8, 384], strides = [1, 1]} : vector<8x512xf32> to vector<8x384xf32>
    %269 = arith.negf %268 : vector<8x384xf32>
    %270 = math.exp %269 : vector<8x384xf32>
    %cst_71 = arith.constant 1.000000e+00 : f32
    %271 = vector.broadcast %cst_71 : f32 to vector<8x384xf32>
    %272 = arith.addf %271, %270 : vector<8x384xf32>
    %273 = arith.divf %271, %272 : vector<8x384xf32>
    %274 = vector.extract_strided_slice %251 {offsets = [0, 384], sizes = [8, 128], strides = [1, 1]} : vector<8x512xf32> to vector<8x128xf32>
    %275 = math.tanh %274 : vector<8x128xf32>
    %276 = vector.extract_strided_slice %273 {offsets = [0, 0], sizes = [8, 128], strides = [1, 1]} : vector<8x384xf32> to vector<8x128xf32>
    %277 = vector.extract_strided_slice %273 {offsets = [0, 128], sizes = [8, 128], strides = [1, 1]} : vector<8x384xf32> to vector<8x128xf32>
    %278 = vector.extract_strided_slice %273 {offsets = [0, 256], sizes = [8, 128], strides = [1, 1]} : vector<8x384xf32> to vector<8x128xf32>
    %279 = arith.mulf %277, %224 : vector<8x128xf32>
    %280 = arith.mulf %276, %275 : vector<8x128xf32>
    %281 = arith.addf %279, %280 : vector<8x128xf32>
    %282 = math.tanh %281 : vector<8x128xf32>
    %283 = arith.mulf %278, %282 : vector<8x128xf32>
    %284 = arith.truncf %267 : vector<8x128xf32> to vector<8x128xbf16>
    %285 = arith.index_cast %c4_i32 : i32 to index
    %c0_72 = arith.constant 0 : index
    %c0_73 = arith.constant 0 : index
    %286 = vector.load %arg5[%285, %c0_72, %c0_73] : memref<8x8x128xbf16, #tpu.memory_space<vmem>>, vector<1x8x128xbf16>
    %287 = vector.shape_cast %286 : vector<1x8x128xbf16> to vector<8x128xbf16>
    %288 = vector.shape_cast %284 : vector<8x128xbf16> to vector<1x8x128xbf16>
    tpu.vector_store %arg5[%285, %c0_72, %c0_73], %288 {strides = array<i32>} : memref<8x8x128xbf16, #tpu.memory_space<vmem>>, vector<1x8x128xbf16>,
    %289 = arith.truncf %283 : vector<8x128xf32> to vector<8x128xbf16>
    %290 = arith.index_cast %237 : i32 to index
    %c0_74 = arith.constant 0 : index
    %c0_75 = arith.constant 0 : index
    %291 = vector.load %arg6[%290, %c0_74, %c0_75] : memref<8x8x128xbf16, #tpu.memory_space<vmem>>, vector<1x8x128xbf16>
    %292 = vector.shape_cast %291 : vector<1x8x128xbf16> to vector<8x128xbf16>
    %293 = vector.shape_cast %289 : vector<8x128xbf16> to vector<1x8x128xbf16>
    tpu.vector_store %arg6[%290, %c0_74, %c0_75], %293 {strides = array<i32>} : memref<8x8x128xbf16, #tpu.memory_space<vmem>>, vector<1x8x128xbf16>,
    %c5_i32 = arith.constant 5 : i32
    %c7_i32_76 = arith.constant 7 : i32
    %294 = arith.subi %c7_i32_76, %c5_i32 : i32
    %295 = arith.index_cast %c5_i32 : i32 to index
    %c0_77 = arith.constant 0 : index
    %c0_78 = arith.constant 0 : index
    %296 = vector.load %arg1[%295, %c0_77, %c0_78] : memref<8x8x512xbf16, #tpu.memory_space<vmem>>, vector<1x8x512xbf16>
    %297 = vector.shape_cast %296 : vector<1x8x512xbf16> to vector<8x512xbf16>
    %298 = arith.extf %297 : vector<8x512xbf16> to vector<8x512xf32>
    %299 = arith.truncf %267 : vector<8x128xf32> to vector<8x128xbf16>
    %cst_79 = arith.constant dense<0.000000e+00> : vector<8x512xf32>
    %300 = tpu.matmul %299, %3, %cst_79 {dimension_numbers = #tpu.dot_dimension_numbers<[1], [0], [0], [1], [0, 0, 1, 1], [], []>} : vector<8x128xbf16>, vector<128x512xbf16>, vector<8x512xf32> -> vector<8x512xf32>
    %301 = arith.addf %298, %300 : vector<8x512xf32>
    %302 = arith.index_cast %294 : i32 to index
    %c0_80 = arith.constant 0 : index
    %c0_81 = arith.constant 0 : index
    %303 = vector.load %arg2[%302, %c0_80, %c0_81] : memref<8x8x512xbf16, #tpu.memory_space<vmem>>, vector<1x8x512xbf16>
    %304 = vector.shape_cast %303 : vector<1x8x512xbf16> to vector<8x512xbf16>
    %305 = arith.extf %304 : vector<8x512xbf16> to vector<8x512xf32>
    %306 = arith.truncf %283 : vector<8x128xf32> to vector<8x128xbf16>
    %cst_82 = arith.constant dense<0.000000e+00> : vector<8x512xf32>
    %307 = tpu.matmul %306, %4, %cst_82 {dimension_numbers = #tpu.dot_dimension_numbers<[1], [0], [0], [1], [0, 0, 1, 1], [], []>} : vector<8x128xbf16>, vector<128x512xbf16>, vector<8x512xf32> -> vector<8x512xf32>
    %308 = arith.addf %305, %307 : vector<8x512xf32>
    %309 = vector.extract_strided_slice %301 {offsets = [0, 0], sizes = [8, 384], strides = [1, 1]} : vector<8x512xf32> to vector<8x384xf32>
    %310 = arith.negf %309 : vector<8x384xf32>
    %311 = math.exp %310 : vector<8x384xf32>
    %cst_83 = arith.constant 1.000000e+00 : f32
    %312 = vector.broadcast %cst_83 : f32 to vector<8x384xf32>
    %313 = arith.addf %312, %311 : vector<8x384xf32>
    %314 = arith.divf %312, %313 : vector<8x384xf32>
    %315 = vector.extract_strided_slice %301 {offsets = [0, 384], sizes = [8, 128], strides = [1, 1]} : vector<8x512xf32> to vector<8x128xf32>
    %316 = math.tanh %315 : vector<8x128xf32>
    %317 = vector.extract_strided_slice %314 {offsets = [0, 0], sizes = [8, 128], strides = [1, 1]} : vector<8x384xf32> to vector<8x128xf32>
    %318 = vector.extract_strided_slice %314 {offsets = [0, 128], sizes = [8, 128], strides = [1, 1]} : vector<8x384xf32> to vector<8x128xf32>
    %319 = vector.extract_strided_slice %314 {offsets = [0, 256], sizes = [8, 128], strides = [1, 1]} : vector<8x384xf32> to vector<8x128xf32>
    %320 = arith.mulf %318, %265 : vector<8x128xf32>
    %321 = arith.mulf %317, %316 : vector<8x128xf32>
    %322 = arith.addf %320, %321 : vector<8x128xf32>
    %323 = math.tanh %322 : vector<8x128xf32>
    %324 = arith.mulf %319, %323 : vector<8x128xf32>
    %325 = vector.extract_strided_slice %308 {offsets = [0, 0], sizes = [8, 384], strides = [1, 1]} : vector<8x512xf32> to vector<8x384xf32>
    %326 = arith.negf %325 : vector<8x384xf32>
    %327 = math.exp %326 : vector<8x384xf32>
    %cst_84 = arith.constant 1.000000e+00 : f32
    %328 = vector.broadcast %cst_84 : f32 to vector<8x384xf32>
    %329 = arith.addf %328, %327 : vector<8x384xf32>
    %330 = arith.divf %328, %329 : vector<8x384xf32>
    %331 = vector.extract_strided_slice %308 {offsets = [0, 384], sizes = [8, 128], strides = [1, 1]} : vector<8x512xf32> to vector<8x128xf32>
    %332 = math.tanh %331 : vector<8x128xf32>
    %333 = vector.extract_strided_slice %330 {offsets = [0, 0], sizes = [8, 128], strides = [1, 1]} : vector<8x384xf32> to vector<8x128xf32>
    %334 = vector.extract_strided_slice %330 {offsets = [0, 128], sizes = [8, 128], strides = [1, 1]} : vector<8x384xf32> to vector<8x128xf32>
    %335 = vector.extract_strided_slice %330 {offsets = [0, 256], sizes = [8, 128], strides = [1, 1]} : vector<8x384xf32> to vector<8x128xf32>
    %336 = arith.mulf %334, %281 : vector<8x128xf32>
    %337 = arith.mulf %333, %332 : vector<8x128xf32>
    %338 = arith.addf %336, %337 : vector<8x128xf32>
    %339 = math.tanh %338 : vector<8x128xf32>
    %340 = arith.mulf %335, %339 : vector<8x128xf32>
    %341 = arith.truncf %324 : vector<8x128xf32> to vector<8x128xbf16>
    %342 = arith.index_cast %c5_i32 : i32 to index
    %c0_85 = arith.constant 0 : index
    %c0_86 = arith.constant 0 : index
    %343 = vector.load %arg5[%342, %c0_85, %c0_86] : memref<8x8x128xbf16, #tpu.memory_space<vmem>>, vector<1x8x128xbf16>
    %344 = vector.shape_cast %343 : vector<1x8x128xbf16> to vector<8x128xbf16>
    %345 = vector.shape_cast %341 : vector<8x128xbf16> to vector<1x8x128xbf16>
    tpu.vector_store %arg5[%342, %c0_85, %c0_86], %345 {strides = array<i32>} : memref<8x8x128xbf16, #tpu.memory_space<vmem>>, vector<1x8x128xbf16>,
    %346 = arith.truncf %340 : vector<8x128xf32> to vector<8x128xbf16>
    %347 = arith.index_cast %294 : i32 to index
    %c0_87 = arith.constant 0 : index
    %c0_88 = arith.constant 0 : index
    %348 = vector.load %arg6[%347, %c0_87, %c0_88] : memref<8x8x128xbf16, #tpu.memory_space<vmem>>, vector<1x8x128xbf16>
    %349 = vector.shape_cast %348 : vector<1x8x128xbf16> to vector<8x128xbf16>
    %350 = vector.shape_cast %346 : vector<8x128xbf16> to vector<1x8x128xbf16>
    tpu.vector_store %arg6[%347, %c0_87, %c0_88], %350 {strides = array<i32>} : memref<8x8x128xbf16, #tpu.memory_space<vmem>>, vector<1x8x128xbf16>,
    %c6_i32 = arith.constant 6 : i32
    %c7_i32_89 = arith.constant 7 : i32
    %351 = arith.subi %c7_i32_89, %c6_i32 : i32
    %352 = arith.index_cast %c6_i32 : i32 to index
    %c0_90 = arith.constant 0 : index
    %c0_91 = arith.constant 0 : index
    %353 = vector.load %arg1[%352, %c0_90, %c0_91] : memref<8x8x512xbf16, #tpu.memory_space<vmem>>, vector<1x8x512xbf16>
    %354 = vector.shape_cast %353 : vector<1x8x512xbf16> to vector<8x512xbf16>
    %355 = arith.extf %354 : vector<8x512xbf16> to vector<8x512xf32>
    %356 = arith.truncf %324 : vector<8x128xf32> to vector<8x128xbf16>
    %cst_92 = arith.constant dense<0.000000e+00> : vector<8x512xf32>
    %357 = tpu.matmul %356, %3, %cst_92 {dimension_numbers = #tpu.dot_dimension_numbers<[1], [0], [0], [1], [0, 0, 1, 1], [], []>} : vector<8x128xbf16>, vector<128x512xbf16>, vector<8x512xf32> -> vector<8x512xf32>
    %358 = arith.addf %355, %357 : vector<8x512xf32>
    %359 = arith.index_cast %351 : i32 to index
    %c0_93 = arith.constant 0 : index
    %c0_94 = arith.constant 0 : index
    %360 = vector.load %arg2[%359, %c0_93, %c0_94] : memref<8x8x512xbf16, #tpu.memory_space<vmem>>, vector<1x8x512xbf16>
    %361 = vector.shape_cast %360 : vector<1x8x512xbf16> to vector<8x512xbf16>
    %362 = arith.extf %361 : vector<8x512xbf16> to vector<8x512xf32>
    %363 = arith.truncf %340 : vector<8x128xf32> to vector<8x128xbf16>
    %cst_95 = arith.constant dense<0.000000e+00> : vector<8x512xf32>
    %364 = tpu.matmul %363, %4, %cst_95 {dimension_numbers = #tpu.dot_dimension_numbers<[1], [0], [0], [1], [0, 0, 1, 1], [], []>} : vector<8x128xbf16>, vector<128x512xbf16>, vector<8x512xf32> -> vector<8x512xf32>
    %365 = arith.addf %362, %364 : vector<8x512xf32>
    %366 = vector.extract_strided_slice %358 {offsets = [0, 0], sizes = [8, 384], strides = [1, 1]} : vector<8x512xf32> to vector<8x384xf32>
    %367 = arith.negf %366 : vector<8x384xf32>
    %368 = math.exp %367 : vector<8x384xf32>
    %cst_96 = arith.constant 1.000000e+00 : f32
    %369 = vector.broadcast %cst_96 : f32 to vector<8x384xf32>
    %370 = arith.addf %369, %368 : vector<8x384xf32>
    %371 = arith.divf %369, %370 : vector<8x384xf32>
    %372 = vector.extract_strided_slice %358 {offsets = [0, 384], sizes = [8, 128], strides = [1, 1]} : vector<8x512xf32> to vector<8x128xf32>
    %373 = math.tanh %372 : vector<8x128xf32>
    %374 = vector.extract_strided_slice %371 {offsets = [0, 0], sizes = [8, 128], strides = [1, 1]} : vector<8x384xf32> to vector<8x128xf32>
    %375 = vector.extract_strided_slice %371 {offsets = [0, 128], sizes = [8, 128], strides = [1, 1]} : vector<8x384xf32> to vector<8x128xf32>
    %376 = vector.extract_strided_slice %371 {offsets = [0, 256], sizes = [8, 128], strides = [1, 1]} : vector<8x384xf32> to vector<8x128xf32>
    %377 = arith.mulf %375, %322 : vector<8x128xf32>
    %378 = arith.mulf %374, %373 : vector<8x128xf32>
    %379 = arith.addf %377, %378 : vector<8x128xf32>
    %380 = math.tanh %379 : vector<8x128xf32>
    %381 = arith.mulf %376, %380 : vector<8x128xf32>
    %382 = vector.extract_strided_slice %365 {offsets = [0, 0], sizes = [8, 384], strides = [1, 1]} : vector<8x512xf32> to vector<8x384xf32>
    %383 = arith.negf %382 : vector<8x384xf32>
    %384 = math.exp %383 : vector<8x384xf32>
    %cst_97 = arith.constant 1.000000e+00 : f32
    %385 = vector.broadcast %cst_97 : f32 to vector<8x384xf32>
    %386 = arith.addf %385, %384 : vector<8x384xf32>
    %387 = arith.divf %385, %386 : vector<8x384xf32>
    %388 = vector.extract_strided_slice %365 {offsets = [0, 384], sizes = [8, 128], strides = [1, 1]} : vector<8x512xf32> to vector<8x128xf32>
    %389 = math.tanh %388 : vector<8x128xf32>
    %390 = vector.extract_strided_slice %387 {offsets = [0, 0], sizes = [8, 128], strides = [1, 1]} : vector<8x384xf32> to vector<8x128xf32>
    %391 = vector.extract_strided_slice %387 {offsets = [0, 128], sizes = [8, 128], strides = [1, 1]} : vector<8x384xf32> to vector<8x128xf32>
    %392 = vector.extract_strided_slice %387 {offsets = [0, 256], sizes = [8, 128], strides = [1, 1]} : vector<8x384xf32> to vector<8x128xf32>
    %393 = arith.mulf %391, %338 : vector<8x128xf32>
    %394 = arith.mulf %390, %389 : vector<8x128xf32>
    %395 = arith.addf %393, %394 : vector<8x128xf32>
    %396 = math.tanh %395 : vector<8x128xf32>
    %397 = arith.mulf %392, %396 : vector<8x128xf32>
    %398 = arith.truncf %381 : vector<8x128xf32> to vector<8x128xbf16>
    %399 = arith.index_cast %c6_i32 : i32 to index
    %c0_98 = arith.constant 0 : index
    %c0_99 = arith.constant 0 : index
    %400 = vector.load %arg5[%399, %c0_98, %c0_99] : memref<8x8x128xbf16, #tpu.memory_space<vmem>>, vector<1x8x128xbf16>
    %401 = vector.shape_cast %400 : vector<1x8x128xbf16> to vector<8x128xbf16>
    %402 = vector.shape_cast %398 : vector<8x128xbf16> to vector<1x8x128xbf16>
    tpu.vector_store %arg5[%399, %c0_98, %c0_99], %402 {strides = array<i32>} : memref<8x8x128xbf16, #tpu.memory_space<vmem>>, vector<1x8x128xbf16>,
    %403 = arith.truncf %397 : vector<8x128xf32> to vector<8x128xbf16>
    %404 = arith.index_cast %351 : i32 to index
    %c0_100 = arith.constant 0 : index
    %c0_101 = arith.constant 0 : index
    %405 = vector.load %arg6[%404, %c0_100, %c0_101] : memref<8x8x128xbf16, #tpu.memory_space<vmem>>, vector<1x8x128xbf16>
    %406 = vector.shape_cast %405 : vector<1x8x128xbf16> to vector<8x128xbf16>
    %407 = vector.shape_cast %403 : vector<8x128xbf16> to vector<1x8x128xbf16>
    tpu.vector_store %arg6[%404, %c0_100, %c0_101], %407 {strides = array<i32>} : memref<8x8x128xbf16, #tpu.memory_space<vmem>>, vector<1x8x128xbf16>,
    %c7_i32_102 = arith.constant 7 : i32
    %c7_i32_103 = arith.constant 7 : i32
    %408 = arith.subi %c7_i32_103, %c7_i32_102 : i32
    %409 = arith.index_cast %c7_i32_102 : i32 to index
    %c0_104 = arith.constant 0 : index
    %c0_105 = arith.constant 0 : index
    %410 = vector.load %arg1[%409, %c0_104, %c0_105] : memref<8x8x512xbf16, #tpu.memory_space<vmem>>, vector<1x8x512xbf16>
    %411 = vector.shape_cast %410 : vector<1x8x512xbf16> to vector<8x512xbf16>
    %412 = arith.extf %411 : vector<8x512xbf16> to vector<8x512xf32>
    %413 = arith.truncf %381 : vector<8x128xf32> to vector<8x128xbf16>
    %cst_106 = arith.constant dense<0.000000e+00> : vector<8x512xf32>
    %414 = tpu.matmul %413, %3, %cst_106 {dimension_numbers = #tpu.dot_dimension_numbers<[1], [0], [0], [1], [0, 0, 1, 1], [], []>} : vector<8x128xbf16>, vector<128x512xbf16>, vector<8x512xf32> -> vector<8x512xf32>
    %415 = arith.addf %412, %414 : vector<8x512xf32>
    %416 = arith.index_cast %408 : i32 to index
    %c0_107 = arith.constant 0 : index
    %c0_108 = arith.constant 0 : index
    %417 = vector.load %arg2[%416, %c0_107, %c0_108] : memref<8x8x512xbf16, #tpu.memory_space<vmem>>, vector<1x8x512xbf16>
    %418 = vector.shape_cast %417 : vector<1x8x512xbf16> to vector<8x512xbf16>
    %419 = arith.extf %418 : vector<8x512xbf16> to vector<8x512xf32>
    %420 = arith.truncf %397 : vector<8x128xf32> to vector<8x128xbf16>
    %cst_109 = arith.constant dense<0.000000e+00> : vector<8x512xf32>
    %421 = tpu.matmul %420, %4, %cst_109 {dimension_numbers = #tpu.dot_dimension_numbers<[1], [0], [0], [1], [0, 0, 1, 1], [], []>} : vector<8x128xbf16>, vector<128x512xbf16>, vector<8x512xf32> -> vector<8x512xf32>
    %422 = arith.addf %419, %421 : vector<8x512xf32>
    %423 = vector.extract_strided_slice %415 {offsets = [0, 0], sizes = [8, 384], strides = [1, 1]} : vector<8x512xf32> to vector<8x384xf32>
    %424 = arith.negf %423 : vector<8x384xf32>
    %425 = math.exp %424 : vector<8x384xf32>
    %cst_110 = arith.constant 1.000000e+00 : f32
    %426 = vector.broadcast %cst_110 : f32 to vector<8x384xf32>
    %427 = arith.addf %426, %425 : vector<8x384xf32>
    %428 = arith.divf %426, %427 : vector<8x384xf32>
    %429 = vector.extract_strided_slice %415 {offsets = [0, 384], sizes = [8, 128], strides = [1, 1]} : vector<8x512xf32> to vector<8x128xf32>
    %430 = math.tanh %429 : vector<8x128xf32>
    %431 = vector.extract_strided_slice %428 {offsets = [0, 0], sizes = [8, 128], strides = [1, 1]} : vector<8x384xf32> to vector<8x128xf32>
    %432 = vector.extract_strided_slice %428 {offsets = [0, 128], sizes = [8, 128], strides = [1, 1]} : vector<8x384xf32> to vector<8x128xf32>
    %433 = vector.extract_strided_slice %428 {offsets = [0, 256], sizes = [8, 128], strides = [1, 1]} : vector<8x384xf32> to vector<8x128xf32>
    %434 = arith.mulf %432, %379 : vector<8x128xf32>
    %435 = arith.mulf %431, %430 : vector<8x128xf32>
    %436 = arith.addf %434, %435 : vector<8x128xf32>
    %437 = math.tanh %436 : vector<8x128xf32>
    %438 = arith.mulf %433, %437 : vector<8x128xf32>
    %439 = vector.extract_strided_slice %422 {offsets = [0, 0], sizes = [8, 384], strides = [1, 1]} : vector<8x512xf32> to vector<8x384xf32>
    %440 = arith.negf %439 : vector<8x384xf32>
    %441 = math.exp %440 : vector<8x384xf32>
    %cst_111 = arith.constant 1.000000e+00 : f32
    %442 = vector.broadcast %cst_111 : f32 to vector<8x384xf32>
    %443 = arith.addf %442, %441 : vector<8x384xf32>
    %444 = arith.divf %442, %443 : vector<8x384xf32>
    %445 = vector.extract_strided_slice %422 {offsets = [0, 384], sizes = [8, 128], strides = [1, 1]} : vector<8x512xf32> to vector<8x128xf32>
    %446 = math.tanh %445 : vector<8x128xf32>
    %447 = vector.extract_strided_slice %444 {offsets = [0, 0], sizes = [8, 128], strides = [1, 1]} : vector<8x384xf32> to vector<8x128xf32>
    %448 = vector.extract_strided_slice %444 {offsets = [0, 128], sizes = [8, 128], strides = [1, 1]} : vector<8x384xf32> to vector<8x128xf32>
    %449 = vector.extract_strided_slice %444 {offsets = [0, 256], sizes = [8, 128], strides = [1, 1]} : vector<8x384xf32> to vector<8x128xf32>
    %450 = arith.mulf %448, %395 : vector<8x128xf32>
    %451 = arith.mulf %447, %446 : vector<8x128xf32>
    %452 = arith.addf %450, %451 : vector<8x128xf32>
    %453 = math.tanh %452 : vector<8x128xf32>
    %454 = arith.mulf %449, %453 : vector<8x128xf32>
    %455 = arith.truncf %438 : vector<8x128xf32> to vector<8x128xbf16>
    %456 = arith.index_cast %c7_i32_102 : i32 to index
    %c0_112 = arith.constant 0 : index
    %c0_113 = arith.constant 0 : index
    %457 = vector.load %arg5[%456, %c0_112, %c0_113] : memref<8x8x128xbf16, #tpu.memory_space<vmem>>, vector<1x8x128xbf16>
    %458 = vector.shape_cast %457 : vector<1x8x128xbf16> to vector<8x128xbf16>
    %459 = vector.shape_cast %455 : vector<8x128xbf16> to vector<1x8x128xbf16>
    tpu.vector_store %arg5[%456, %c0_112, %c0_113], %459 {strides = array<i32>} : memref<8x8x128xbf16, #tpu.memory_space<vmem>>, vector<1x8x128xbf16>,
    %460 = arith.truncf %454 : vector<8x128xf32> to vector<8x128xbf16>
    %461 = arith.index_cast %408 : i32 to index
    %c0_114 = arith.constant 0 : index
    %c0_115 = arith.constant 0 : index
    %462 = vector.load %arg6[%461, %c0_114, %c0_115] : memref<8x8x128xbf16, #tpu.memory_space<vmem>>, vector<1x8x128xbf16>
    %463 = vector.shape_cast %462 : vector<1x8x128xbf16> to vector<8x128xbf16>
    %464 = vector.shape_cast %460 : vector<8x128xbf16> to vector<1x8x128xbf16>
    tpu.vector_store %arg6[%461, %c0_114, %c0_115], %464 {strides = array<i32>} : memref<8x8x128xbf16, #tpu.memory_space<vmem>>, vector<1x8x128xbf16>,
    %c8_i32 = arith.constant 8 : i32
    %c0_116 = arith.constant 0 : index
    %c0_117 = arith.constant 0 : index
    %465 = vector.load %arg7[%c0_116, %c0_117] : memref<8x128xf32, #tpu.memory_space<vmem>>, vector<8x128xf32>
    tpu.vector_store %arg7[%c0_116, %c0_117], %438 {strides = array<i32>} : memref<8x128xf32, #tpu.memory_space<vmem>>, vector<8x128xf32>,
    %c0_118 = arith.constant 0 : index
    %c0_119 = arith.constant 0 : index
    %466 = vector.load %arg8[%c0_118, %c0_119] : memref<8x128xf32, #tpu.memory_space<vmem>>, vector<8x128xf32>
    tpu.vector_store %arg8[%c0_118, %c0_119], %436 {strides = array<i32>} : memref<8x128xf32, #tpu.memory_space<vmem>>, vector<8x128xf32>,
    %c0_120 = arith.constant 0 : index
    %c0_121 = arith.constant 0 : index
    %467 = vector.load %arg9[%c0_120, %c0_121] : memref<8x128xf32, #tpu.memory_space<vmem>>, vector<8x128xf32>
    tpu.vector_store %arg9[%c0_120, %c0_121], %454 {strides = array<i32>} : memref<8x128xf32, #tpu.memory_space<vmem>>, vector<8x128xf32>,
    %c0_122 = arith.constant 0 : index
    %c0_123 = arith.constant 0 : index
    %468 = vector.load %arg10[%c0_122, %c0_123] : memref<8x128xf32, #tpu.memory_space<vmem>>, vector<8x128xf32>
    tpu.vector_store %arg10[%c0_122, %c0_123], %452 {strides = array<i32>} : memref<8x128xf32, #tpu.memory_space<vmem>>, vector<8x128xf32>,
    return
  }
  func.func @transform_0(%arg0: i32) -> (i32, i32, i32) {
    %c0_i32 = arith.constant 0 : i32
    %c0_i32_0 = arith.constant 0 : i32
    %c0_i32_1 = arith.constant 0 : i32
    return %arg0, %c0_i32, %c0_i32_0 : i32, i32, i32
  }
  func.func @transform_1(%arg0: i32) -> (i32, i32, i32) {
    %c0_i32 = arith.constant 0 : i32
    %0 = arith.subi %c0_i32, %arg0 : i32
    %c0_i32_0 = arith.constant 0 : i32
    %c1_i32 = arith.constant 1 : i32
    %c0_i32_1 = arith.constant 0 : i32
    return %0, %c0_i32_0, %c1_i32 : i32, i32, i32
  }
  func.func @transform_2(%arg0: i32) -> (i32, i32) {
    %c0_i32 = arith.constant 0 : i32
    %c0_i32_0 = arith.constant 0 : i32
    %c0_i32_1 = arith.constant 0 : i32
    return %c0_i32, %c0_i32_0 : i32, i32
  }
  func.func @transform_3(%arg0: i32) -> (i32, i32) {
    %c0_i32 = arith.constant 0 : i32
    %c0_i32_0 = arith.constant 0 : i32
    %c0_i32_1 = arith.constant 0 : i32
    return %c0_i32, %c0_i32_0 : i32, i32
  }
  func.func @transform_4(%arg0: i32) -> (i32, i32, i32) {
    %c0_i32 = arith.constant 0 : i32
    %c0_i32_0 = arith.constant 0 : i32
    %c0_i32_1 = arith.constant 0 : i32
    return %arg0, %c0_i32, %c0_i32_0 : i32, i32, i32
  }
  func.func @transform_5(%arg0: i32) -> (i32, i32, i32) {
    %c0_i32 = arith.constant 0 : i32
    %0 = arith.subi %c0_i32, %arg0 : i32
    %c0_i32_0 = arith.constant 0 : i32
    %c0_i32_1 = arith.constant 0 : i32
    %c0_i32_2 = arith.constant 0 : i32
    return %0, %c0_i32_0, %c0_i32_1 : i32, i32, i32
  }
}

module attributes {stable_mosaic.version = 11 : i64} {
  func.func @_proj2_kernel(%arg0: i32, %arg1: memref<64x128xbf16, #tpu.memory_space<vmem>>, %arg2: memref<64x128xbf16, #tpu.memory_space<vmem>>, %arg3: memref<128x1024xbf16, #tpu.memory_space<vmem>>, %arg4: memref<128x1024xbf16, #tpu.memory_space<vmem>>, %arg5: memref<1x1024xf32, #tpu.memory_space<vmem>>, %arg6: memref<64x1024xbf16, #tpu.memory_space<vmem>>) attributes {dimension_semantics = [#tpu.dimension_semantics<parallel>], iteration_bounds = array<i64: 1>, scalar_prefetch = 0 : i64, scratch_operands = 0 : i64, tpu.core_type = #tpu.core_type<tc>, window_params = [{transform_indices = @transform_0, window_bounds = array<i64: 64, 128>}, {transform_indices = @transform_1, window_bounds = array<i64: 64, 128>}, {pipeline_mode = #tpu.pipeline_mode<synchronous>, transform_indices = @transform_2, window_bounds = array<i64: 128, 1024>}, {pipeline_mode = #tpu.pipeline_mode<synchronous>, transform_indices = @transform_3, window_bounds = array<i64: 128, 1024>}, {pipeline_mode = #tpu.pipeline_mode<synchronous>, transform_indices = @transform_4, window_bounds = array<i64: 1, 1024>}, {transform_indices = @transform_5, window_bounds = array<i64: 64, 1024>}]} {
    %c0 = arith.constant 0 : index
    %c0_0 = arith.constant 0 : index
    %0 = vector.load %arg1[%c0, %c0_0] : memref<64x128xbf16, #tpu.memory_space<vmem>>, vector<64x128xbf16>
    %c0_1 = arith.constant 0 : index
    %c0_2 = arith.constant 0 : index
    %1 = vector.load %arg3[%c0_1, %c0_2] : memref<128x1024xbf16, #tpu.memory_space<vmem>>, vector<128x1024xbf16>
    %cst = arith.constant dense<0.000000e+00> : vector<64x1024xf32>
    %2 = tpu.matmul %0, %1, %cst {dimension_numbers = #tpu.dot_dimension_numbers<[1], [0], [0], [1], [0, 0, 1, 1], [], []>} : vector<64x128xbf16>, vector<128x1024xbf16>, vector<64x1024xf32> -> vector<64x1024xf32>
    %c0_3 = arith.constant 0 : index
    %c0_4 = arith.constant 0 : index
    %3 = vector.load %arg2[%c0_3, %c0_4] : memref<64x128xbf16, #tpu.memory_space<vmem>>, vector<64x128xbf16>
    %c0_5 = arith.constant 0 : index
    %c0_6 = arith.constant 0 : index
    %4 = vector.load %arg4[%c0_5, %c0_6] : memref<128x1024xbf16, #tpu.memory_space<vmem>>, vector<128x1024xbf16>
    %cst_7 = arith.constant dense<0.000000e+00> : vector<64x1024xf32>
    %5 = tpu.matmul %3, %4, %cst_7 {dimension_numbers = #tpu.dot_dimension_numbers<[1], [0], [0], [1], [0, 0, 1, 1], [], []>} : vector<64x128xbf16>, vector<128x1024xbf16>, vector<64x1024xf32> -> vector<64x1024xf32>
    %6 = arith.addf %2, %5 : vector<64x1024xf32>
    %c0_8 = arith.constant 0 : index
    %c0_9 = arith.constant 0 : index
    %7 = vector.load %arg5[%c0_8, %c0_9] : memref<1x1024xf32, #tpu.memory_space<vmem>>, vector<1x1024xf32>
    %8 = vector.broadcast %7 : vector<1x1024xf32> to vector<64x1024xf32>
    %9 = arith.addf %6, %8 : vector<64x1024xf32>
    %10 = arith.truncf %9 : vector<64x1024xf32> to vector<64x1024xbf16>
    %c0_10 = arith.constant 0 : index
    %c0_11 = arith.constant 0 : index
    %11 = vector.load %arg6[%c0_10, %c0_11] : memref<64x1024xbf16, #tpu.memory_space<vmem>>, vector<64x1024xbf16>
    tpu.vector_store %arg6[%c0_10, %c0_11], %10 {strides = array<i32>} : memref<64x1024xbf16, #tpu.memory_space<vmem>>, vector<64x1024xbf16>,
    return
  }
  func.func @transform_0(%arg0: i32) -> (i32, i32) {
    %c0_i32 = arith.constant 0 : i32
    %c0_i32_0 = arith.constant 0 : i32
    return %arg0, %c0_i32 : i32, i32
  }
  func.func @transform_1(%arg0: i32) -> (i32, i32) {
    %c0_i32 = arith.constant 0 : i32
    %c0_i32_0 = arith.constant 0 : i32
    return %arg0, %c0_i32 : i32, i32
  }
  func.func @transform_2(%arg0: i32) -> (i32, i32) {
    %c0_i32 = arith.constant 0 : i32
    %c0_i32_0 = arith.constant 0 : i32
    %c0_i32_1 = arith.constant 0 : i32
    return %c0_i32, %c0_i32_0 : i32, i32
  }
  func.func @transform_3(%arg0: i32) -> (i32, i32) {
    %c0_i32 = arith.constant 0 : i32
    %c0_i32_0 = arith.constant 0 : i32
    %c0_i32_1 = arith.constant 0 : i32
    return %c0_i32, %c0_i32_0 : i32, i32
  }
  func.func @transform_4(%arg0: i32) -> (i32, i32) {
    %c0_i32 = arith.constant 0 : i32
    %c0_i32_0 = arith.constant 0 : i32
    %c0_i32_1 = arith.constant 0 : i32
    return %c0_i32, %c0_i32_0 : i32, i32
  }
  func.func @transform_5(%arg0: i32) -> (i32, i32) {
    %c0_i32 = arith.constant 0 : i32
    %c0_i32_0 = arith.constant 0 : i32
    return %arg0, %c0_i32 : i32, i32
  }
}

module attributes {stable_mosaic.version = 11 : i64} {
  func.func @_proj2_kernel(%arg0: i32, %arg1: memref<8x128xbf16, #tpu.memory_space<vmem>>, %arg2: memref<8x128xbf16, #tpu.memory_space<vmem>>, %arg3: memref<128x4xbf16, #tpu.memory_space<vmem>>, %arg4: memref<128x4xbf16, #tpu.memory_space<vmem>>, %arg5: memref<1x4xf32, #tpu.memory_space<vmem>>, %arg6: memref<8x4xf32, #tpu.memory_space<vmem>>) attributes {dimension_semantics = [#tpu.dimension_semantics<parallel>], iteration_bounds = array<i64: 1>, scalar_prefetch = 0 : i64, scratch_operands = 0 : i64, tpu.core_type = #tpu.core_type<tc>, window_params = [{transform_indices = @transform_0, window_bounds = array<i64: 8, 128>}, {transform_indices = @transform_1, window_bounds = array<i64: 8, 128>}, {pipeline_mode = #tpu.pipeline_mode<synchronous>, transform_indices = @transform_2, window_bounds = array<i64: 128, 4>}, {pipeline_mode = #tpu.pipeline_mode<synchronous>, transform_indices = @transform_3, window_bounds = array<i64: 128, 4>}, {pipeline_mode = #tpu.pipeline_mode<synchronous>, transform_indices = @transform_4, window_bounds = array<i64: 1, 4>}, {transform_indices = @transform_5, window_bounds = array<i64: 8, 4>}]} {
    %c0 = arith.constant 0 : index
    %c0_0 = arith.constant 0 : index
    %0 = vector.load %arg1[%c0, %c0_0] : memref<8x128xbf16, #tpu.memory_space<vmem>>, vector<8x128xbf16>
    %c0_1 = arith.constant 0 : index
    %c0_2 = arith.constant 0 : index
    %1 = vector.load %arg3[%c0_1, %c0_2] : memref<128x4xbf16, #tpu.memory_space<vmem>>, vector<128x4xbf16>
    %cst = arith.constant dense<0.000000e+00> : vector<8x4xf32>
    %2 = tpu.matmul %0, %1, %cst {dimension_numbers = #tpu.dot_dimension_numbers<[1], [0], [0], [1], [0, 0, 1, 1], [], []>} : vector<8x128xbf16>, vector<128x4xbf16>, vector<8x4xf32> -> vector<8x4xf32>
    %c0_3 = arith.constant 0 : index
    %c0_4 = arith.constant 0 : index
    %3 = vector.load %arg2[%c0_3, %c0_4] : memref<8x128xbf16, #tpu.memory_space<vmem>>, vector<8x128xbf16>
    %c0_5 = arith.constant 0 : index
    %c0_6 = arith.constant 0 : index
    %4 = vector.load %arg4[%c0_5, %c0_6] : memref<128x4xbf16, #tpu.memory_space<vmem>>, vector<128x4xbf16>
    %cst_7 = arith.constant dense<0.000000e+00> : vector<8x4xf32>
    %5 = tpu.matmul %3, %4, %cst_7 {dimension_numbers = #tpu.dot_dimension_numbers<[1], [0], [0], [1], [0, 0, 1, 1], [], []>} : vector<8x128xbf16>, vector<128x4xbf16>, vector<8x4xf32> -> vector<8x4xf32>
    %6 = arith.addf %2, %5 : vector<8x4xf32>
    %c0_8 = arith.constant 0 : index
    %c0_9 = arith.constant 0 : index
    %7 = vector.load %arg5[%c0_8, %c0_9] : memref<1x4xf32, #tpu.memory_space<vmem>>, vector<1x4xf32>
    %8 = vector.broadcast %7 : vector<1x4xf32> to vector<8x4xf32>
    %9 = arith.addf %6, %8 : vector<8x4xf32>
    %c0_10 = arith.constant 0 : index
    %c0_11 = arith.constant 0 : index
    %10 = vector.load %arg6[%c0_10, %c0_11] : memref<8x4xf32, #tpu.memory_space<vmem>>, vector<8x4xf32>
    tpu.vector_store %arg6[%c0_10, %c0_11], %9 {strides = array<i32>} : memref<8x4xf32, #tpu.memory_space<vmem>>, vector<8x4xf32>,
    return
  }
  func.func @transform_0(%arg0: i32) -> (i32, i32) {
    %c0_i32 = arith.constant 0 : i32
    %c0_i32_0 = arith.constant 0 : i32
    return %arg0, %c0_i32 : i32, i32
  }
  func.func @transform_1(%arg0: i32) -> (i32, i32) {
    %c0_i32 = arith.constant 0 : i32
    %c0_i32_0 = arith.constant 0 : i32
    return %arg0, %c0_i32 : i32, i32
  }
  func.func @transform_2(%arg0: i32) -> (i32, i32) {
    %c0_i32 = arith.constant 0 : i32
    %c0_i32_0 = arith.constant 0 : i32
    %c0_i32_1 = arith.constant 0 : i32
    return %c0_i32, %c0_i32_0 : i32, i32
  }
  func.func @transform_3(%arg0: i32) -> (i32, i32) {
    %c0_i32 = arith.constant 0 : i32
    %c0_i32_0 = arith.constant 0 : i32
    %c0_i32_1 = arith.constant 0 : i32
    return %c0_i32, %c0_i32_0 : i32, i32
  }
  func.func @transform_4(%arg0: i32) -> (i32, i32) {
    %c0_i32 = arith.constant 0 : i32
    %c0_i32_0 = arith.constant 0 : i32
    %c0_i32_1 = arith.constant 0 : i32
    return %c0_i32, %c0_i32_0 : i32, i32
  }
  func.func @transform_5(%arg0: i32) -> (i32, i32) {
    %c0_i32 = arith.constant 0 : i32
    %c0_i32_0 = arith.constant 0 : i32
    return %arg0, %c0_i32 : i32, i32
  }
}

</mosaic_0001>

<llo_original>
// kernel: bilstm_forward.5
$region0: #{bilstm_forward.5}
  #allocation0 [shape = 'u32[]', space=smem, size = 0x4, offset = 0x4, fixed_abs, tag = 'smem constant byte address 0x4 - core index']
  #allocation1 [shape = 'u32[144,128]{1,0:T(1,128)}', space=vmem, size = 0x12000, scoped, tag = 'internal scratch']
  %s0 = inlined_call_operand.vmem [shape: f32[64,16], index: 0, kind: input, shape index: {}]
  %s1 = inlined_call_operand.vmem [shape: bf16[16,1024], index: 1, kind: input, shape index: {}]
  %s2 = inlined_call_operand.vmem [shape: f32[1,1024], index: 2, kind: input, shape index: {}]
  %s3 = inlined_call_operand.vmem [shape: bf16[64,1024], index: 3, kind: output, shape index: {}]
  %s4 = sld [smem:[#allocation0]]
  $region22: #{bilstm_forward.5} parent=0
    _
  %s6 = ssub.s32 1, %s4
  %s7 = scalar_select 0, %s6, %s4
  // Predicated region
  $region2: #{bilstm_forward.5} parent=0 // pred_check
    _
  $region3: #{bilstm_forward.5} parent=0 // pred_check_branch
    %9 = sbr.rel (0) target = $region5
  $region4: #{bilstm_forward.5} parent=0 // pred_region
    _
  $region5: #{bilstm_forward.5} parent=0 // pred_fallthru
    _
  // Predicated region
  $region6: #{bilstm_forward.5} parent=0 // pred_check
    _
  $region7: #{bilstm_forward.5} parent=0 // pred_check_branch
    %11 = sbr.rel (0) target = $region9
  $region8: #{bilstm_forward.5} parent=0 // pred_region
    _
  $region9: #{bilstm_forward.5} parent=0 // pred_fallthru
    _
  // Predicated region
  $region10: #{bilstm_forward.5} parent=0 // pred_check
    _
  $region11: #{bilstm_forward.5} parent=0 // pred_check_branch
    %13 = sbr.rel (0) target = $region13
  $region12: #{bilstm_forward.5} parent=0 // pred_region
    _
  $region13: #{bilstm_forward.5} parent=0 // pred_fallthru
    _
  %v15 = vld [vmem:[%s0] sm:$0xff]
  %v16 = vld [vmem:[%s0 + $0x8] sm:$0xff]
  %v17 = vld [vmem:[%s0 + $0x10] sm:$0xff]
  %v18 = vld [vmem:[%s0 + $0x18] sm:$0xff]
  %v19 = vld [vmem:[%s0 + $0x20] sm:$0xff]
  %v20 = vld [vmem:[%s0 + $0x28] sm:$0xff]
  %v21 = vld [vmem:[%s0 + $0x30] sm:$0xff]
  %v22 = vld [vmem:[%s0 + $0x38] sm:$0xff]
  %v23 = vpack.c.bf16 %v16, %v15
  %v24 = vpack.c.bf16 %v18, %v17
  %v25 = vpack.c.bf16 %v20, %v19
  %v26 = vpack.c.bf16 %v22, %v21
  %v27 = vld [vmem:[%s1] sm:$0xff]
  %v28 = vld [vmem:[%s1 + $0x8] sm:$0xff]
  %v29 = vld [vmem:[%s1 + $0x10] sm:$0xff]
  %v30 = vld [vmem:[%s1 + $0x18] sm:$0xff]
  %v31 = vld [vmem:[%s1 + $0x20] sm:$0xff]
  %v32 = vld [vmem:[%s1 + $0x28] sm:$0xff]
  %v33 = vld [vmem:[%s1 + $0x30] sm:$0xff]
  %v34 = vld [vmem:[%s1 + $0x38] sm:$0xff]
  %v35 = vld [vmem:[%s2] sm:$0xff]
  %v37 = vlaneseq
  %v38 = vshrl.u32 %v37, 7
  %v39 = vsub.s32 0, %v38
  %v40 = vrot.slane %v35, %v39
  %v41 = vlaneseq
  %v42 = vshrl.u32 %v41, 7
  %v43 = vsub.s32 1, %v42
  %v44 = vrot.slane %v35, %v43
  %v45 = vlaneseq
  %v46 = vshrl.u32 %v45, 7
  %v47 = vsub.s32 2, %v46
  %v48 = vrot.slane %v35, %v47
  %v49 = vlaneseq
  %v50 = vshrl.u32 %v49, 7
  %v51 = vsub.s32 3, %v50
  %v52 = vrot.slane %v35, %v51
  %v53 = vlaneseq
  %v54 = vshrl.u32 %v53, 7
  %v55 = vsub.s32 4, %v54
  %v56 = vrot.slane %v35, %v55
  %v57 = vlaneseq
  %v58 = vshrl.u32 %v57, 7
  %v59 = vsub.s32 5, %v58
  %v60 = vrot.slane %v35, %v59
  %v61 = vlaneseq
  %v62 = vshrl.u32 %v61, 7
  %v63 = vsub.s32 6, %v62
  %v64 = vrot.slane %v35, %v63
  %v65 = vlaneseq
  %v66 = vshrl.u32 %v65, 7
  %v67 = vsub.s32 7, %v66
  %v68 = vrot.slane %v35, %v67
  %v85 = vunpack.c.l.b16 %v27
  %v86 = vunpack.c.h.b16 %v27
  %v87 = vunpack.c.l.b16 %v28
  %v88 = vunpack.c.h.b16 %v28
  %v89 = vunpack.c.l.b16 %v29
  %v90 = vunpack.c.h.b16 %v29
  %v91 = vunpack.c.l.b16 %v30
  %v92 = vunpack.c.h.b16 %v30
  %v93 = vunpack.c.l.b16 %v31
  %v94 = vunpack.c.h.b16 %v31
  %v95 = vunpack.c.l.b16 %v32
  %v96 = vunpack.c.h.b16 %v32
  %v97 = vunpack.c.l.b16 %v33
  %v98 = vunpack.c.h.b16 %v33
  %v99 = vunpack.c.l.b16 %v34
  %v100 = vunpack.c.h.b16 %v34
  %v101 = vpack.c.b16 %v93, %v85
  %v102 = vpack.c.b16 %v94, %v86
  %v103 = vpack.c.b16 %v95, %v87
  %v104 = vpack.c.b16 %v96, %v88
  %v105 = vpack.c.b16 %v97, %v89
  %v106 = vpack.c.b16 %v98, %v90
  %v107 = vpack.c.b16 %v99, %v91
  %v108 = vpack.c.b16 %v100, %v92
  %vm117 = vcmask 130048
  %v119 = vsel %vm117, %v23, 0
  %v122 = vsel %vm117, %v24, 0
  %v125 = vsel %vm117, %v25, 0
  %v128 = vsel %vm117, %v26, 0
  %130 = vmatprep.subr.bf16.mxu0 0
  %131 = vmatpush1.bf16.msra.mxu0 0
  %132 = vmatprep.subr.bf16.mxu0 0
  %133 = vmatpush1.bf16.msra.mxu0 0
  %134 = vmatprep.subr.bf16.mxu0 0
  %135 = vmatpush1.bf16.msra.mxu0 0
  %136 = vmatprep.subr.bf16.mxu0 0
  %137 = vmatpush1.bf16.msra.mxu0 0
  %138 = vmatprep.subr.bf16.mxu0 0
  %139 = vmatpush1.bf16.msra.mxu0 0
  %140 = vmatprep.subr.bf16.mxu0 0
  %141 = vmatpush1.bf16.msra.mxu0 0
  %142 = vmatprep.subr.bf16.mxu0 0
  %143 = vmatpush1.bf16.msra.mxu0 0
  %144 = vmatprep.subr.bf16.mxu0 %v102
  %145 = vmatpush1.bf16.msra.mxu0 %v101
  %146 = vmatprep.subr.bf16.mxu0 0
  %147 = vmatpush2.bf16.msra.mxu0 0
  %148 = vmatprep.subr.bf16.mxu0 0
  %149 = vmatpush2.bf16.msra.mxu0 0
  %150 = vmatprep.subr.bf16.mxu0 0
  %151 = vmatpush2.bf16.msra.mxu0 0
  %152 = vmatprep.subr.bf16.mxu0 0
  %153 = vmatpush2.bf16.msra.mxu0 0
  %154 = vmatprep.subr.bf16.mxu0 0
  %155 = vmatpush2.bf16.msra.mxu0 0
  %156 = vmatprep.subr.bf16.mxu0 0
  %157 = vmatpush2.bf16.msra.mxu0 0
  %158 = vmatprep.subr.bf16.mxu0 0
  %159 = vmatpush2.bf16.msra.mxu0 0
  %160 = vmatprep.subr.bf16.mxu0 0
  %161 = vmatpush2.bf16.msra.mxu0 0
  %162 = vmatprep.mubr.bf16.mxu0 0
  %163 = vmatmul.mubr.bf16.gmra.mxu0 %v119
  %v164 = vpop.f32.mrf.mxu0
  %v165 = vadd.f32 %v40, %v164
  %v166 = vpop.f32.mrf.mxu0
  %v167 = vadd.f32 %v44, %v166
  %v168 = vpop.f32.mrf.mxu0
  %v169 = vadd.f32 %v40, %v168
  %v170 = vpop.f32.mrf.mxu0
  %v171 = vadd.f32 %v44, %v170
  %172 = vmatprep.mubr.bf16.mxu0 0
  %173 = vmatmul.mubr.bf16.gmra.mxu0 %v122
  %v174 = vpop.f32.mrf.mxu0
  %v175 = vadd.f32 %v40, %v174
  %v176 = vpop.f32.mrf.mxu0
  %v177 = vadd.f32 %v44, %v176
  %v178 = vpop.f32.mrf.mxu0
  %v179 = vadd.f32 %v40, %v178
  %v180 = vpop.f32.mrf.mxu0
  %v181 = vadd.f32 %v44, %v180
  %182 = vmatprep.mubr.bf16.mxu0 0
  %183 = vmatmul.mubr.bf16.gmra.mxu0 %v125
  %v184 = vpop.f32.mrf.mxu0
  %v185 = vadd.f32 %v40, %v184
  %v186 = vpop.f32.mrf.mxu0
  %v187 = vadd.f32 %v44, %v186
  %v188 = vpop.f32.mrf.mxu0
  %v189 = vadd.f32 %v40, %v188
  %v190 = vpop.f32.mrf.mxu0
  %v191 = vadd.f32 %v44, %v190
  %192 = vmatprep.mubr.bf16.mxu0 0
  %193 = vmatmul.mubr.bf16.gmra.mxu0 %v128
  %v194 = vpop.f32.mrf.mxu0
  %v195 = vadd.f32 %v40, %v194
  %v196 = vpop.f32.mrf.mxu0
  %v197 = vadd.f32 %v44, %v196
  %v198 = vpop.f32.mrf.mxu0
  %v199 = vadd.f32 %v40, %v198
  %v200 = vpop.f32.mrf.mxu0
  %v201 = vadd.f32 %v44, %v200
  %202 = vdwg.mxu0
  %203 = vmatprep.subr.bf16.mxu0 0
  %204 = vmatpush1.bf16.msra.mxu0 0
  %205 = vmatprep.subr.bf16.mxu0 0
  %206 = vmatpush1.bf16.msra.mxu0 0
  %207 = vmatprep.subr.bf16.mxu0 0
  %208 = vmatpush1.bf16.msra.mxu0 0
  %209 = vmatprep.subr.bf16.mxu0 0
  %210 = vmatpush1.bf16.msra.mxu0 0
  %211 = vmatprep.subr.bf16.mxu0 0
  %212 = vmatpush1.bf16.msra.mxu0 0
  %213 = vmatprep.subr.bf16.mxu0 0
  %214 = vmatpush1.bf16.msra.mxu0 0
  %215 = vmatprep.subr.bf16.mxu0 0
  %216 = vmatpush1.bf16.msra.mxu0 0
  %217 = vmatprep.subr.bf16.mxu0 %v104
  %218 = vmatpush1.bf16.msra.mxu0 %v103
  %219 = vmatprep.subr.bf16.mxu0 0
  %220 = vmatpush2.bf16.msra.mxu0 0
  %221 = vmatprep.subr.bf16.mxu0 0
  %222 = vmatpush2.bf16.msra.mxu0 0
  %223 = vmatprep.subr.bf16.mxu0 0
  %224 = vmatpush2.bf16.msra.mxu0 0
  %225 = vmatprep.subr.bf16.mxu0 0
  %226 = vmatpush2.bf16.msra.mxu0 0
  %227 = vmatprep.subr.bf16.mxu0 0
  %228 = vmatpush2.bf16.msra.mxu0 0
  %229 = vmatprep.subr.bf16.mxu0 0
  %230 = vmatpush2.bf16.msra.mxu0 0
  %231 = vmatprep.subr.bf16.mxu0 0
  %232 = vmatpush2.bf16.msra.mxu0 0
  %233 = vmatprep.subr.bf16.mxu0 0
  %234 = vmatpush2.bf16.msra.mxu0 0
  %235 = vmatprep.mubr.bf16.mxu0 0
  %236 = vmatmul.mubr.bf16.gmra.mxu0 %v119
  %v237 = vpop.f32.mrf.mxu0
  %v238 = vadd.f32 %v48, %v237
  %v239 = vpop.f32.mrf.mxu0
  %v240 = vadd.f32 %v52, %v239
  %v241 = vpop.f32.mrf.mxu0
  %v242 = vadd.f32 %v48, %v241
  %v243 = vpop.f32.mrf.mxu0
  %v244 = vadd.f32 %v52, %v243
  %245 = vmatprep.mubr.bf16.mxu0 0
  %246 = vmatmul.mubr.bf16.gmra.mxu0 %v122
  %v247 = vpop.f32.mrf.mxu0
  %v248 = vadd.f32 %v48, %v247
  %v249 = vpop.f32.mrf.mxu0
  %v250 = vadd.f32 %v52, %v249
  %v251 = vpop.f32.mrf.mxu0
  %v252 = vadd.f32 %v48, %v251
  %v253 = vpop.f32.mrf.mxu0
  %v254 = vadd.f32 %v52, %v253
  %255 = vmatprep.mubr.bf16.mxu0 0
  %256 = vmatmul.mubr.bf16.gmra.mxu0 %v125
  %v257 = vpop.f32.mrf.mxu0
  %v258 = vadd.f32 %v48, %v257
  %v259 = vpop.f32.mrf.mxu0
  %v260 = vadd.f32 %v52, %v259
  %v261 = vpop.f32.mrf.mxu0
  %v262 = vadd.f32 %v48, %v261
  %v263 = vpop.f32.mrf.mxu0
  %v264 = vadd.f32 %v52, %v263
  %265 = vmatprep.mubr.bf16.mxu0 0
  %266 = vmatmul.mubr.bf16.gmra.mxu0 %v128
  %v267 = vpop.f32.mrf.mxu0
  %v268 = vadd.f32 %v48, %v267
  %v269 = vpop.f32.mrf.mxu0
  %v270 = vadd.f32 %v52, %v269
  %v271 = vpop.f32.mrf.mxu0
  %v272 = vadd.f32 %v48, %v271
  %v273 = vpop.f32.mrf.mxu0
  %v274 = vadd.f32 %v52, %v273
  %275 = vdwg.mxu0
  %276 = vmatprep.subr.bf16.mxu0 0
  %277 = vmatpush1.bf16.msra.mxu0 0
  %278 = vmatprep.subr.bf16.mxu0 0
  %279 = vmatpush1.bf16.msra.mxu0 0
  %280 = vmatprep.subr.bf16.mxu0 0
  %281 = vmatpush1.bf16.msra.mxu0 0
  %282 = vmatprep.subr.bf16.mxu0 0
  %283 = vmatpush1.bf16.msra.mxu0 0
  %284 = vmatprep.subr.bf16.mxu0 0
  %285 = vmatpush1.bf16.msra.mxu0 0
  %286 = vmatprep.subr.bf16.mxu0 0
  %287 = vmatpush1.bf16.msra.mxu0 0
  %288 = vmatprep.subr.bf16.mxu0 0
  %289 = vmatpush1.bf16.msra.mxu0 0
  %290 = vmatprep.subr.bf16.mxu0 %v106
  %291 = vmatpush1.bf16.msra.mxu0 %v105
  %292 = vmatprep.subr.bf16.mxu0 0
  %293 = vmatpush2.bf16.msra.mxu0 0
  %294 = vmatprep.subr.bf16.mxu0 0
  %295 = vmatpush2.bf16.msra.mxu0 0
  %296 = vmatprep.subr.bf16.mxu0 0
  %297 = vmatpush2.bf16.msra.mxu0 0
  %298 = vmatprep.subr.bf16.mxu0 0
  %299 = vmatpush2.bf16.msra.mxu0 0
  %300 = vmatprep.subr.bf16.mxu0 0
  %301 = vmatpush2.bf16.msra.mxu0 0
  %302 = vmatprep.subr.bf16.mxu0 0
  %303 = vmatpush2.bf16.msra.mxu0 0
  %304 = vmatprep.subr.bf16.mxu0 0
  %305 = vmatpush2.bf16.msra.mxu0 0
  %306 = vmatprep.subr.bf16.mxu0 0
  %307 = vmatpush2.bf16.msra.mxu0 0
  %308 = vmatprep.mubr.bf16.mxu0 0
  %309 = vmatmul.mubr.bf16.gmra.mxu0 %v119
  %v310 = vpop.f32.mrf.mxu0
  %v311 = vadd.f32 %v56, %v310
  %v312 = vpop.f32.mrf.mxu0
  %v313 = vadd.f32 %v60, %v312
  %v314 = vpop.f32.mrf.mxu0
  %v315 = vadd.f32 %v56, %v314
  %v316 = vpop.f32.mrf.mxu0
  %v317 = vadd.f32 %v60, %v316
  %318 = vmatprep.mubr.bf16.mxu0 0
  %319 = vmatmul.mubr.bf16.gmra.mxu0 %v122
  %v320 = vpop.f32.mrf.mxu0
  %v321 = vadd.f32 %v56, %v320
  %v322 = vpop.f32.mrf.mxu0
  %v323 = vadd.f32 %v60, %v322
  %v324 = vpop.f32.mrf.mxu0
  %v325 = vadd.f32 %v56, %v324
  %v326 = vpop.f32.mrf.mxu0
  %v327 = vadd.f32 %v60, %v326
  %328 = vmatprep.mubr.bf16.mxu0 0
  %329 = vmatmul.mubr.bf16.gmra.mxu0 %v125
  %v330 = vpop.f32.mrf.mxu0
  %v331 = vadd.f32 %v56, %v330
  %v332 = vpop.f32.mrf.mxu0
  %v333 = vadd.f32 %v60, %v332
  %v334 = vpop.f32.mrf.mxu0
  %v335 = vadd.f32 %v56, %v334
  %v336 = vpop.f32.mrf.mxu0
  %v337 = vadd.f32 %v60, %v336
  %338 = vmatprep.mubr.bf16.mxu0 0
  %339 = vmatmul.mubr.bf16.gmra.mxu0 %v128
  %v340 = vpop.f32.mrf.mxu0
  %v341 = vadd.f32 %v56, %v340
  %v342 = vpop.f32.mrf.mxu0
  %v343 = vadd.f32 %v60, %v342
  %v344 = vpop.f32.mrf.mxu0
  %v345 = vadd.f32 %v56, %v344
  %v346 = vpop.f32.mrf.mxu0
  %v347 = vadd.f32 %v60, %v346
  %348 = vdwg.mxu0
  %349 = vmatprep.subr.bf16.mxu0 0
  %350 = vmatpush1.bf16.msra.mxu0 0
  %351 = vmatprep.subr.bf16.mxu0 0
  %352 = vmatpush1.bf16.msra.mxu0 0
  %353 = vmatprep.subr.bf16.mxu0 0
  %354 = vmatpush1.bf16.msra.mxu0 0
  %355 = vmatprep.subr.bf16.mxu0 0
  %356 = vmatpush1.bf16.msra.mxu0 0
  %357 = vmatprep.subr.bf16.mxu0 0
  %358 = vmatpush1.bf16.msra.mxu0 0
  %359 = vmatprep.subr.bf16.mxu0 0
  %360 = vmatpush1.bf16.msra.mxu0 0
  %361 = vmatprep.subr.bf16.mxu0 0
  %362 = vmatpush1.bf16.msra.mxu0 0
  %363 = vmatprep.subr.bf16.mxu0 %v108
  %364 = vmatpush1.bf16.msra.mxu0 %v107
  %365 = vmatprep.subr.bf16.mxu0 0
  %366 = vmatpush2.bf16.msra.mxu0 0
  %367 = vmatprep.subr.bf16.mxu0 0
  %368 = vmatpush2.bf16.msra.mxu0 0
  %369 = vmatprep.subr.bf16.mxu0 0
  %370 = vmatpush2.bf16.msra.mxu0 0
  %371 = vmatprep.subr.bf16.mxu0 0
  %372 = vmatpush2.bf16.msra.mxu0 0
  %373 = vmatprep.subr.bf16.mxu0 0
  %374 = vmatpush2.bf16.msra.mxu0 0
  %375 = vmatprep.subr.bf16.mxu0 0
  %376 = vmatpush2.bf16.msra.mxu0 0
  %377 = vmatprep.subr.bf16.mxu0 0
  %378 = vmatpush2.bf16.msra.mxu0 0
  %379 = vmatprep.subr.bf16.mxu0 0
  %380 = vmatpush2.bf16.msra.mxu0 0
  %381 = vmatprep.mubr.bf16.mxu0 0
  %382 = vmatmul.mubr.bf16.gmra.mxu0 %v119
  %v383 = vpop.f32.mrf.mxu0
  %v384 = vadd.f32 %v64, %v383
  %v385 = vpop.f32.mrf.mxu0
  %v386 = vadd.f32 %v68, %v385
  %v387 = vpop.f32.mrf.mxu0
  %v388 = vadd.f32 %v64, %v387
  %v389 = vpop.f32.mrf.mxu0
  %v390 = vadd.f32 %v68, %v389
  %391 = vmatprep.mubr.bf16.mxu0 0
  %392 = vmatmul.mubr.bf16.gmra.mxu0 %v122
  %v393 = vpop.f32.mrf.mxu0
  %v394 = vadd.f32 %v64, %v393
  %v395 = vpop.f32.mrf.mxu0
  %v396 = vadd.f32 %v68, %v395
  %v397 = vpop.f32.mrf.mxu0
  %v398 = vadd.f32 %v64, %v397
  %v399 = vpop.f32.mrf.mxu0
  %v400 = vadd.f32 %v68, %v399
  %401 = vmatprep.mubr.bf16.mxu0 0
  %402 = vmatmul.mubr.bf16.gmra.mxu0 %v125
  %v403 = vpop.f32.mrf.mxu0
  %v404 = vadd.f32 %v64, %v403
  %v405 = vpop.f32.mrf.mxu0
  %v406 = vadd.f32 %v68, %v405
  %v407 = vpop.f32.mrf.mxu0
  %v408 = vadd.f32 %v64, %v407
  %v409 = vpop.f32.mrf.mxu0
  %v410 = vadd.f32 %v68, %v409
  %411 = vmatprep.mubr.bf16.mxu0 0
  %412 = vmatmul.mubr.bf16.gmra.mxu0 %v128
  %v413 = vpop.f32.mrf.mxu0
  %v414 = vadd.f32 %v64, %v413
  %v415 = vpop.f32.mrf.mxu0
  %v416 = vadd.f32 %v68, %v415
  %v417 = vpop.f32.mrf.mxu0
  %v418 = vadd.f32 %v64, %v417
  %v419 = vpop.f32.mrf.mxu0
  %v420 = vadd.f32 %v68, %v419
  %421 = vdwg.mxu0
  %v422 = vpack.c.bf16 %v169, %v165
  %v423 = vpack.c.bf16 %v171, %v167
  %v424 = vpack.c.bf16 %v242, %v238
  %v425 = vpack.c.bf16 %v244, %v240
  %v426 = vpack.c.bf16 %v315, %v311
  %v427 = vpack.c.bf16 %v317, %v313
  %v428 = vpack.c.bf16 %v388, %v384
  %v429 = vpack.c.bf16 %v390, %v386
  %v430 = vpack.c.bf16 %v179, %v175
  %v431 = vpack.c.bf16 %v181, %v177
  %v432 = vpack.c.bf16 %v252, %v248
  %v433 = vpack.c.bf16 %v254, %v250
  %v434 = vpack.c.bf16 %v325, %v321
  %v435 = vpack.c.bf16 %v327, %v323
  %v436 = vpack.c.bf16 %v398, %v394
  %v437 = vpack.c.bf16 %v400, %v396
  %v438 = vpack.c.bf16 %v189, %v185
  %v439 = vpack.c.bf16 %v191, %v187
  %v440 = vpack.c.bf16 %v262, %v258
  %v441 = vpack.c.bf16 %v264, %v260
  %v442 = vpack.c.bf16 %v335, %v331
  %v443 = vpack.c.bf16 %v337, %v333
  %v444 = vpack.c.bf16 %v408, %v404
  %v445 = vpack.c.bf16 %v410, %v406
  %v446 = vpack.c.bf16 %v199, %v195
  %v447 = vpack.c.bf16 %v201, %v197
  %v448 = vpack.c.bf16 %v272, %v268
  %v449 = vpack.c.bf16 %v274, %v270
  %v450 = vpack.c.bf16 %v345, %v341
  %v451 = vpack.c.bf16 %v347, %v343
  %v452 = vpack.c.bf16 %v418, %v414
  %v453 = vpack.c.bf16 %v420, %v416
  %v486 = vunpack.c.l.b16 %v422
  %v487 = vunpack.c.l.b16 %v423
  %v488 = vunpack.c.l.b16 %v424
  %v489 = vunpack.c.l.b16 %v425
  %v490 = vunpack.c.l.b16 %v426
  %v491 = vunpack.c.l.b16 %v427
  %v492 = vunpack.c.l.b16 %v428
  %v493 = vunpack.c.l.b16 %v429
  %v494 = vunpack.c.h.b16 %v422
  %v495 = vunpack.c.h.b16 %v423
  %v496 = vunpack.c.h.b16 %v424
  %v497 = vunpack.c.h.b16 %v425
  %v498 = vunpack.c.h.b16 %v426
  %v499 = vunpack.c.h.b16 %v427
  %v500 = vunpack.c.h.b16 %v428
  %v501 = vunpack.c.h.b16 %v429
  %v502 = vunpack.c.l.b16 %v430
  %v503 = vunpack.c.l.b16 %v431
  %v504 = vunpack.c.l.b16 %v432
  %v505 = vunpack.c.l.b16 %v433
  %v506 = vunpack.c.l.b16 %v434
  %v507 = vunpack.c.l.b16 %v435
  %v508 = vunpack.c.l.b16 %v436
  %v509 = vunpack.c.l.b16 %v437
  %v510 = vunpack.c.h.b16 %v430
  %v511 = vunpack.c.h.b16 %v431
  %v512 = vunpack.c.h.b16 %v432
  %v513 = vunpack.c.h.b16 %v433
  %v514 = vunpack.c.h.b16 %v434
  %v515 = vunpack.c.h.b16 %v435
  %v516 = vunpack.c.h.b16 %v436
  %v517 = vunpack.c.h.b16 %v437
  %v518 = vunpack.c.l.b16 %v438
  %v519 = vunpack.c.l.b16 %v439
  %v520 = vunpack.c.l.b16 %v440
  %v521 = vunpack.c.l.b16 %v441
  %v522 = vunpack.c.l.b16 %v442
  %v523 = vunpack.c.l.b16 %v443
  %v524 = vunpack.c.l.b16 %v444
  %v525 = vunpack.c.l.b16 %v445
  %v526 = vunpack.c.h.b16 %v438
  %v527 = vunpack.c.h.b16 %v439
  %v528 = vunpack.c.h.b16 %v440
  %v529 = vunpack.c.h.b16 %v441
  %v530 = vunpack.c.h.b16 %v442
  %v531 = vunpack.c.h.b16 %v443
  %v532 = vunpack.c.h.b16 %v444
  %v533 = vunpack.c.h.b16 %v445
  %v534 = vunpack.c.l.b16 %v446
  %v535 = vunpack.c.l.b16 %v447
  %v536 = vunpack.c.l.b16 %v448
  %v537 = vunpack.c.l.b16 %v449
  %v538 = vunpack.c.l.b16 %v450
  %v539 = vunpack.c.l.b16 %v451
  %v540 = vunpack.c.l.b16 %v452
  %v541 = vunpack.c.l.b16 %v453
  %v542 = vunpack.c.h.b16 %v446
  %v543 = vunpack.c.h.b16 %v447
  %v544 = vunpack.c.h.b16 %v448
  %v545 = vunpack.c.h.b16 %v449
  %v546 = vunpack.c.h.b16 %v450
  %v547 = vunpack.c.h.b16 %v451
  %v548 = vunpack.c.h.b16 %v452
  %v549 = vunpack.c.h.b16 %v453
  %v550 = vpack.c.b16 %v487, %v486
  %v551 = vpack.c.b16 %v489, %v488
  %v552 = vpack.c.b16 %v491, %v490
  %v553 = vpack.c.b16 %v493, %v492
  %v554 = vpack.c.b16 %v495, %v494
  %v555 = vpack.c.b16 %v497, %v496
  %v556 = vpack.c.b16 %v499, %v498
  %v557 = vpack.c.b16 %v501, %v500
  %v558 = vpack.c.b16 %v503, %v502
  %v559 = vpack.c.b16 %v505, %v504
  %v560 = vpack.c.b16 %v507, %v506
  %v561 = vpack.c.b16 %v509, %v508
  %v562 = vpack.c.b16 %v511, %v510
  %v563 = vpack.c.b16 %v513, %v512
  %v564 = vpack.c.b16 %v515, %v514
  %v565 = vpack.c.b16 %v517, %v516
  %v566 = vpack.c.b16 %v519, %v518
  %v567 = vpack.c.b16 %v521, %v520
  %v568 = vpack.c.b16 %v523, %v522
  %v569 = vpack.c.b16 %v525, %v524
  %v570 = vpack.c.b16 %v527, %v526
  %v571 = vpack.c.b16 %v529, %v528
  %v572 = vpack.c.b16 %v531, %v530
  %v573 = vpack.c.b16 %v533, %v532
  %v574 = vpack.c.b16 %v535, %v534
  %v575 = vpack.c.b16 %v537, %v536
  %v576 = vpack.c.b16 %v539, %v538
  %v577 = vpack.c.b16 %v541, %v540
  %v578 = vpack.c.b16 %v543, %v542
  %v579 = vpack.c.b16 %v545, %v544
  %v580 = vpack.c.b16 %v547, %v546
  %v581 = vpack.c.b16 %v549, %v548
  %614 = vst [vmem:[%s3] sm:$0xff] %v550
  %615 = vst [vmem:[%s3 + $0x8] sm:$0xff] %v551
  %616 = vst [vmem:[%s3 + $0x10] sm:$0xff] %v552
  %617 = vst [vmem:[%s3 + $0x18] sm:$0xff] %v553
  %618 = vst [vmem:[%s3 + $0x20] sm:$0xff] %v554
  %619 = vst [vmem:[%s3 + $0x28] sm:$0xff] %v555
  %620 = vst [vmem:[%s3 + $0x30] sm:$0xff] %v556
  %621 = vst [vmem:[%s3 + $0x38] sm:$0xff] %v557
  %622 = vst [vmem:[%s3 + $0x40] sm:$0xff] %v558
  %623 = vst [vmem:[%s3 + $0x48] sm:$0xff] %v559
  %624 = vst [vmem:[%s3 + $0x50] sm:$0xff] %v560
  %625 = vst [vmem:[%s3 + $0x58] sm:$0xff] %v561
  %626 = vst [vmem:[%s3 + $0x60] sm:$0xff] %v562
  %627 = vst [vmem:[%s3 + $0x68] sm:$0xff] %v563
  %628 = vst [vmem:[%s3 + $0x70] sm:$0xff] %v564
  %629 = vst [vmem:[%s3 + $0x78] sm:$0xff] %v565
  %630 = vst [vmem:[%s3 + $0x80] sm:$0xff] %v566
  %631 = vst [vmem:[%s3 + $0x88] sm:$0xff] %v567
  %632 = vst [vmem:[%s3 + $0x90] sm:$0xff] %v568
  %633 = vst [vmem:[%s3 + $0x98] sm:$0xff] %v569
  %634 = vst [vmem:[%s3 + $0xa0] sm:$0xff] %v570
  %635 = vst [vmem:[%s3 + $0xa8] sm:$0xff] %v571
  %636 = vst [vmem:[%s3 + $0xb0] sm:$0xff] %v572
  %637 = vst [vmem:[%s3 + $0xb8] sm:$0xff] %v573
  %638 = vst [vmem:[%s3 + $0xc0] sm:$0xff] %v574
  %639 = vst [vmem:[%s3 + $0xc8] sm:$0xff] %v575
  %640 = vst [vmem:[%s3 + $0xd0] sm:$0xff] %v576
  %641 = vst [vmem:[%s3 + $0xd8] sm:$0xff] %v577
  %642 = vst [vmem:[%s3 + $0xe0] sm:$0xff] %v578
  %643 = vst [vmem:[%s3 + $0xe8] sm:$0xff] %v579
  %644 = vst [vmem:[%s3 + $0xf0] sm:$0xff] %v580
  %645 = vst [vmem:[%s3 + $0xf8] sm:$0xff] %v581
  // Predicated region
  $region14: #{bilstm_forward.5} parent=0 // pred_check
    _
  $region15: #{bilstm_forward.5} parent=0 // pred_check_branch
    %647 = sbr.rel (0) target = $region17
  $region16: #{bilstm_forward.5} parent=0 // pred_region
    _
  $region17: #{bilstm_forward.5} parent=0 // pred_fallthru
    _
  // Predicated region
  $region18: #{bilstm_forward.5} parent=0 // pred_check
    _
  $region19: #{bilstm_forward.5} parent=0 // pred_check_branch
    %649 = sbr.rel (0) target = $region21
  $region20: #{bilstm_forward.5} parent=0 // pred_region
    _
  $region21: #{bilstm_forward.5} parent=0 // pred_fallthru
    _

// kernel: bilstm_forward.9
$region0: #{bilstm_forward.9}
  #allocation0 [shape = 'u32[]', space=smem, size = 0x4, offset = 0x4, fixed_abs, tag = 'smem constant byte address 0x4 - core index']
  #allocation1 [shape = 'u32[144,128]{1,0:T(1,128)}', space=vmem, size = 0x12000, scoped, tag = 'internal scratch']
  %s0 = inlined_call_operand.vmem [shape: bf16[8,128], index: 0, kind: input, shape index: {}]
  %s1 = inlined_call_operand.vmem [shape: bf16[8,128], index: 1, kind: input, shape index: {}]
  %s2 = inlined_call_operand.vmem [shape: bf16[128,4], index: 2, kind: input, shape index: {}]
  %s3 = inlined_call_operand.vmem [shape: bf16[128,4], index: 3, kind: input, shape index: {}]
  %s4 = inlined_call_operand.vmem [shape: f32[1,4], index: 4, kind: input, shape index: {}]
  %s5 = inlined_call_operand.vmem [shape: f32[8,4], index: 5, kind: output, shape index: {}]
  %s6 = sld [smem:[#allocation0]]
  $region30: #{bilstm_forward.9} parent=0
    _
  %s8 = ssub.s32 1, %s6
  %s9 = scalar_select 0, %s8, %s6
  // Predicated region
  $region2: #{bilstm_forward.9} parent=0 // pred_check
    _
  $region3: #{bilstm_forward.9} parent=0 // pred_check_branch
    %11 = sbr.rel (0) target = $region5
  $region4: #{bilstm_forward.9} parent=0 // pred_region
    _
  $region5: #{bilstm_forward.9} parent=0 // pred_fallthru
    _
  // Predicated region
  $region6: #{bilstm_forward.9} parent=0 // pred_check
    _
  $region7: #{bilstm_forward.9} parent=0 // pred_check_branch
    %13 = sbr.rel (0) target = $region9
  $region8: #{bilstm_forward.9} parent=0 // pred_region
    _
  $region9: #{bilstm_forward.9} parent=0 // pred_fallthru
    _
  // Predicated region
  $region10: #{bilstm_forward.9} parent=0 // pred_check
    _
  $region11: #{bilstm_forward.9} parent=0 // pred_check_branch
    %15 = sbr.rel (0) target = $region13
  $region12: #{bilstm_forward.9} parent=0 // pred_region
    _
  $region13: #{bilstm_forward.9} parent=0 // pred_fallthru
    _
  // Predicated region
  $region14: #{bilstm_forward.9} parent=0 // pred_check
    _
  $region15: #{bilstm_forward.9} parent=0 // pred_check_branch
    %17 = sbr.rel (0) target = $region17
  $region16: #{bilstm_forward.9} parent=0 // pred_region
    _
  $region17: #{bilstm_forward.9} parent=0 // pred_fallthru
    _
  // Predicated region
  $region18: #{bilstm_forward.9} parent=0 // pred_check
    _
  $region19: #{bilstm_forward.9} parent=0 // pred_check_branch
    %19 = sbr.rel (0) target = $region21
  $region20: #{bilstm_forward.9} parent=0 // pred_region
    _
  $region21: #{bilstm_forward.9} parent=0 // pred_fallthru
    _
  %v21 = vld [vmem:[%s0] sm:$0xf]
  %v22 = vld [vmem:[%s2] sm:$0xf]
  %v23 = vld [vmem:[%s2 + $0x4] sm:$0xf]
  %v24 = vld [vmem:[%s2 + $0x8] sm:$0xf]
  %v25 = vld [vmem:[%s2 + $0xc] sm:$0xf]
  %v26 = vld [vmem:[%s2 + $0x10] sm:$0xf]
  %v27 = vld [vmem:[%s2 + $0x14] sm:$0xf]
  %v28 = vld [vmem:[%s2 + $0x18] sm:$0xf]
  %v29 = vld [vmem:[%s2 + $0x1c] sm:$0xf]
  %v30 = vld [vmem:[%s2 + $0x20] sm:$0xf]
  %v31 = vld [vmem:[%s2 + $0x24] sm:$0xf]
  %v32 = vld [vmem:[%s2 + $0x28] sm:$0xf]
  %v33 = vld [vmem:[%s2 + $0x2c] sm:$0xf]
  %v34 = vld [vmem:[%s2 + $0x30] sm:$0xf]
  %v35 = vld [vmem:[%s2 + $0x34] sm:$0xf]
  %v36 = vld [vmem:[%s2 + $0x38] sm:$0xf]
  %v37 = vld [vmem:[%s2 + $0x3c] sm:$0xf]
  %v38 = vld [vmem:[%s1] sm:$0xf]
  %v39 = vld [vmem:[%s3] sm:$0xf]
  %v40 = vld [vmem:[%s3 + $0x4] sm:$0xf]
  %v41 = vld [vmem:[%s3 + $0x8] sm:$0xf]
  %v42 = vld [vmem:[%s3 + $0xc] sm:$0xf]
  %v43 = vld [vmem:[%s3 + $0x10] sm:$0xf]
  %v44 = vld [vmem:[%s3 + $0x14] sm:$0xf]
  %v45 = vld [vmem:[%s3 + $0x18] sm:$0xf]
  %v46 = vld [vmem:[%s3 + $0x1c] sm:$0xf]
  %v47 = vld [vmem:[%s3 + $0x20] sm:$0xf]
  %v48 = vld [vmem:[%s3 + $0x24] sm:$0xf]
  %v49 = vld [vmem:[%s3 + $0x28] sm:$0xf]
  %v50 = vld [vmem:[%s3 + $0x2c] sm:$0xf]
  %v51 = vld [vmem:[%s3 + $0x30] sm:$0xf]
  %v52 = vld [vmem:[%s3 + $0x34] sm:$0xf]
  %v53 = vld [vmem:[%s3 + $0x38] sm:$0xf]
  %v54 = vld [vmem:[%s3 + $0x3c] sm:$0xf]
  %v71 = vunpack.c.l.b16 %v39
  %v72 = vunpack.c.l.b16 %v40
  %v73 = vunpack.c.l.b16 %v41
  %v74 = vunpack.c.l.b16 %v42
  %v75 = vunpack.c.l.b16 %v43
  %v76 = vunpack.c.l.b16 %v44
  %v77 = vunpack.c.l.b16 %v45
  %v78 = vunpack.c.l.b16 %v46
  %v79 = vunpack.c.l.b16 %v47
  %v80 = vunpack.c.l.b16 %v48
  %v81 = vunpack.c.l.b16 %v49
  %v82 = vunpack.c.l.b16 %v50
  %v83 = vunpack.c.l.b16 %v51
  %v84 = vunpack.c.l.b16 %v52
  %v85 = vunpack.c.l.b16 %v53
  %v86 = vunpack.c.l.b16 %v54
  %v87 = vpack.c.b16 %v72, %v71
  %v88 = vpack.c.b16 %v74, %v73
  %v89 = vpack.c.b16 %v76, %v75
  %v90 = vpack.c.b16 %v78, %v77
  %v91 = vpack.c.b16 %v80, %v79
  %v92 = vpack.c.b16 %v82, %v81
  %v93 = vpack.c.b16 %v84, %v83
  %v94 = vpack.c.b16 %v86, %v85
  %103 = vmatprep.subr.bf16.mxu0 0
  %104 = vmatpush1.bf16.msra.mxu0 %v94
  %105 = vmatprep.subr.bf16.mxu0 0
  %106 = vmatpush1.bf16.msra.mxu0 %v93
  %107 = vmatprep.subr.bf16.mxu0 0
  %108 = vmatpush1.bf16.msra.mxu0 %v92
  %109 = vmatprep.subr.bf16.mxu0 0
  %110 = vmatpush1.bf16.msra.mxu0 %v91
  %111 = vmatprep.subr.bf16.mxu0 0
  %112 = vmatpush1.bf16.msra.mxu0 %v90
  %113 = vmatprep.subr.bf16.mxu0 0
  %114 = vmatpush1.bf16.msra.mxu0 %v89
  %115 = vmatprep.subr.bf16.mxu0 0
  %116 = vmatpush1.bf16.msra.mxu0 %v88
  %117 = vmatprep.subr.bf16.mxu0 0
  %118 = vmatpush1.bf16.msra.mxu0 %v87
  %119 = vmatprep.subr.bf16.mxu0 0
  %120 = vmatpush2.bf16.msra.mxu0 0
  %121 = vmatprep.subr.bf16.mxu0 0
  %122 = vmatpush2.bf16.msra.mxu0 0
  %123 = vmatprep.subr.bf16.mxu0 0
  %124 = vmatpush2.bf16.msra.mxu0 0
  %125 = vmatprep.subr.bf16.mxu0 0
  %126 = vmatpush2.bf16.msra.mxu0 0
  %127 = vmatprep.subr.bf16.mxu0 0
  %128 = vmatpush2.bf16.msra.mxu0 0
  %129 = vmatprep.subr.bf16.mxu0 0
  %130 = vmatpush2.bf16.msra.mxu0 0
  %131 = vmatprep.subr.bf16.mxu0 0
  %132 = vmatpush2.bf16.msra.mxu0 0
  %133 = vmatprep.subr.bf16.mxu0 0
  %134 = vmatpush2.bf16.msra.mxu0 0
  %135 = vmatprep.mubr.bf16.mxu0 0
  %136 = vmatmul.mubr.bf16.gmra.mxu0 %v38
  %v137 = vpop.f32.mrf.mxu0
  %v138 = vadd.f32 0.0, %v137
  %v139 = vpop.f32.mrf.mxu0
  %v140 = vpop.f32.mrf.mxu0
  %v141 = vpop.f32.mrf.mxu0
  %142 = vdwg.mxu0
  %v159 = vunpack.c.l.b16 %v22
  %v160 = vunpack.c.l.b16 %v23
  %v161 = vunpack.c.l.b16 %v24
  %v162 = vunpack.c.l.b16 %v25
  %v163 = vunpack.c.l.b16 %v26
  %v164 = vunpack.c.l.b16 %v27
  %v165 = vunpack.c.l.b16 %v28
  %v166 = vunpack.c.l.b16 %v29
  %v167 = vunpack.c.l.b16 %v30
  %v168 = vunpack.c.l.b16 %v31
  %v169 = vunpack.c.l.b16 %v32
  %v170 = vunpack.c.l.b16 %v33
  %v171 = vunpack.c.l.b16 %v34
  %v172 = vunpack.c.l.b16 %v35
  %v173 = vunpack.c.l.b16 %v36
  %v174 = vunpack.c.l.b16 %v37
  %v175 = vpack.c.b16 %v160, %v159
  %v176 = vpack.c.b16 %v162, %v161
  %v177 = vpack.c.b16 %v164, %v163
  %v178 = vpack.c.b16 %v166, %v165
  %v179 = vpack.c.b16 %v168, %v167
  %v180 = vpack.c.b16 %v170, %v169
  %v181 = vpack.c.b16 %v172, %v171
  %v182 = vpack.c.b16 %v174, %v173
  %191 = vmatprep.subr.bf16.mxu0 0
  %192 = vmatpush1.bf16.msra.mxu0 %v182
  %193 = vmatprep.subr.bf16.mxu0 0
  %194 = vmatpush1.bf16.msra.mxu0 %v181
  %195 = vmatprep.subr.bf16.mxu0 0
  %196 = vmatpush1.bf16.msra.mxu0 %v180
  %197 = vmatprep.subr.bf16.mxu0 0
  %198 = vmatpush1.bf16.msra.mxu0 %v179
  %199 = vmatprep.subr.bf16.mxu0 0
  %200 = vmatpush1.bf16.msra.mxu0 %v178
  %201 = vmatprep.subr.bf16.mxu0 0
  %202 = vmatpush1.bf16.msra.mxu0 %v177
  %203 = vmatprep.subr.bf16.mxu0 0
  %204 = vmatpush1.bf16.msra.mxu0 %v176
  %205 = vmatprep.subr.bf16.mxu0 0
  %206 = vmatpush1.bf16.msra.mxu0 %v175
  %207 = vmatprep.subr.bf16.mxu0 0
  %208 = vmatpush2.bf16.msra.mxu0 0
  %209 = vmatprep.subr.bf16.mxu0 0
  %210 = vmatpush2.bf16.msra.mxu0 0
  %211 = vmatprep.subr.bf16.mxu0 0
  %212 = vmatpush2.bf16.msra.mxu0 0
  %213 = vmatprep.subr.bf16.mxu0 0
  %214 = vmatpush2.bf16.msra.mxu0 0
  %215 = vmatprep.subr.bf16.mxu0 0
  %216 = vmatpush2.bf16.msra.mxu0 0
  %217 = vmatprep.subr.bf16.mxu0 0
  %218 = vmatpush2.bf16.msra.mxu0 0
  %219 = vmatprep.subr.bf16.mxu0 0
  %220 = vmatpush2.bf16.msra.mxu0 0
  %221 = vmatprep.subr.bf16.mxu0 0
  %222 = vmatpush2.bf16.msra.mxu0 0
  %223 = vmatprep.mubr.bf16.mxu0 0
  %224 = vmatmul.mubr.bf16.gmra.mxu0 %v21
  %v225 = vpop.f32.mrf.mxu0
  %v226 = vadd.f32 %v138, %v225
  %v227 = vpop.f32.mrf.mxu0
  %v228 = vpop.f32.mrf.mxu0
  %v229 = vpop.f32.mrf.mxu0
  %230 = vdwg.mxu0
  %v231 = vld [vmem:[%s4] sm:$0x1]
  %v233 = vlaneseq
  %v234 = vshrl.u32 %v233, 7
  %v235 = vsub.s32 0, %v234
  %v236 = vrot.slane %v231, %v235
  %v238 = vadd.f32 %v226, %v236
  %vm239 = vcmask 31744
  %240 = vst.msk [vmem:[%s5] sm:$0xff] %vm239, %v238
  // Predicated region
  $region22: #{bilstm_forward.9} parent=0 // pred_check
    _
  $region23: #{bilstm_forward.9} parent=0 // pred_check_branch
    %242 = sbr.rel (0) target = $region25
  $region24: #{bilstm_forward.9} parent=0 // pred_region
    _
  $region25: #{bilstm_forward.9} parent=0 // pred_fallthru
    _
  // Predicated region
  $region26: #{bilstm_forward.9} parent=0 // pred_check
    _
  $region27: #{bilstm_forward.9} parent=0 // pred_check_branch
    %244 = sbr.rel (0) target = $region29
  $region28: #{bilstm_forward.9} parent=0 // pred_region
    _
  $region29: #{bilstm_forward.9} parent=0 // pred_fallthru
    _

// kernel: bilstm_forward.7
$region0: #{bilstm_forward.7}
  #allocation0 [shape = 'u32[]', space=smem, size = 0x4, offset = 0x4, fixed_abs, tag = 'smem constant byte address 0x4 - core index']
  #allocation1 [shape = 'u32[144,128]{1,0:T(1,128)}', space=vmem, size = 0x12000, scoped, tag = 'internal scratch']
  %s0 = inlined_call_operand.vmem [shape: bf16[64,128], index: 0, kind: input, shape index: {}]
  %s1 = inlined_call_operand.vmem [shape: bf16[64,128], index: 1, kind: input, shape index: {}]
  %s2 = inlined_call_operand.vmem [shape: bf16[128,1024], index: 2, kind: input, shape index: {}]
  %s3 = inlined_call_operand.vmem [shape: bf16[128,1024], index: 3, kind: input, shape index: {}]
  %s4 = inlined_call_operand.vmem [shape: f32[1,1024], index: 4, kind: input, shape index: {}]
  %s5 = inlined_call_operand.vmem [shape: bf16[64,1024], index: 5, kind: output, shape index: {}]
  %s6 = sld [smem:[#allocation0]]
  $region30: #{bilstm_forward.7} parent=0
    _
  %s8 = ssub.s32 1, %s6
  %s9 = scalar_select 0, %s8, %s6
  // Predicated region
  $region2: #{bilstm_forward.7} parent=0 // pred_check
    _
  $region3: #{bilstm_forward.7} parent=0 // pred_check_branch
    %11 = sbr.rel (0) target = $region5
  $region4: #{bilstm_forward.7} parent=0 // pred_region
    _
  $region5: #{bilstm_forward.7} parent=0 // pred_fallthru
    _
  // Predicated region
  $region6: #{bilstm_forward.7} parent=0 // pred_check
    _
  $region7: #{bilstm_forward.7} parent=0 // pred_check_branch
    %13 = sbr.rel (0) target = $region9
  $region8: #{bilstm_forward.7} parent=0 // pred_region
    _
  $region9: #{bilstm_forward.7} parent=0 // pred_fallthru
    _
  // Predicated region
  $region10: #{bilstm_forward.7} parent=0 // pred_check
    _
  $region11: #{bilstm_forward.7} parent=0 // pred_check_branch
    %15 = sbr.rel (0) target = $region13
  $region12: #{bilstm_forward.7} parent=0 // pred_region
    _
  $region13: #{bilstm_forward.7} parent=0 // pred_fallthru
    _
  // Predicated region
  $region14: #{bilstm_forward.7} parent=0 // pred_check
    _
  $region15: #{bilstm_forward.7} parent=0 // pred_check_branch
    %17 = sbr.rel (0) target = $region17
  $region16: #{bilstm_forward.7} parent=0 // pred_region
    _
  $region17: #{bilstm_forward.7} parent=0 // pred_fallthru
    _
  // Predicated region
  $region18: #{bilstm_forward.7} parent=0 // pred_check
    _
  $region19: #{bilstm_forward.7} parent=0 // pred_check_branch
    %19 = sbr.rel (0) target = $region21
  $region20: #{bilstm_forward.7} parent=0 // pred_region
    _
  $region21: #{bilstm_forward.7} parent=0 // pred_fallthru
    _
  %v21 = vld [vmem:[%s0] sm:$0xf]
  %v22 = vld [vmem:[%s0 + $0x4] sm:$0xf]
  %v23 = vld [vmem:[%s0 + $0x8] sm:$0xf]
  %v24 = vld [vmem:[%s0 + $0xc] sm:$0xf]
  %v25 = vld [vmem:[%s0 + $0x10] sm:$0xf]
  %v26 = vld [vmem:[%s0 + $0x14] sm:$0xf]
  %v27 = vld [vmem:[%s0 + $0x18] sm:$0xf]
  %v28 = vld [vmem:[%s0 + $0x1c] sm:$0xf]
  %v29 = vld [vmem:[%s2] sm:$0xff]
  %v30 = vld [vmem:[%s2 + $0x8] sm:$0xff]
  %v31 = vld [vmem:[%s2 + $0x10] sm:$0xff]
  %v32 = vld [vmem:[%s2 + $0x18] sm:$0xff]
  %v33 = vld [vmem:[%s2 + $0x20] sm:$0xff]
  %v34 = vld [vmem:[%s2 + $0x28] sm:$0xff]
  %v35 = vld [vmem:[%s2 + $0x30] sm:$0xff]
  %v36 = vld [vmem:[%s2 + $0x38] sm:$0xff]
  %v37 = vld [vmem:[%s2 + $0x40] sm:$0xff]
  %v38 = vld [vmem:[%s2 + $0x48] sm:$0xff]
  %v39 = vld [vmem:[%s2 + $0x50] sm:$0xff]
  %v40 = vld [vmem:[%s2 + $0x58] sm:$0xff]
  %v41 = vld [vmem:[%s2 + $0x60] sm:$0xff]
  %v42 = vld [vmem:[%s2 + $0x68] sm:$0xff]
  %v43 = vld [vmem:[%s2 + $0x70] sm:$0xff]
  %v44 = vld [vmem:[%s2 + $0x78] sm:$0xff]
  %v45 = vld [vmem:[%s2 + $0x80] sm:$0xff]
  %v46 = vld [vmem:[%s2 + $0x88] sm:$0xff]
  %v47 = vld [vmem:[%s2 + $0x90] sm:$0xff]
  %v48 = vld [vmem:[%s2 + $0x98] sm:$0xff]
  %v49 = vld [vmem:[%s2 + $0xa0] sm:$0xff]
  %v50 = vld [vmem:[%s2 + $0xa8] sm:$0xff]
  %v51 = vld [vmem:[%s2 + $0xb0] sm:$0xff]
  %v52 = vld [vmem:[%s2 + $0xb8] sm:$0xff]
  %v53 = vld [vmem:[%s2 + $0xc0] sm:$0xff]
  %v54 = vld [vmem:[%s2 + $0xc8] sm:$0xff]
  %v55 = vld [vmem:[%s2 + $0xd0] sm:$0xff]
  %v56 = vld [vmem:[%s2 + $0xd8] sm:$0xff]
  %v57 = vld [vmem:[%s2 + $0xe0] sm:$0xff]
  %v58 = vld [vmem:[%s2 + $0xe8] sm:$0xff]
  %v59 = vld [vmem:[%s2 + $0xf0] sm:$0xff]
  %v60 = vld [vmem:[%s2 + $0xf8] sm:$0xff]
  %v61 = vld [vmem:[%s2 + $0x100] sm:$0xff]
  %v62 = vld [vmem:[%s2 + $0x108] sm:$0xff]
  %v63 = vld [vmem:[%s2 + $0x110] sm:$0xff]
  %v64 = vld [vmem:[%s2 + $0x118] sm:$0xff]
  %v65 = vld [vmem:[%s2 + $0x120] sm:$0xff]
  %v66 = vld [vmem:[%s2 + $0x128] sm:$0xff]
  %v67 = vld [vmem:[%s2 + $0x130] sm:$0xff]
  %v68 = vld [vmem:[%s2 + $0x138] sm:$0xff]
  %v69 = vld [vmem:[%s2 + $0x140] sm:$0xff]
  %v70 = vld [vmem:[%s2 + $0x148] sm:$0xff]
  %v71 = vld [vmem:[%s2 + $0x150] sm:$0xff]
  %v72 = vld [vmem:[%s2 + $0x158] sm:$0xff]
  %v73 = vld [vmem:[%s2 + $0x160] sm:$0xff]
  %v74 = vld [vmem:[%s2 + $0x168] sm:$0xff]
  %v75 = vld [vmem:[%s2 + $0x170] sm:$0xff]
  %v76 = vld [vmem:[%s2 + $0x178] sm:$0xff]
  %v77 = vld [vmem:[%s2 + $0x180] sm:$0xff]
  %v78 = vld [vmem:[%s2 + $0x188] sm:$0xff]
  %v79 = vld [vmem:[%s2 + $0x190] sm:$0xff]
  %v80 = vld [vmem:[%s2 + $0x198] sm:$0xff]
  %v81 = vld [vmem:[%s2 + $0x1a0] sm:$0xff]
  %v82 = vld [vmem:[%s2 + $0x1a8] sm:$0xff]
  %v83 = vld [vmem:[%s2 + $0x1b0] sm:$0xff]
  %v84 = vld [vmem:[%s2 + $0x1b8] sm:$0xff]
  %v85 = vld [vmem:[%s2 + $0x1c0] sm:$0xff]
  %v86 = vld [vmem:[%s2 + $0x1c8] sm:$0xff]
  %v87 = vld [vmem:[%s2 + $0x1d0] sm:$0xff]
  %v88 = vld [vmem:[%s2 + $0x1d8] sm:$0xff]
  %v89 = vld [vmem:[%s2 + $0x1e0] sm:$0xff]
  %v90 = vld [vmem:[%s2 + $0x1e8] sm:$0xff]
  %v91 = vld [vmem:[%s2 + $0x1f0] sm:$0xff]
  %v92 = vld [vmem:[%s2 + $0x1f8] sm:$0xff]
  %v93 = vld [vmem:[%s1] sm:$0xf]
  %v94 = vld [vmem:[%s1 + $0x4] sm:$0xf]
  %v95 = vld [vmem:[%s1 + $0x8] sm:$0xf]
  %v96 = vld [vmem:[%s1 + $0xc] sm:$0xf]
  %v97 = vld [vmem:[%s1 + $0x10] sm:$0xf]
  %v98 = vld [vmem:[%s1 + $0x14] sm:$0xf]
  %v99 = vld [vmem:[%s1 + $0x18] sm:$0xf]
  %v100 = vld [vmem:[%s1 + $0x1c] sm:$0xf]
  %v101 = vld [vmem:[%s3] sm:$0xff]
  %v102 = vld [vmem:[%s3 + $0x8] sm:$0xff]
  %v103 = vld [vmem:[%s3 + $0x10] sm:$0xff]
  %v104 = vld [vmem:[%s3 + $0x18] sm:$0xff]
  %v105 = vld [vmem:[%s3 + $0x20] sm:$0xff]
  %v106 = vld [vmem:[%s3 + $0x28] sm:$0xff]
  %v107 = vld [vmem:[%s3 + $0x30] sm:$0xff]
  %v108 = vld [vmem:[%s3 + $0x38] sm:$0xff]
  %v109 = vld [vmem:[%s3 + $0x40] sm:$0xff]
  %v110 = vld [vmem:[%s3 + $0x48] sm:$0xff]
  %v111 = vld [vmem:[%s3 + $0x50] sm:$0xff]
  %v112 = vld [vmem:[%s3 + $0x58] sm:$0xff]
  %v113 = vld [vmem:[%s3 + $0x60] sm:$0xff]
  %v114 = vld [vmem:[%s3 + $0x68] sm:$0xff]
  %v115 = vld [vmem:[%s3 + $0x70] sm:$0xff]
  %v116 = vld [vmem:[%s3 + $0x78] sm:$0xff]
  %v117 = vld [vmem:[%s3 + $0x80] sm:$0xff]
  %v118 = vld [vmem:[%s3 + $0x88] sm:$0xff]
  %v119 = vld [vmem:[%s3 + $0x90] sm:$0xff]
  %v120 = vld [vmem:[%s3 + $0x98] sm:$0xff]
  %v121 = vld [vmem:[%s3 + $0xa0] sm:$0xff]
  %v122 = vld [vmem:[%s3 + $0xa8] sm:$0xff]
  %v123 = vld [vmem:[%s3 + $0xb0] sm:$0xff]
  %v124 = vld [vmem:[%s3 + $0xb8] sm:$0xff]
  %v125 = vld [vmem:[%s3 + $0xc0] sm:$0xff]
  %v126 = vld [vmem:[%s3 + $0xc8] sm:$0xff]
  %v127 = vld [vmem:[%s3 + $0xd0] sm:$0xff]
  %v128 = vld [vmem:[%s3 + $0xd8] sm:$0xff]
  %v129 = vld [vmem:[%s3 + $0xe0] sm:$0xff]
  %v130 = vld [vmem:[%s3 + $0xe8] sm:$0xff]
  %v131 = vld [vmem:[%s3 + $0xf0] sm:$0xff]
  %v132 = vld [vmem:[%s3 + $0xf8] sm:$0xff]
  %v133 = vld [vmem:[%s3 + $0x100] sm:$0xff]
  %v134 = vld [vmem:[%s3 + $0x108] sm:$0xff]
  %v135 = vld [vmem:[%s3 + $0x110] sm:$0xff]
  %v136 = vld [vmem:[%s3 + $0x118] sm:$0xff]
  %v137 = vld [vmem:[%s3 + $0x120] sm:$0xff]
  %v138 = vld [vmem:[%s3 + $0x128] sm:$0xff]
  %v139 = vld [vmem:[%s3 + $0x130] sm:$0xff]
  %v140 = vld [vmem:[%s3 + $0x138] sm:$0xff]
  %v141 = vld [vmem:[%s3 + $0x140] sm:$0xff]
  %v142 = vld [vmem:[%s3 + $0x148] sm:$0xff]
  %v143 = vld [vmem:[%s3 + $0x150] sm:$0xff]
  %v144 = vld [vmem:[%s3 + $0x158] sm:$0xff]
  %v145 = vld [vmem:[%s3 + $0x160] sm:$0xff]
  %v146 = vld [vmem:[%s3 + $0x168] sm:$0xff]
  %v147 = vld [vmem:[%s3 + $0x170] sm:$0xff]
  %v148 = vld [vmem:[%s3 + $0x178] sm:$0xff]
  %v149 = vld [vmem:[%s3 + $0x180] sm:$0xff]
  %v150 = vld [vmem:[%s3 + $0x188] sm:$0xff]
  %v151 = vld [vmem:[%s3 + $0x190] sm:$0xff]
  %v152 = vld [vmem:[%s3 + $0x198] sm:$0xff]
  %v153 = vld [vmem:[%s3 + $0x1a0] sm:$0xff]
  %v154 = vld [vmem:[%s3 + $0x1a8] sm:$0xff]
  %v155 = vld [vmem:[%s3 + $0x1b0] sm:$0xff]
  %v156 = vld [vmem:[%s3 + $0x1b8] sm:$0xff]
  %v157 = vld [vmem:[%s3 + $0x1c0] sm:$0xff]
  %v158 = vld [vmem:[%s3 + $0x1c8] sm:$0xff]
  %v159 = vld [vmem:[%s3 + $0x1d0] sm:$0xff]
  %v160 = vld [vmem:[%s3 + $0x1d8] sm:$0xff]
  %v161 = vld [vmem:[%s3 + $0x1e0] sm:$0xff]
  %v162 = vld [vmem:[%s3 + $0x1e8] sm:$0xff]
  %v163 = vld [vmem:[%s3 + $0x1f0] sm:$0xff]
  %v164 = vld [vmem:[%s3 + $0x1f8] sm:$0xff]
  %v173 = vunpack.c.l.b16 %v93
  %v174 = vunpack.c.l.b16 %v94
  %v175 = vunpack.c.l.b16 %v95
  %v176 = vunpack.c.l.b16 %v96
  %v177 = vunpack.c.l.b16 %v97
  %v178 = vunpack.c.l.b16 %v98
  %v179 = vunpack.c.l.b16 %v99
  %v180 = vunpack.c.l.b16 %v100
  %v181 = vpack.c.b16 %v174, %v173
  %v182 = vpack.c.b16 %v176, %v175
  %v183 = vpack.c.b16 %v178, %v177
  %v184 = vpack.c.b16 %v180, %v179
  %v253 = vunpack.c.l.b16 %v101
  %v254 = vunpack.c.h.b16 %v101
  %v255 = vunpack.c.l.b16 %v102
  %v256 = vunpack.c.h.b16 %v102
  %v257 = vunpack.c.l.b16 %v103
  %v258 = vunpack.c.h.b16 %v103
  %v259 = vunpack.c.l.b16 %v104
  %v260 = vunpack.c.h.b16 %v104
  %v261 = vunpack.c.l.b16 %v105
  %v262 = vunpack.c.h.b16 %v105
  %v263 = vunpack.c.l.b16 %v106
  %v264 = vunpack.c.h.b16 %v106
  %v265 = vunpack.c.l.b16 %v107
  %v266 = vunpack.c.h.b16 %v107
  %v267 = vunpack.c.l.b16 %v108
  %v268 = vunpack.c.h.b16 %v108
  %v269 = vunpack.c.l.b16 %v109
  %v270 = vunpack.c.h.b16 %v109
  %v271 = vunpack.c.l.b16 %v110
  %v272 = vunpack.c.h.b16 %v110
  %v273 = vunpack.c.l.b16 %v111
  %v274 = vunpack.c.h.b16 %v111
  %v275 = vunpack.c.l.b16 %v112
  %v276 = vunpack.c.h.b16 %v112
  %v277 = vunpack.c.l.b16 %v113
  %v278 = vunpack.c.h.b16 %v113
  %v279 = vunpack.c.l.b16 %v114
  %v280 = vunpack.c.h.b16 %v114
  %v281 = vunpack.c.l.b16 %v115
  %v282 = vunpack.c.h.b16 %v115
  %v283 = vunpack.c.l.b16 %v116
  %v284 = vunpack.c.h.b16 %v116
  %v285 = vunpack.c.l.b16 %v117
  %v286 = vunpack.c.h.b16 %v117
  %v287 = vunpack.c.l.b16 %v118
  %v288 = vunpack.c.h.b16 %v118
  %v289 = vunpack.c.l.b16 %v119
  %v290 = vunpack.c.h.b16 %v119
  %v291 = vunpack.c.l.b16 %v120
  %v292 = vunpack.c.h.b16 %v120
  %v293 = vunpack.c.l.b16 %v121
  %v294 = vunpack.c.h.b16 %v121
  %v295 = vunpack.c.l.b16 %v122
  %v296 = vunpack.c.h.b16 %v122
  %v297 = vunpack.c.l.b16 %v123
  %v298 = vunpack.c.h.b16 %v123
  %v299 = vunpack.c.l.b16 %v124
  %v300 = vunpack.c.h.b16 %v124
  %v301 = vunpack.c.l.b16 %v125
  %v302 = vunpack.c.h.b16 %v125
  %v303 = vunpack.c.l.b16 %v126
  %v304 = vunpack.c.h.b16 %v126
  %v305 = vunpack.c.l.b16 %v127
  %v306 = vunpack.c.h.b16 %v127
  %v307 = vunpack.c.l.b16 %v128
  %v308 = vunpack.c.h.b16 %v128
  %v309 = vunpack.c.l.b16 %v129
  %v310 = vunpack.c.h.b16 %v129
  %v311 = vunpack.c.l.b16 %v130
  %v312 = vunpack.c.h.b16 %v130
  %v313 = vunpack.c.l.b16 %v131
  %v314 = vunpack.c.h.b16 %v131
  %v315 = vunpack.c.l.b16 %v132
  %v316 = vunpack.c.h.b16 %v132
  %v317 = vunpack.c.l.b16 %v133
  %v318 = vunpack.c.h.b16 %v133
  %v319 = vunpack.c.l.b16 %v134
  %v320 = vunpack.c.h.b16 %v134
  %v321 = vunpack.c.l.b16 %v135
  %v322 = vunpack.c.h.b16 %v135
  %v323 = vunpack.c.l.b16 %v136
  %v324 = vunpack.c.h.b16 %v136
  %v325 = vunpack.c.l.b16 %v137
  %v326 = vunpack.c.h.b16 %v137
  %v327 = vunpack.c.l.b16 %v138
  %v328 = vunpack.c.h.b16 %v138
  %v329 = vunpack.c.l.b16 %v139
  %v330 = vunpack.c.h.b16 %v139
  %v331 = vunpack.c.l.b16 %v140
  %v332 = vunpack.c.h.b16 %v140
  %v333 = vunpack.c.l.b16 %v141
  %v334 = vunpack.c.h.b16 %v141
  %v335 = vunpack.c.l.b16 %v142
  %v336 = vunpack.c.h.b16 %v142
  %v337 = vunpack.c.l.b16 %v143
  %v338 = vunpack.c.h.b16 %v143
  %v339 = vunpack.c.l.b16 %v144
  %v340 = vunpack.c.h.b16 %v144
  %v341 = vunpack.c.l.b16 %v145
  %v342 = vunpack.c.h.b16 %v145
  %v343 = vunpack.c.l.b16 %v146
  %v344 = vunpack.c.h.b16 %v146
  %v345 = vunpack.c.l.b16 %v147
  %v346 = vunpack.c.h.b16 %v147
  %v347 = vunpack.c.l.b16 %v148
  %v348 = vunpack.c.h.b16 %v148
  %v349 = vunpack.c.l.b16 %v149
  %v350 = vunpack.c.h.b16 %v149
  %v351 = vunpack.c.l.b16 %v150
  %v352 = vunpack.c.h.b16 %v150
  %v353 = vunpack.c.l.b16 %v151
  %v354 = vunpack.c.h.b16 %v151
  %v355 = vunpack.c.l.b16 %v152
  %v356 = vunpack.c.h.b16 %v152
  %v357 = vunpack.c.l.b16 %v153
  %v358 = vunpack.c.h.b16 %v153
  %v359 = vunpack.c.l.b16 %v154
  %v360 = vunpack.c.h.b16 %v154
  %v361 = vunpack.c.l.b16 %v155
  %v362 = vunpack.c.h.b16 %v155
  %v363 = vunpack.c.l.b16 %v156
  %v364 = vunpack.c.h.b16 %v156
  %v365 = vunpack.c.l.b16 %v157
  %v366 = vunpack.c.h.b16 %v157
  %v367 = vunpack.c.l.b16 %v158
  %v368 = vunpack.c.h.b16 %v158
  %v369 = vunpack.c.l.b16 %v159
  %v370 = vunpack.c.h.b16 %v159
  %v371 = vunpack.c.l.b16 %v160
  %v372 = vunpack.c.h.b16 %v160
  %v373 = vunpack.c.l.b16 %v161
  %v374 = vunpack.c.h.b16 %v161
  %v375 = vunpack.c.l.b16 %v162
  %v376 = vunpack.c.h.b16 %v162
  %v377 = vunpack.c.l.b16 %v163
  %v378 = vunpack.c.h.b16 %v163
  %v379 = vunpack.c.l.b16 %v164
  %v380 = vunpack.c.h.b16 %v164
  %v381 = vpack.c.b16 %v261, %v253
  %v382 = vpack.c.b16 %v262, %v254
  %v383 = vpack.c.b16 %v263, %v255
  %v384 = vpack.c.b16 %v264, %v256
  %v385 = vpack.c.b16 %v265, %v257
  %v386 = vpack.c.b16 %v266, %v258
  %v387 = vpack.c.b16 %v267, %v259
  %v388 = vpack.c.b16 %v268, %v260
  %v389 = vpack.c.b16 %v277, %v269
  %v390 = vpack.c.b16 %v278, %v270
  %v391 = vpack.c.b16 %v279, %v271
  %v392 = vpack.c.b16 %v280, %v272
  %v393 = vpack.c.b16 %v281, %v273
  %v394 = vpack.c.b16 %v282, %v274
  %v395 = vpack.c.b16 %v283, %v275
  %v396 = vpack.c.b16 %v284, %v276
  %v397 = vpack.c.b16 %v293, %v285
  %v398 = vpack.c.b16 %v294, %v286
  %v399 = vpack.c.b16 %v295, %v287
  %v400 = vpack.c.b16 %v296, %v288
  %v401 = vpack.c.b16 %v297, %v289
  %v402 = vpack.c.b16 %v298, %v290
  %v403 = vpack.c.b16 %v299, %v291
  %v404 = vpack.c.b16 %v300, %v292
  %v405 = vpack.c.b16 %v309, %v301
  %v406 = vpack.c.b16 %v310, %v302
  %v407 = vpack.c.b16 %v311, %v303
  %v408 = vpack.c.b16 %v312, %v304
  %v409 = vpack.c.b16 %v313, %v305
  %v410 = vpack.c.b16 %v314, %v306
  %v411 = vpack.c.b16 %v315, %v307
  %v412 = vpack.c.b16 %v316, %v308
  %v413 = vpack.c.b16 %v325, %v317
  %v414 = vpack.c.b16 %v326, %v318
  %v415 = vpack.c.b16 %v327, %v319
  %v416 = vpack.c.b16 %v328, %v320
  %v417 = vpack.c.b16 %v329, %v321
  %v418 = vpack.c.b16 %v330, %v322
  %v419 = vpack.c.b16 %v331, %v323
  %v420 = vpack.c.b16 %v332, %v324
  %v421 = vpack.c.b16 %v341, %v333
  %v422 = vpack.c.b16 %v342, %v334
  %v423 = vpack.c.b16 %v343, %v335
  %v424 = vpack.c.b16 %v344, %v336
  %v425 = vpack.c.b16 %v345, %v337
  %v426 = vpack.c.b16 %v346, %v338
  %v427 = vpack.c.b16 %v347, %v339
  %v428 = vpack.c.b16 %v348, %v340
  %v429 = vpack.c.b16 %v357, %v349
  %v430 = vpack.c.b16 %v358, %v350
  %v431 = vpack.c.b16 %v359, %v351
  %v432 = vpack.c.b16 %v360, %v352
  %v433 = vpack.c.b16 %v361, %v353
  %v434 = vpack.c.b16 %v362, %v354
  %v435 = vpack.c.b16 %v363, %v355
  %v436 = vpack.c.b16 %v364, %v356
  %v437 = vpack.c.b16 %v373, %v365
  %v438 = vpack.c.b16 %v374, %v366
  %v439 = vpack.c.b16 %v375, %v367
  %v440 = vpack.c.b16 %v376, %v368
  %v441 = vpack.c.b16 %v377, %v369
  %v442 = vpack.c.b16 %v378, %v370
  %v443 = vpack.c.b16 %v379, %v371
  %v444 = vpack.c.b16 %v380, %v372
  %509 = vmatprep.subr.bf16.mxu0 %v438
  %510 = vmatpush1.bf16.msra.mxu0 %v437
  %511 = vmatprep.subr.bf16.mxu0 %v430
  %512 = vmatpush1.bf16.msra.mxu0 %v429
  %513 = vmatprep.subr.bf16.mxu0 %v422
  %514 = vmatpush1.bf16.msra.mxu0 %v421
  %515 = vmatprep.subr.bf16.mxu0 %v414
  %516 = vmatpush1.bf16.msra.mxu0 %v413
  %517 = vmatprep.subr.bf16.mxu0 %v406
  %518 = vmatpush1.bf16.msra.mxu0 %v405
  %519 = vmatprep.subr.bf16.mxu0 %v398
  %520 = vmatpush1.bf16.msra.mxu0 %v397
  %521 = vmatprep.subr.bf16.mxu0 %v390
  %522 = vmatpush1.bf16.msra.mxu0 %v389
  %523 = vmatprep.subr.bf16.mxu0 %v382
  %524 = vmatpush1.bf16.msra.mxu0 %v381
  %525 = vmatprep.subr.bf16.mxu0 0
  %526 = vmatpush2.bf16.msra.mxu0 0
  %527 = vmatprep.subr.bf16.mxu0 0
  %528 = vmatpush2.bf16.msra.mxu0 0
  %529 = vmatprep.subr.bf16.mxu0 0
  %530 = vmatpush2.bf16.msra.mxu0 0
  %531 = vmatprep.subr.bf16.mxu0 0
  %532 = vmatpush2.bf16.msra.mxu0 0
  %533 = vmatprep.subr.bf16.mxu0 0
  %534 = vmatpush2.bf16.msra.mxu0 0
  %535 = vmatprep.subr.bf16.mxu0 0
  %536 = vmatpush2.bf16.msra.mxu0 0
  %537 = vmatprep.subr.bf16.mxu0 0
  %538 = vmatpush2.bf16.msra.mxu0 0
  %539 = vmatprep.subr.bf16.mxu0 0
  %540 = vmatpush2.bf16.msra.mxu0 0
  %541 = vmatprep.mubr.bf16.mxu0 0
  %542 = vmatmul.mubr.bf16.gmra.mxu0 %v181
  %v543 = vpop.f32.mrf.mxu0
  %v544 = vadd.f32 0.0, %v543
  %v545 = vpop.f32.mrf.mxu0
  %v546 = vadd.f32 0.0, %v545
  %v547 = vpop.f32.mrf.mxu0
  %v548 = vadd.f32 0.0, %v547
  %v549 = vpop.f32.mrf.mxu0
  %v550 = vadd.f32 0.0, %v549
  %551 = vmatprep.mubr.bf16.mxu0 0
  %552 = vmatmul.mubr.bf16.gmra.mxu0 %v182
  %v553 = vpop.f32.mrf.mxu0
  %v554 = vadd.f32 0.0, %v553
  %v555 = vpop.f32.mrf.mxu0
  %v556 = vadd.f32 0.0, %v555
  %v557 = vpop.f32.mrf.mxu0
  %v558 = vadd.f32 0.0, %v557
  %v559 = vpop.f32.mrf.mxu0
  %v560 = vadd.f32 0.0, %v559
  %561 = vmatprep.mubr.bf16.mxu0 0
  %562 = vmatmul.mubr.bf16.gmra.mxu0 %v183
  %v563 = vpop.f32.mrf.mxu0
  %v564 = vadd.f32 0.0, %v563
  %v565 = vpop.f32.mrf.mxu0
  %v566 = vadd.f32 0.0, %v565
  %v567 = vpop.f32.mrf.mxu0
  %v568 = vadd.f32 0.0, %v567
  %v569 = vpop.f32.mrf.mxu0
  %v570 = vadd.f32 0.0, %v569
  %571 = vmatprep.mubr.bf16.mxu0 0
  %572 = vmatmul.mubr.bf16.gmra.mxu0 %v184
  %v573 = vpop.f32.mrf.mxu0
  %v574 = vadd.f32 0.0, %v573
  %v575 = vpop.f32.mrf.mxu0
  %v576 = vadd.f32 0.0, %v575
  %v577 = vpop.f32.mrf.mxu0
  %v578 = vadd.f32 0.0, %v577
  %v579 = vpop.f32.mrf.mxu0
  %v580 = vadd.f32 0.0, %v579
  %581 = vdwg.mxu0
  %582 = vmatprep.subr.bf16.mxu0 %v440
  %583 = vmatpush1.bf16.msra.mxu0 %v439
  %584 = vmatprep.subr.bf16.mxu0 %v432
  %585 = vmatpush1.bf16.msra.mxu0 %v431
  %586 = vmatprep.subr.bf16.mxu0 %v424
  %587 = vmatpush1.bf16.msra.mxu0 %v423
  %588 = vmatprep.subr.bf16.mxu0 %v416
  %589 = vmatpush1.bf16.msra.mxu0 %v415
  %590 = vmatprep.subr.bf16.mxu0 %v408
  %591 = vmatpush1.bf16.msra.mxu0 %v407
  %592 = vmatprep.subr.bf16.mxu0 %v400
  %593 = vmatpush1.bf16.msra.mxu0 %v399
  %594 = vmatprep.subr.bf16.mxu0 %v392
  %595 = vmatpush1.bf16.msra.mxu0 %v391
  %596 = vmatprep.subr.bf16.mxu0 %v384
  %597 = vmatpush1.bf16.msra.mxu0 %v383
  %598 = vmatprep.subr.bf16.mxu0 0
  %599 = vmatpush2.bf16.msra.mxu0 0
  %600 = vmatprep.subr.bf16.mxu0 0
  %601 = vmatpush2.bf16.msra.mxu0 0
  %602 = vmatprep.subr.bf16.mxu0 0
  %603 = vmatpush2.bf16.msra.mxu0 0
  %604 = vmatprep.subr.bf16.mxu0 0
  %605 = vmatpush2.bf16.msra.mxu0 0
  %606 = vmatprep.subr.bf16.mxu0 0
  %607 = vmatpush2.bf16.msra.mxu0 0
  %608 = vmatprep.subr.bf16.mxu0 0
  %609 = vmatpush2.bf16.msra.mxu0 0
  %610 = vmatprep.subr.bf16.mxu0 0
  %611 = vmatpush2.bf16.msra.mxu0 0
  %612 = vmatprep.subr.bf16.mxu0 0
  %613 = vmatpush2.bf16.msra.mxu0 0
  %614 = vmatprep.mubr.bf16.mxu0 0
  %615 = vmatmul.mubr.bf16.gmra.mxu0 %v181
  %v616 = vpop.f32.mrf.mxu0
  %v617 = vadd.f32 0.0, %v616
  %v618 = vpop.f32.mrf.mxu0
  %v619 = vadd.f32 0.0, %v618
  %v620 = vpop.f32.mrf.mxu0
  %v621 = vadd.f32 0.0, %v620
  %v622 = vpop.f32.mrf.mxu0
  %v623 = vadd.f32 0.0, %v622
  %624 = vmatprep.mubr.bf16.mxu0 0
  %625 = vmatmul.mubr.bf16.gmra.mxu0 %v182
  %v626 = vpop.f32.mrf.mxu0
  %v627 = vadd.f32 0.0, %v626
  %v628 = vpop.f32.mrf.mxu0
  %v629 = vadd.f32 0.0, %v628
  %v630 = vpop.f32.mrf.mxu0
  %v631 = vadd.f32 0.0, %v630
  %v632 = vpop.f32.mrf.mxu0
  %v633 = vadd.f32 0.0, %v632
  %634 = vmatprep.mubr.bf16.mxu0 0
  %635 = vmatmul.mubr.bf16.gmra.mxu0 %v183
  %v636 = vpop.f32.mrf.mxu0
  %v637 = vadd.f32 0.0, %v636
  %v638 = vpop.f32.mrf.mxu0
  %v639 = vadd.f32 0.0, %v638
  %v640 = vpop.f32.mrf.mxu0
  %v641 = vadd.f32 0.0, %v640
  %v642 = vpop.f32.mrf.mxu0
  %v643 = vadd.f32 0.0, %v642
  %644 = vmatprep.mubr.bf16.mxu0 0
  %645 = vmatmul.mubr.bf16.gmra.mxu0 %v184
  %v646 = vpop.f32.mrf.mxu0
  %v647 = vadd.f32 0.0, %v646
  %v648 = vpop.f32.mrf.mxu0
  %v649 = vadd.f32 0.0, %v648
  %v650 = vpop.f32.mrf.mxu0
  %v651 = vadd.f32 0.0, %v650
  %v652 = vpop.f32.mrf.mxu0
  %v653 = vadd.f32 0.0, %v652
  %654 = vdwg.mxu0
  %655 = vmatprep.subr.bf16.mxu0 %v442
  %656 = vmatpush1.bf16.msra.mxu0 %v441
  %657 = vmatprep.subr.bf16.mxu0 %v434
  %658 = vmatpush1.bf16.msra.mxu0 %v433
  %659 = vmatprep.subr.bf16.mxu0 %v426
  %660 = vmatpush1.bf16.msra.mxu0 %v425
  %661 = vmatprep.subr.bf16.mxu0 %v418
  %662 = vmatpush1.bf16.msra.mxu0 %v417
  %663 = vmatprep.subr.bf16.mxu0 %v410
  %664 = vmatpush1.bf16.msra.mxu0 %v409
  %665 = vmatprep.subr.bf16.mxu0 %v402
  %666 = vmatpush1.bf16.msra.mxu0 %v401
  %667 = vmatprep.subr.bf16.mxu0 %v394
  %668 = vmatpush1.bf16.msra.mxu0 %v393
  %669 = vmatprep.subr.bf16.mxu0 %v386
  %670 = vmatpush1.bf16.msra.mxu0 %v385
  %671 = vmatprep.subr.bf16.mxu0 0
  %672 = vmatpush2.bf16.msra.mxu0 0
  %673 = vmatprep.subr.bf16.mxu0 0
  %674 = vmatpush2.bf16.msra.mxu0 0
  %675 = vmatprep.subr.bf16.mxu0 0
  %676 = vmatpush2.bf16.msra.mxu0 0
  %677 = vmatprep.subr.bf16.mxu0 0
  %678 = vmatpush2.bf16.msra.mxu0 0
  %679 = vmatprep.subr.bf16.mxu0 0
  %680 = vmatpush2.bf16.msra.mxu0 0
  %681 = vmatprep.subr.bf16.mxu0 0
  %682 = vmatpush2.bf16.msra.mxu0 0
  %683 = vmatprep.subr.bf16.mxu0 0
  %684 = vmatpush2.bf16.msra.mxu0 0
  %685 = vmatprep.subr.bf16.mxu0 0
  %686 = vmatpush2.bf16.msra.mxu0 0
  %687 = vmatprep.mubr.bf16.mxu0 0
  %688 = vmatmul.mubr.bf16.gmra.mxu0 %v181
  %v689 = vpop.f32.mrf.mxu0
  %v690 = vadd.f32 0.0, %v689
  %v691 = vpop.f32.mrf.mxu0
  %v692 = vadd.f32 0.0, %v691
  %v693 = vpop.f32.mrf.mxu0
  %v694 = vadd.f32 0.0, %v693
  %v695 = vpop.f32.mrf.mxu0
  %v696 = vadd.f32 0.0, %v695
  %697 = vmatprep.mubr.bf16.mxu0 0
  %698 = vmatmul.mubr.bf16.gmra.mxu0 %v182
  %v699 = vpop.f32.mrf.mxu0
  %v700 = vadd.f32 0.0, %v699
  %v701 = vpop.f32.mrf.mxu0
  %v702 = vadd.f32 0.0, %v701
  %v703 = vpop.f32.mrf.mxu0
  %v704 = vadd.f32 0.0, %v703
  %v705 = vpop.f32.mrf.mxu0
  %v706 = vadd.f32 0.0, %v705
  %707 = vmatprep.mubr.bf16.mxu0 0
  %708 = vmatmul.mubr.bf16.gmra.mxu0 %v183
  %v709 = vpop.f32.mrf.mxu0
  %v710 = vadd.f32 0.0, %v709
  %v711 = vpop.f32.mrf.mxu0
  %v712 = vadd.f32 0.0, %v711
  %v713 = vpop.f32.mrf.mxu0
  %v714 = vadd.f32 0.0, %v713
  %v715 = vpop.f32.mrf.mxu0
  %v716 = vadd.f32 0.0, %v715
  %717 = vmatprep.mubr.bf16.mxu0 0
  %718 = vmatmul.mubr.bf16.gmra.mxu0 %v184
  %v719 = vpop.f32.mrf.mxu0
  %v720 = vadd.f32 0.0, %v719
  %v721 = vpop.f32.mrf.mxu0
  %v722 = vadd.f32 0.0, %v721
  %v723 = vpop.f32.mrf.mxu0
  %v724 = vadd.f32 0.0, %v723
  %v725 = vpop.f32.mrf.mxu0
  %v726 = vadd.f32 0.0, %v725
  %727 = vdwg.mxu0
  %728 = vmatprep.subr.bf16.mxu0 %v444
  %729 = vmatpush1.bf16.msra.mxu0 %v443
  %730 = vmatprep.subr.bf16.mxu0 %v436
  %731 = vmatpush1.bf16.msra.mxu0 %v435
  %732 = vmatprep.subr.bf16.mxu0 %v428
  %733 = vmatpush1.bf16.msra.mxu0 %v427
  %734 = vmatprep.subr.bf16.mxu0 %v420
  %735 = vmatpush1.bf16.msra.mxu0 %v419
  %736 = vmatprep.subr.bf16.mxu0 %v412
  %737 = vmatpush1.bf16.msra.mxu0 %v411
  %738 = vmatprep.subr.bf16.mxu0 %v404
  %739 = vmatpush1.bf16.msra.mxu0 %v403
  %740 = vmatprep.subr.bf16.mxu0 %v396
  %741 = vmatpush1.bf16.msra.mxu0 %v395
  %742 = vmatprep.subr.bf16.mxu0 %v388
  %743 = vmatpush1.bf16.msra.mxu0 %v387
  %744 = vmatprep.subr.bf16.mxu0 0
  %745 = vmatpush2.bf16.msra.mxu0 0
  %746 = vmatprep.subr.bf16.mxu0 0
  %747 = vmatpush2.bf16.msra.mxu0 0
  %748 = vmatprep.subr.bf16.mxu0 0
  %749 = vmatpush2.bf16.msra.mxu0 0
  %750 = vmatprep.subr.bf16.mxu0 0
  %751 = vmatpush2.bf16.msra.mxu0 0
  %752 = vmatprep.subr.bf16.mxu0 0
  %753 = vmatpush2.bf16.msra.mxu0 0
  %754 = vmatprep.subr.bf16.mxu0 0
  %755 = vmatpush2.bf16.msra.mxu0 0
  %756 = vmatprep.subr.bf16.mxu0 0
  %757 = vmatpush2.bf16.msra.mxu0 0
  %758 = vmatprep.subr.bf16.mxu0 0
  %759 = vmatpush2.bf16.msra.mxu0 0
  %760 = vmatprep.mubr.bf16.mxu0 0
  %761 = vmatmul.mubr.bf16.gmra.mxu0 %v181
  %v762 = vpop.f32.mrf.mxu0
  %v763 = vadd.f32 0.0, %v762
  %v764 = vpop.f32.mrf.mxu0
  %v765 = vadd.f32 0.0, %v764
  %v766 = vpop.f32.mrf.mxu0
  %v767 = vadd.f32 0.0, %v766
  %v768 = vpop.f32.mrf.mxu0
  %v769 = vadd.f32 0.0, %v768
  %770 = vmatprep.mubr.bf16.mxu0 0
  %771 = vmatmul.mubr.bf16.gmra.mxu0 %v182
  %v772 = vpop.f32.mrf.mxu0
  %v773 = vadd.f32 0.0, %v772
  %v774 = vpop.f32.mrf.mxu0
  %v775 = vadd.f32 0.0, %v774
  %v776 = vpop.f32.mrf.mxu0
  %v777 = vadd.f32 0.0, %v776
  %v778 = vpop.f32.mrf.mxu0
  %v779 = vadd.f32 0.0, %v778
  %780 = vmatprep.mubr.bf16.mxu0 0
  %781 = vmatmul.mubr.bf16.gmra.mxu0 %v183
  %v782 = vpop.f32.mrf.mxu0
  %v783 = vadd.f32 0.0, %v782
  %v784 = vpop.f32.mrf.mxu0
  %v785 = vadd.f32 0.0, %v784
  %v786 = vpop.f32.mrf.mxu0
  %v787 = vadd.f32 0.0, %v786
  %v788 = vpop.f32.mrf.mxu0
  %v789 = vadd.f32 0.0, %v788
  %790 = vmatprep.mubr.bf16.mxu0 0
  %791 = vmatmul.mubr.bf16.gmra.mxu0 %v184
  %v792 = vpop.f32.mrf.mxu0
  %v793 = vadd.f32 0.0, %v792
  %v794 = vpop.f32.mrf.mxu0
  %v795 = vadd.f32 0.0, %v794
  %v796 = vpop.f32.mrf.mxu0
  %v797 = vadd.f32 0.0, %v796
  %v798 = vpop.f32.mrf.mxu0
  %v799 = vadd.f32 0.0, %v798
  %800 = vdwg.mxu0
  %v809 = vunpack.c.l.b16 %v21
  %v810 = vunpack.c.l.b16 %v22
  %v811 = vunpack.c.l.b16 %v23
  %v812 = vunpack.c.l.b16 %v24
  %v813 = vunpack.c.l.b16 %v25
  %v814 = vunpack.c.l.b16 %v26
  %v815 = vunpack.c.l.b16 %v27
  %v816 = vunpack.c.l.b16 %v28
  %v817 = vpack.c.b16 %v810, %v809
  %v818 = vpack.c.b16 %v812, %v811
  %v819 = vpack.c.b16 %v814, %v813
  %v820 = vpack.c.b16 %v816, %v815
  %v889 = vunpack.c.l.b16 %v29
  %v890 = vunpack.c.h.b16 %v29
  %v891 = vunpack.c.l.b16 %v30
  %v892 = vunpack.c.h.b16 %v30
  %v893 = vunpack.c.l.b16 %v31
  %v894 = vunpack.c.h.b16 %v31
  %v895 = vunpack.c.l.b16 %v32
  %v896 = vunpack.c.h.b16 %v32
  %v897 = vunpack.c.l.b16 %v33
  %v898 = vunpack.c.h.b16 %v33
  %v899 = vunpack.c.l.b16 %v34
  %v900 = vunpack.c.h.b16 %v34
  %v901 = vunpack.c.l.b16 %v35
  %v902 = vunpack.c.h.b16 %v35
  %v903 = vunpack.c.l.b16 %v36
  %v904 = vunpack.c.h.b16 %v36
  %v905 = vunpack.c.l.b16 %v37
  %v906 = vunpack.c.h.b16 %v37
  %v907 = vunpack.c.l.b16 %v38
  %v908 = vunpack.c.h.b16 %v38
  %v909 = vunpack.c.l.b16 %v39
  %v910 = vunpack.c.h.b16 %v39
  %v911 = vunpack.c.l.b16 %v40
  %v912 = vunpack.c.h.b16 %v40
  %v913 = vunpack.c.l.b16 %v41
  %v914 = vunpack.c.h.b16 %v41
  %v915 = vunpack.c.l.b16 %v42
  %v916 = vunpack.c.h.b16 %v42
  %v917 = vunpack.c.l.b16 %v43
  %v918 = vunpack.c.h.b16 %v43
  %v919 = vunpack.c.l.b16 %v44
  %v920 = vunpack.c.h.b16 %v44
  %v921 = vunpack.c.l.b16 %v45
  %v922 = vunpack.c.h.b16 %v45
  %v923 = vunpack.c.l.b16 %v46
  %v924 = vunpack.c.h.b16 %v46
  %v925 = vunpack.c.l.b16 %v47
  %v926 = vunpack.c.h.b16 %v47
  %v927 = vunpack.c.l.b16 %v48
  %v928 = vunpack.c.h.b16 %v48
  %v929 = vunpack.c.l.b16 %v49
  %v930 = vunpack.c.h.b16 %v49
  %v931 = vunpack.c.l.b16 %v50
  %v932 = vunpack.c.h.b16 %v50
  %v933 = vunpack.c.l.b16 %v51
  %v934 = vunpack.c.h.b16 %v51
  %v935 = vunpack.c.l.b16 %v52
  %v936 = vunpack.c.h.b16 %v52
  %v937 = vunpack.c.l.b16 %v53
  %v938 = vunpack.c.h.b16 %v53
  %v939 = vunpack.c.l.b16 %v54
  %v940 = vunpack.c.h.b16 %v54
  %v941 = vunpack.c.l.b16 %v55
  %v942 = vunpack.c.h.b16 %v55
  %v943 = vunpack.c.l.b16 %v56
  %v944 = vunpack.c.h.b16 %v56
  %v945 = vunpack.c.l.b16 %v57
  %v946 = vunpack.c.h.b16 %v57
  %v947 = vunpack.c.l.b16 %v58
  %v948 = vunpack.c.h.b16 %v58
  %v949 = vunpack.c.l.b16 %v59
  %v950 = vunpack.c.h.b16 %v59
  %v951 = vunpack.c.l.b16 %v60
  %v952 = vunpack.c.h.b16 %v60
  %v953 = vunpack.c.l.b16 %v61
  %v954 = vunpack.c.h.b16 %v61
  %v955 = vunpack.c.l.b16 %v62
  %v956 = vunpack.c.h.b16 %v62
  %v957 = vunpack.c.l.b16 %v63
  %v958 = vunpack.c.h.b16 %v63
  %v959 = vunpack.c.l.b16 %v64
  %v960 = vunpack.c.h.b16 %v64
  %v961 = vunpack.c.l.b16 %v65
  %v962 = vunpack.c.h.b16 %v65
  %v963 = vunpack.c.l.b16 %v66
  %v964 = vunpack.c.h.b16 %v66
  %v965 = vunpack.c.l.b16 %v67
  %v966 = vunpack.c.h.b16 %v67
  %v967 = vunpack.c.l.b16 %v68
  %v968 = vunpack.c.h.b16 %v68
  %v969 = vunpack.c.l.b16 %v69
  %v970 = vunpack.c.h.b16 %v69
  %v971 = vunpack.c.l.b16 %v70
  %v972 = vunpack.c.h.b16 %v70
  %v973 = vunpack.c.l.b16 %v71
  %v974 = vunpack.c.h.b16 %v71
  %v975 = vunpack.c.l.b16 %v72
  %v976 = vunpack.c.h.b16 %v72
  %v977 = vunpack.c.l.b16 %v73
  %v978 = vunpack.c.h.b16 %v73
  %v979 = vunpack.c.l.b16 %v74
  %v980 = vunpack.c.h.b16 %v74
  %v981 = vunpack.c.l.b16 %v75
  %v982 = vunpack.c.h.b16 %v75
  %v983 = vunpack.c.l.b16 %v76
  %v984 = vunpack.c.h.b16 %v76
  %v985 = vunpack.c.l.b16 %v77
  %v986 = vunpack.c.h.b16 %v77
  %v987 = vunpack.c.l.b16 %v78
  %v988 = vunpack.c.h.b16 %v78
  %v989 = vunpack.c.l.b16 %v79
  %v990 = vunpack.c.h.b16 %v79
  %v991 = vunpack.c.l.b16 %v80
  %v992 = vunpack.c.h.b16 %v80
  %v993 = vunpack.c.l.b16 %v81
  %v994 = vunpack.c.h.b16 %v81
  %v995 = vunpack.c.l.b16 %v82
  %v996 = vunpack.c.h.b16 %v82
  %v997 = vunpack.c.l.b16 %v83
  %v998 = vunpack.c.h.b16 %v83
  %v999 = vunpack.c.l.b16 %v84
  %v1000 = vunpack.c.h.b16 %v84
  %v1001 = vunpack.c.l.b16 %v85
  %v1002 = vunpack.c.h.b16 %v85
  %v1003 = vunpack.c.l.b16 %v86
  %v1004 = vunpack.c.h.b16 %v86
  %v1005 = vunpack.c.l.b16 %v87
  %v1006 = vunpack.c.h.b16 %v87
  %v1007 = vunpack.c.l.b16 %v88
  %v1008 = vunpack.c.h.b16 %v88
  %v1009 = vunpack.c.l.b16 %v89
  %v1010 = vunpack.c.h.b16 %v89
  %v1011 = vunpack.c.l.b16 %v90
  %v1012 = vunpack.c.h.b16 %v90
  %v1013 = vunpack.c.l.b16 %v91
  %v1014 = vunpack.c.h.b16 %v91
  %v1015 = vunpack.c.l.b16 %v92
  %v1016 = vunpack.c.h.b16 %v92
  %v1017 = vpack.c.b16 %v897, %v889
  %v1018 = vpack.c.b16 %v898, %v890
  %v1019 = vpack.c.b16 %v899, %v891
  %v1020 = vpack.c.b16 %v900, %v892
  %v1021 = vpack.c.b16 %v901, %v893
  %v1022 = vpack.c.b16 %v902, %v894
  %v1023 = vpack.c.b16 %v903, %v895
  %v1024 = vpack.c.b16 %v904, %v896
  %v1025 = vpack.c.b16 %v913, %v905
  %v1026 = vpack.c.b16 %v914, %v906
  %v1027 = vpack.c.b16 %v915, %v907
  %v1028 = vpack.c.b16 %v916, %v908
  %v1029 = vpack.c.b16 %v917, %v909
  %v1030 = vpack.c.b16 %v918, %v910
  %v1031 = vpack.c.b16 %v919, %v911
  %v1032 = vpack.c.b16 %v920, %v912
  %v1033 = vpack.c.b16 %v929, %v921
  %v1034 = vpack.c.b16 %v930, %v922
  %v1035 = vpack.c.b16 %v931, %v923
  %v1036 = vpack.c.b16 %v932, %v924
  %v1037 = vpack.c.b16 %v933, %v925
  %v1038 = vpack.c.b16 %v934, %v926
  %v1039 = vpack.c.b16 %v935, %v927
  %v1040 = vpack.c.b16 %v936, %v928
  %v1041 = vpack.c.b16 %v945, %v937
  %v1042 = vpack.c.b16 %v946, %v938
  %v1043 = vpack.c.b16 %v947, %v939
  %v1044 = vpack.c.b16 %v948, %v940
  %v1045 = vpack.c.b16 %v949, %v941
  %v1046 = vpack.c.b16 %v950, %v942
  %v1047 = vpack.c.b16 %v951, %v943
  %v1048 = vpack.c.b16 %v952, %v944
  %v1049 = vpack.c.b16 %v961, %v953
  %v1050 = vpack.c.b16 %v962, %v954
  %v1051 = vpack.c.b16 %v963, %v955
  %v1052 = vpack.c.b16 %v964, %v956
  %v1053 = vpack.c.b16 %v965, %v957
  %v1054 = vpack.c.b16 %v966, %v958
  %v1055 = vpack.c.b16 %v967, %v959
  %v1056 = vpack.c.b16 %v968, %v960
  %v1057 = vpack.c.b16 %v977, %v969
  %v1058 = vpack.c.b16 %v978, %v970
  %v1059 = vpack.c.b16 %v979, %v971
  %v1060 = vpack.c.b16 %v980, %v972
  %v1061 = vpack.c.b16 %v981, %v973
  %v1062 = vpack.c.b16 %v982, %v974
  %v1063 = vpack.c.b16 %v983, %v975
  %v1064 = vpack.c.b16 %v984, %v976
  %v1065 = vpack.c.b16 %v993, %v985
  %v1066 = vpack.c.b16 %v994, %v986
  %v1067 = vpack.c.b16 %v995, %v987
  %v1068 = vpack.c.b16 %v996, %v988
  %v1069 = vpack.c.b16 %v997, %v989
  %v1070 = vpack.c.b16 %v998, %v990
  %v1071 = vpack.c.b16 %v999, %v991
  %v1072 = vpack.c.b16 %v1000, %v992
  %v1073 = vpack.c.b16 %v1009, %v1001
  %v1074 = vpack.c.b16 %v1010, %v1002
  %v1075 = vpack.c.b16 %v1011, %v1003
  %v1076 = vpack.c.b16 %v1012, %v1004
  %v1077 = vpack.c.b16 %v1013, %v1005
  %v1078 = vpack.c.b16 %v1014, %v1006
  %v1079 = vpack.c.b16 %v1015, %v1007
  %v1080 = vpack.c.b16 %v1016, %v1008
  %1145 = vmatprep.subr.bf16.mxu0 %v1074
  %1146 = vmatpush1.bf16.msra.mxu0 %v1073
  %1147 = vmatprep.subr.bf16.mxu0 %v1066
  %1148 = vmatpush1.bf16.msra.mxu0 %v1065
  %1149 = vmatprep.subr.bf16.mxu0 %v1058
  %1150 = vmatpush1.bf16.msra.mxu0 %v1057
  %1151 = vmatprep.subr.bf16.mxu0 %v1050
  %1152 = vmatpush1.bf16.msra.mxu0 %v1049
  %1153 = vmatprep.subr.bf16.mxu0 %v1042
  %1154 = vmatpush1.bf16.msra.mxu0 %v1041
  %1155 = vmatprep.subr.bf16.mxu0 %v1034
  %1156 = vmatpush1.bf16.msra.mxu0 %v1033
  %1157 = vmatprep.subr.bf16.mxu0 %v1026
  %1158 = vmatpush1.bf16.msra.mxu0 %v1025
  %1159 = vmatprep.subr.bf16.mxu0 %v1018
  %1160 = vmatpush1.bf16.msra.mxu0 %v1017
  %1161 = vmatprep.subr.bf16.mxu0 0
  %1162 = vmatpush2.bf16.msra.mxu0 0
  %1163 = vmatprep.subr.bf16.mxu0 0
  %1164 = vmatpush2.bf16.msra.mxu0 0
  %1165 = vmatprep.subr.bf16.mxu0 0
  %1166 = vmatpush2.bf16.msra.mxu0 0
  %1167 = vmatprep.subr.bf16.mxu0 0
  %1168 = vmatpush2.bf16.msra.mxu0 0
  %1169 = vmatprep.subr.bf16.mxu0 0
  %1170 = vmatpush2.bf16.msra.mxu0 0
  %1171 = vmatprep.subr.bf16.mxu0 0
  %1172 = vmatpush2.bf16.msra.mxu0 0
  %1173 = vmatprep.subr.bf16.mxu0 0
  %1174 = vmatpush2.bf16.msra.mxu0 0
  %1175 = vmatprep.subr.bf16.mxu0 0
  %1176 = vmatpush2.bf16.msra.mxu0 0
  %1177 = vmatprep.mubr.bf16.mxu0 0
  %1178 = vmatmul.mubr.bf16.gmra.mxu0 %v817
  %v1179 = vpop.f32.mrf.mxu0
  %v1180 = vadd.f32 %v544, %v1179
  %v1181 = vpop.f32.mrf.mxu0
  %v1182 = vadd.f32 %v546, %v1181
  %v1183 = vpop.f32.mrf.mxu0
  %v1184 = vadd.f32 %v548, %v1183
  %v1185 = vpop.f32.mrf.mxu0
  %v1186 = vadd.f32 %v550, %v1185
  %1187 = vmatprep.mubr.bf16.mxu0 0
  %1188 = vmatmul.mubr.bf16.gmra.mxu0 %v818
  %v1189 = vpop.f32.mrf.mxu0
  %v1190 = vadd.f32 %v554, %v1189
  %v1191 = vpop.f32.mrf.mxu0
  %v1192 = vadd.f32 %v556, %v1191
  %v1193 = vpop.f32.mrf.mxu0
  %v1194 = vadd.f32 %v558, %v1193
  %v1195 = vpop.f32.mrf.mxu0
  %v1196 = vadd.f32 %v560, %v1195
  %1197 = vmatprep.mubr.bf16.mxu0 0
  %1198 = vmatmul.mubr.bf16.gmra.mxu0 %v819
  %v1199 = vpop.f32.mrf.mxu0
  %v1200 = vadd.f32 %v564, %v1199
  %v1201 = vpop.f32.mrf.mxu0
  %v1202 = vadd.f32 %v566, %v1201
  %v1203 = vpop.f32.mrf.mxu0
  %v1204 = vadd.f32 %v568, %v1203
  %v1205 = vpop.f32.mrf.mxu0
  %v1206 = vadd.f32 %v570, %v1205
  %1207 = vmatprep.mubr.bf16.mxu0 0
  %1208 = vmatmul.mubr.bf16.gmra.mxu0 %v820
  %v1209 = vpop.f32.mrf.mxu0
  %v1210 = vadd.f32 %v574, %v1209
  %v1211 = vpop.f32.mrf.mxu0
  %v1212 = vadd.f32 %v576, %v1211
  %v1213 = vpop.f32.mrf.mxu0
  %v1214 = vadd.f32 %v578, %v1213
  %v1215 = vpop.f32.mrf.mxu0
  %v1216 = vadd.f32 %v580, %v1215
  %1217 = vdwg.mxu0
  %1218 = vmatprep.subr.bf16.mxu0 %v1076
  %1219 = vmatpush1.bf16.msra.mxu0 %v1075
  %1220 = vmatprep.subr.bf16.mxu0 %v1068
  %1221 = vmatpush1.bf16.msra.mxu0 %v1067
  %1222 = vmatprep.subr.bf16.mxu0 %v1060
  %1223 = vmatpush1.bf16.msra.mxu0 %v1059
  %1224 = vmatprep.subr.bf16.mxu0 %v1052
  %1225 = vmatpush1.bf16.msra.mxu0 %v1051
  %1226 = vmatprep.subr.bf16.mxu0 %v1044
  %1227 = vmatpush1.bf16.msra.mxu0 %v1043
  %1228 = vmatprep.subr.bf16.mxu0 %v1036
  %1229 = vmatpush1.bf16.msra.mxu0 %v1035
  %1230 = vmatprep.subr.bf16.mxu0 %v1028
  %1231 = vmatpush1.bf16.msra.mxu0 %v1027
  %1232 = vmatprep.subr.bf16.mxu0 %v1020
  %1233 = vmatpush1.bf16.msra.mxu0 %v1019
  %1234 = vmatprep.subr.bf16.mxu0 0
  %1235 = vmatpush2.bf16.msra.mxu0 0
  %1236 = vmatprep.subr.bf16.mxu0 0
  %1237 = vmatpush2.bf16.msra.mxu0 0
  %1238 = vmatprep.subr.bf16.mxu0 0
  %1239 = vmatpush2.bf16.msra.mxu0 0
  %1240 = vmatprep.subr.bf16.mxu0 0
  %1241 = vmatpush2.bf16.msra.mxu0 0
  %1242 = vmatprep.subr.bf16.mxu0 0
  %1243 = vmatpush2.bf16.msra.mxu0 0
  %1244 = vmatprep.subr.bf16.mxu0 0
  %1245 = vmatpush2.bf16.msra.mxu0 0
  %1246 = vmatprep.subr.bf16.mxu0 0
  %1247 = vmatpush2.bf16.msra.mxu0 0
  %1248 = vmatprep.subr.bf16.mxu0 0
  %1249 = vmatpush2.bf16.msra.mxu0 0
  %1250 = vmatprep.mubr.bf16.mxu0 0
  %1251 = vmatmul.mubr.bf16.gmra.mxu0 %v817
  %v1252 = vpop.f32.mrf.mxu0
  %v1253 = vadd.f32 %v617, %v1252
  %v1254 = vpop.f32.mrf.mxu0
  %v1255 = vadd.f32 %v619, %v1254
  %v1256 = vpop.f32.mrf.mxu0
  %v1257 = vadd.f32 %v621, %v1256
  %v1258 = vpop.f32.mrf.mxu0
  %v1259 = vadd.f32 %v623, %v1258
  %1260 = vmatprep.mubr.bf16.mxu0 0
  %1261 = vmatmul.mubr.bf16.gmra.mxu0 %v818
  %v1262 = vpop.f32.mrf.mxu0
  %v1263 = vadd.f32 %v627, %v1262
  %v1264 = vpop.f32.mrf.mxu0
  %v1265 = vadd.f32 %v629, %v1264
  %v1266 = vpop.f32.mrf.mxu0
  %v1267 = vadd.f32 %v631, %v1266
  %v1268 = vpop.f32.mrf.mxu0
  %v1269 = vadd.f32 %v633, %v1268
  %1270 = vmatprep.mubr.bf16.mxu0 0
  %1271 = vmatmul.mubr.bf16.gmra.mxu0 %v819
  %v1272 = vpop.f32.mrf.mxu0
  %v1273 = vadd.f32 %v637, %v1272
  %v1274 = vpop.f32.mrf.mxu0
  %v1275 = vadd.f32 %v639, %v1274
  %v1276 = vpop.f32.mrf.mxu0
  %v1277 = vadd.f32 %v641, %v1276
  %v1278 = vpop.f32.mrf.mxu0
  %v1279 = vadd.f32 %v643, %v1278
  %1280 = vmatprep.mubr.bf16.mxu0 0
  %1281 = vmatmul.mubr.bf16.gmra.mxu0 %v820
  %v1282 = vpop.f32.mrf.mxu0
  %v1283 = vadd.f32 %v647, %v1282
  %v1284 = vpop.f32.mrf.mxu0
  %v1285 = vadd.f32 %v649, %v1284
  %v1286 = vpop.f32.mrf.mxu0
  %v1287 = vadd.f32 %v651, %v1286
  %v1288 = vpop.f32.mrf.mxu0
  %v1289 = vadd.f32 %v653, %v1288
  %1290 = vdwg.mxu0
  %1291 = vmatprep.subr.bf16.mxu0 %v1078
  %1292 = vmatpush1.bf16.msra.mxu0 %v1077
  %1293 = vmatprep.subr.bf16.mxu0 %v1070
  %1294 = vmatpush1.bf16.msra.mxu0 %v1069
  %1295 = vmatprep.subr.bf16.mxu0 %v1062
  %1296 = vmatpush1.bf16.msra.mxu0 %v1061
  %1297 = vmatprep.subr.bf16.mxu0 %v1054
  %1298 = vmatpush1.bf16.msra.mxu0 %v1053
  %1299 = vmatprep.subr.bf16.mxu0 %v1046
  %1300 = vmatpush1.bf16.msra.mxu0 %v1045
  %1301 = vmatprep.subr.bf16.mxu0 %v1038
  %1302 = vmatpush1.bf16.msra.mxu0 %v1037
  %1303 = vmatprep.subr.bf16.mxu0 %v1030
  %1304 = vmatpush1.bf16.msra.mxu0 %v1029
  %1305 = vmatprep.subr.bf16.mxu0 %v1022
  %1306 = vmatpush1.bf16.msra.mxu0 %v1021
  %1307 = vmatprep.subr.bf16.mxu0 0
  %1308 = vmatpush2.bf16.msra.mxu0 0
  %1309 = vmatprep.subr.bf16.mxu0 0
  %1310 = vmatpush2.bf16.msra.mxu0 0
  %1311 = vmatprep.subr.bf16.mxu0 0
  %1312 = vmatpush2.bf16.msra.mxu0 0
  %1313 = vmatprep.subr.bf16.mxu0 0
  %1314 = vmatpush2.bf16.msra.mxu0 0
  %1315 = vmatprep.subr.bf16.mxu0 0
  %1316 = vmatpush2.bf16.msra.mxu0 0
  %1317 = vmatprep.subr.bf16.mxu0 0
  %1318 = vmatpush2.bf16.msra.mxu0 0
  %1319 = vmatprep.subr.bf16.mxu0 0
  %1320 = vmatpush2.bf16.msra.mxu0 0
  %1321 = vmatprep.subr.bf16.mxu0 0
  %1322 = vmatpush2.bf16.msra.mxu0 0
  %1323 = vmatprep.mubr.bf16.mxu0 0
  %1324 = vmatmul.mubr.bf16.gmra.mxu0 %v817
  %v1325 = vpop.f32.mrf.mxu0
  %v1326 = vadd.f32 %v690, %v1325
  %v1327 = vpop.f32.mrf.mxu0
  %v1328 = vadd.f32 %v692, %v1327
  %v1329 = vpop.f32.mrf.mxu0
  %v1330 = vadd.f32 %v694, %v1329
  %v1331 = vpop.f32.mrf.mxu0
  %v1332 = vadd.f32 %v696, %v1331
  %1333 = vmatprep.mubr.bf16.mxu0 0
  %1334 = vmatmul.mubr.bf16.gmra.mxu0 %v818
  %v1335 = vpop.f32.mrf.mxu0
  %v1336 = vadd.f32 %v700, %v1335
  %v1337 = vpop.f32.mrf.mxu0
  %v1338 = vadd.f32 %v702, %v1337
  %v1339 = vpop.f32.mrf.mxu0
  %v1340 = vadd.f32 %v704, %v1339
  %v1341 = vpop.f32.mrf.mxu0
  %v1342 = vadd.f32 %v706, %v1341
  %1343 = vmatprep.mubr.bf16.mxu0 0
  %1344 = vmatmul.mubr.bf16.gmra.mxu0 %v819
  %v1345 = vpop.f32.mrf.mxu0
  %v1346 = vadd.f32 %v710, %v1345
  %v1347 = vpop.f32.mrf.mxu0
  %v1348 = vadd.f32 %v712, %v1347
  %v1349 = vpop.f32.mrf.mxu0
  %v1350 = vadd.f32 %v714, %v1349
  %v1351 = vpop.f32.mrf.mxu0
  %v1352 = vadd.f32 %v716, %v1351
  %1353 = vmatprep.mubr.bf16.mxu0 0
  %1354 = vmatmul.mubr.bf16.gmra.mxu0 %v820
  %v1355 = vpop.f32.mrf.mxu0
  %v1356 = vadd.f32 %v720, %v1355
  %v1357 = vpop.f32.mrf.mxu0
  %v1358 = vadd.f32 %v722, %v1357
  %v1359 = vpop.f32.mrf.mxu0
  %v1360 = vadd.f32 %v724, %v1359
  %v1361 = vpop.f32.mrf.mxu0
  %v1362 = vadd.f32 %v726, %v1361
  %1363 = vdwg.mxu0
  %1364 = vmatprep.subr.bf16.mxu0 %v1080
  %1365 = vmatpush1.bf16.msra.mxu0 %v1079
  %1366 = vmatprep.subr.bf16.mxu0 %v1072
  %1367 = vmatpush1.bf16.msra.mxu0 %v1071
  %1368 = vmatprep.subr.bf16.mxu0 %v1064
  %1369 = vmatpush1.bf16.msra.mxu0 %v1063
  %1370 = vmatprep.subr.bf16.mxu0 %v1056
  %1371 = vmatpush1.bf16.msra.mxu0 %v1055
  %1372 = vmatprep.subr.bf16.mxu0 %v1048
  %1373 = vmatpush1.bf16.msra.mxu0 %v1047
  %1374 = vmatprep.subr.bf16.mxu0 %v1040
  %1375 = vmatpush1.bf16.msra.mxu0 %v1039
  %1376 = vmatprep.subr.bf16.mxu0 %v1032
  %1377 = vmatpush1.bf16.msra.mxu0 %v1031
  %1378 = vmatprep.subr.bf16.mxu0 %v1024
  %1379 = vmatpush1.bf16.msra.mxu0 %v1023
  %1380 = vmatprep.subr.bf16.mxu0 0
  %1381 = vmatpush2.bf16.msra.mxu0 0
  %1382 = vmatprep.subr.bf16.mxu0 0
  %1383 = vmatpush2.bf16.msra.mxu0 0
  %1384 = vmatprep.subr.bf16.mxu0 0
  %1385 = vmatpush2.bf16.msra.mxu0 0
  %1386 = vmatprep.subr.bf16.mxu0 0
  %1387 = vmatpush2.bf16.msra.mxu0 0
  %1388 = vmatprep.subr.bf16.mxu0 0
  %1389 = vmatpush2.bf16.msra.mxu0 0
  %1390 = vmatprep.subr.bf16.mxu0 0
  %1391 = vmatpush2.bf16.msra.mxu0 0
  %1392 = vmatprep.subr.bf16.mxu0 0
  %1393 = vmatpush2.bf16.msra.mxu0 0
  %1394 = vmatprep.subr.bf16.mxu0 0
  %1395 = vmatpush2.bf16.msra.mxu0 0
  %1396 = vmatprep.mubr.bf16.mxu0 0
  %1397 = vmatmul.mubr.bf16.gmra.mxu0 %v817
  %v1398 = vpop.f32.mrf.mxu0
  %v1399 = vadd.f32 %v763, %v1398
  %v1400 = vpop.f32.mrf.mxu0
  %v1401 = vadd.f32 %v765, %v1400
  %v1402 = vpop.f32.mrf.mxu0
  %v1403 = vadd.f32 %v767, %v1402
  %v1404 = vpop.f32.mrf.mxu0
  %v1405 = vadd.f32 %v769, %v1404
  %1406 = vmatprep.mubr.bf16.mxu0 0
  %1407 = vmatmul.mubr.bf16.gmra.mxu0 %v818
  %v1408 = vpop.f32.mrf.mxu0
  %v1409 = vadd.f32 %v773, %v1408
  %v1410 = vpop.f32.mrf.mxu0
  %v1411 = vadd.f32 %v775, %v1410
  %v1412 = vpop.f32.mrf.mxu0
  %v1413 = vadd.f32 %v777, %v1412
  %v1414 = vpop.f32.mrf.mxu0
  %v1415 = vadd.f32 %v779, %v1414
  %1416 = vmatprep.mubr.bf16.mxu0 0
  %1417 = vmatmul.mubr.bf16.gmra.mxu0 %v819
  %v1418 = vpop.f32.mrf.mxu0
  %v1419 = vadd.f32 %v783, %v1418
  %v1420 = vpop.f32.mrf.mxu0
  %v1421 = vadd.f32 %v785, %v1420
  %v1422 = vpop.f32.mrf.mxu0
  %v1423 = vadd.f32 %v787, %v1422
  %v1424 = vpop.f32.mrf.mxu0
  %v1425 = vadd.f32 %v789, %v1424
  %1426 = vmatprep.mubr.bf16.mxu0 0
  %1427 = vmatmul.mubr.bf16.gmra.mxu0 %v820
  %v1428 = vpop.f32.mrf.mxu0
  %v1429 = vadd.f32 %v793, %v1428
  %v1430 = vpop.f32.mrf.mxu0
  %v1431 = vadd.f32 %v795, %v1430
  %v1432 = vpop.f32.mrf.mxu0
  %v1433 = vadd.f32 %v797, %v1432
  %v1434 = vpop.f32.mrf.mxu0
  %v1435 = vadd.f32 %v799, %v1434
  %1436 = vdwg.mxu0
  %v1437 = vld [vmem:[%s4] sm:$0xff]
  %v1439 = vlaneseq
  %v1440 = vshrl.u32 %v1439, 7
  %v1441 = vsub.s32 0, %v1440
  %v1442 = vrot.slane %v1437, %v1441
  %v1443 = vlaneseq
  %v1444 = vshrl.u32 %v1443, 7
  %v1445 = vsub.s32 1, %v1444
  %v1446 = vrot.slane %v1437, %v1445
  %v1447 = vlaneseq
  %v1448 = vshrl.u32 %v1447, 7
  %v1449 = vsub.s32 2, %v1448
  %v1450 = vrot.slane %v1437, %v1449
  %v1451 = vlaneseq
  %v1452 = vshrl.u32 %v1451, 7
  %v1453 = vsub.s32 3, %v1452
  %v1454 = vrot.slane %v1437, %v1453
  %v1455 = vlaneseq
  %v1456 = vshrl.u32 %v1455, 7
  %v1457 = vsub.s32 4, %v1456
  %v1458 = vrot.slane %v1437, %v1457
  %v1459 = vlaneseq
  %v1460 = vshrl.u32 %v1459, 7
  %v1461 = vsub.s32 5, %v1460
  %v1462 = vrot.slane %v1437, %v1461
  %v1463 = vlaneseq
  %v1464 = vshrl.u32 %v1463, 7
  %v1465 = vsub.s32 6, %v1464
  %v1466 = vrot.slane %v1437, %v1465
  %v1467 = vlaneseq
  %v1468 = vshrl.u32 %v1467, 7
  %v1469 = vsub.s32 7, %v1468
  %v1470 = vrot.slane %v1437, %v1469
  %v1479 = vadd.f32 %v1180, %v1442
  %v1480 = vadd.f32 %v1182, %v1446
  %v1481 = vadd.f32 %v1253, %v1450
  %v1482 = vadd.f32 %v1255, %v1454
  %v1483 = vadd.f32 %v1326, %v1458
  %v1484 = vadd.f32 %v1328, %v1462
  %v1485 = vadd.f32 %v1399, %v1466
  %v1486 = vadd.f32 %v1401, %v1470
  %v1487 = vadd.f32 %v1184, %v1442
  %v1488 = vadd.f32 %v1186, %v1446
  %v1489 = vadd.f32 %v1257, %v1450
  %v1490 = vadd.f32 %v1259, %v1454
  %v1491 = vadd.f32 %v1330, %v1458
  %v1492 = vadd.f32 %v1332, %v1462
  %v1493 = vadd.f32 %v1403, %v1466
  %v1494 = vadd.f32 %v1405, %v1470
  %v1495 = vadd.f32 %v1190, %v1442
  %v1496 = vadd.f32 %v1192, %v1446
  %v1497 = vadd.f32 %v1263, %v1450
  %v1498 = vadd.f32 %v1265, %v1454
  %v1499 = vadd.f32 %v1336, %v1458
  %v1500 = vadd.f32 %v1338, %v1462
  %v1501 = vadd.f32 %v1409, %v1466
  %v1502 = vadd.f32 %v1411, %v1470
  %v1503 = vadd.f32 %v1194, %v1442
  %v1504 = vadd.f32 %v1196, %v1446
  %v1505 = vadd.f32 %v1267, %v1450
  %v1506 = vadd.f32 %v1269, %v1454
  %v1507 = vadd.f32 %v1340, %v1458
  %v1508 = vadd.f32 %v1342, %v1462
  %v1509 = vadd.f32 %v1413, %v1466
  %v1510 = vadd.f32 %v1415, %v1470
  %v1511 = vadd.f32 %v1200, %v1442
  %v1512 = vadd.f32 %v1202, %v1446
  %v1513 = vadd.f32 %v1273, %v1450
  %v1514 = vadd.f32 %v1275, %v1454
  %v1515 = vadd.f32 %v1346, %v1458
  %v1516 = vadd.f32 %v1348, %v1462
  %v1517 = vadd.f32 %v1419, %v1466
  %v1518 = vadd.f32 %v1421, %v1470
  %v1519 = vadd.f32 %v1204, %v1442
  %v1520 = vadd.f32 %v1206, %v1446
  %v1521 = vadd.f32 %v1277, %v1450
  %v1522 = vadd.f32 %v1279, %v1454
  %v1523 = vadd.f32 %v1350, %v1458
  %v1524 = vadd.f32 %v1352, %v1462
  %v1525 = vadd.f32 %v1423, %v1466
  %v1526 = vadd.f32 %v1425, %v1470
  %v1527 = vadd.f32 %v1210, %v1442
  %v1528 = vadd.f32 %v1212, %v1446
  %v1529 = vadd.f32 %v1283, %v1450
  %v1530 = vadd.f32 %v1285, %v1454
  %v1531 = vadd.f32 %v1356, %v1458
  %v1532 = vadd.f32 %v1358, %v1462
  %v1533 = vadd.f32 %v1429, %v1466
  %v1534 = vadd.f32 %v1431, %v1470
  %v1535 = vadd.f32 %v1214, %v1442
  %v1536 = vadd.f32 %v1216, %v1446
  %v1537 = vadd.f32 %v1287, %v1450
  %v1538 = vadd.f32 %v1289, %v1454
  %v1539 = vadd.f32 %v1360, %v1458
  %v1540 = vadd.f32 %v1362, %v1462
  %v1541 = vadd.f32 %v1433, %v1466
  %v1542 = vadd.f32 %v1435, %v1470
  %v1543 = vpack.c.bf16 %v1487, %v1479
  %v1544 = vpack.c.bf16 %v1488, %v1480
  %v1545 = vpack.c.bf16 %v1489, %v1481
  %v1546 = vpack.c.bf16 %v1490, %v1482
  %v1547 = vpack.c.bf16 %v1491, %v1483
  %v1548 = vpack.c.bf16 %v1492, %v1484
  %v1549 = vpack.c.bf16 %v1493, %v1485
  %v1550 = vpack.c.bf16 %v1494, %v1486
  %v1551 = vpack.c.bf16 %v1503, %v1495
  %v1552 = vpack.c.bf16 %v1504, %v1496
  %v1553 = vpack.c.bf16 %v1505, %v1497
  %v1554 = vpack.c.bf16 %v1506, %v1498
  %v1555 = vpack.c.bf16 %v1507, %v1499
  %v1556 = vpack.c.bf16 %v1508, %v1500
  %v1557 = vpack.c.bf16 %v1509, %v1501
  %v1558 = vpack.c.bf16 %v1510, %v1502
  %v1559 = vpack.c.bf16 %v1519, %v1511
  %v1560 = vpack.c.bf16 %v1520, %v1512
  %v1561 = vpack.c.bf16 %v1521, %v1513
  %v1562 = vpack.c.bf16 %v1522, %v1514
  %v1563 = vpack.c.bf16 %v1523, %v1515
  %v1564 = vpack.c.bf16 %v1524, %v1516
  %v1565 = vpack.c.bf16 %v1525, %v1517
  %v1566 = vpack.c.bf16 %v1526, %v1518
  %v1567 = vpack.c.bf16 %v1535, %v1527
  %v1568 = vpack.c.bf16 %v1536, %v1528
  %v1569 = vpack.c.bf16 %v1537, %v1529
  %v1570 = vpack.c.bf16 %v1538, %v1530
  %v1571 = vpack.c.bf16 %v1539, %v1531
  %v1572 = vpack.c.bf16 %v1540, %v1532
  %v1573 = vpack.c.bf16 %v1541, %v1533
  %v1574 = vpack.c.bf16 %v1542, %v1534
  %v1607 = vunpack.c.l.b16 %v1543
  %v1608 = vunpack.c.l.b16 %v1544
  %v1609 = vunpack.c.l.b16 %v1545
  %v1610 = vunpack.c.l.b16 %v1546
  %v1611 = vunpack.c.l.b16 %v1547
  %v1612 = vunpack.c.l.b16 %v1548
  %v1613 = vunpack.c.l.b16 %v1549
  %v1614 = vunpack.c.l.b16 %v1550
  %v1615 = vunpack.c.h.b16 %v1543
  %v1616 = vunpack.c.h.b16 %v1544
  %v1617 = vunpack.c.h.b16 %v1545
  %v1618 = vunpack.c.h.b16 %v1546
  %v1619 = vunpack.c.h.b16 %v1547
  %v1620 = vunpack.c.h.b16 %v1548
  %v1621 = vunpack.c.h.b16 %v1549
  %v1622 = vunpack.c.h.b16 %v1550
  %v1623 = vunpack.c.l.b16 %v1551
  %v1624 = vunpack.c.l.b16 %v1552
  %v1625 = vunpack.c.l.b16 %v1553
  %v1626 = vunpack.c.l.b16 %v1554
  %v1627 = vunpack.c.l.b16 %v1555
  %v1628 = vunpack.c.l.b16 %v1556
  %v1629 = vunpack.c.l.b16 %v1557
  %v1630 = vunpack.c.l.b16 %v1558
  %v1631 = vunpack.c.h.b16 %v1551
  %v1632 = vunpack.c.h.b16 %v1552
  %v1633 = vunpack.c.h.b16 %v1553
  %v1634 = vunpack.c.h.b16 %v1554
  %v1635 = vunpack.c.h.b16 %v1555
  %v1636 = vunpack.c.h.b16 %v1556
  %v1637 = vunpack.c.h.b16 %v1557
  %v1638 = vunpack.c.h.b16 %v1558
  %v1639 = vunpack.c.l.b16 %v1559
  %v1640 = vunpack.c.l.b16 %v1560
  %v1641 = vunpack.c.l.b16 %v1561
  %v1642 = vunpack.c.l.b16 %v1562
  %v1643 = vunpack.c.l.b16 %v1563
  %v1644 = vunpack.c.l.b16 %v1564
  %v1645 = vunpack.c.l.b16 %v1565
  %v1646 = vunpack.c.l.b16 %v1566
  %v1647 = vunpack.c.h.b16 %v1559
  %v1648 = vunpack.c.h.b16 %v1560
  %v1649 = vunpack.c.h.b16 %v1561
  %v1650 = vunpack.c.h.b16 %v1562
  %v1651 = vunpack.c.h.b16 %v1563
  %v1652 = vunpack.c.h.b16 %v1564
  %v1653 = vunpack.c.h.b16 %v1565
  %v1654 = vunpack.c.h.b16 %v1566
  %v1655 = vunpack.c.l.b16 %v1567
  %v1656 = vunpack.c.l.b16 %v1568
  %v1657 = vunpack.c.l.b16 %v1569
  %v1658 = vunpack.c.l.b16 %v1570
  %v1659 = vunpack.c.l.b16 %v1571
  %v1660 = vunpack.c.l.b16 %v1572
  %v1661 = vunpack.c.l.b16 %v1573
  %v1662 = vunpack.c.l.b16 %v1574
  %v1663 = vunpack.c.h.b16 %v1567
  %v1664 = vunpack.c.h.b16 %v1568
  %v1665 = vunpack.c.h.b16 %v1569
  %v1666 = vunpack.c.h.b16 %v1570
  %v1667 = vunpack.c.h.b16 %v1571
  %v1668 = vunpack.c.h.b16 %v1572
  %v1669 = vunpack.c.h.b16 %v1573
  %v1670 = vunpack.c.h.b16 %v1574
  %v1671 = vpack.c.b16 %v1608, %v1607
  %v1672 = vpack.c.b16 %v1610, %v1609
  %v1673 = vpack.c.b16 %v1612, %v1611
  %v1674 = vpack.c.b16 %v1614, %v1613
  %v1675 = vpack.c.b16 %v1616, %v1615
  %v1676 = vpack.c.b16 %v1618, %v1617
  %v1677 = vpack.c.b16 %v1620, %v1619
  %v1678 = vpack.c.b16 %v1622, %v1621
  %v1679 = vpack.c.b16 %v1624, %v1623
  %v1680 = vpack.c.b16 %v1626, %v1625
  %v1681 = vpack.c.b16 %v1628, %v1627
  %v1682 = vpack.c.b16 %v1630, %v1629
  %v1683 = vpack.c.b16 %v1632, %v1631
  %v1684 = vpack.c.b16 %v1634, %v1633
  %v1685 = vpack.c.b16 %v1636, %v1635
  %v1686 = vpack.c.b16 %v1638, %v1637
  %v1687 = vpack.c.b16 %v1640, %v1639
  %v1688 = vpack.c.b16 %v1642, %v1641
  %v1689 = vpack.c.b16 %v1644, %v1643
  %v1690 = vpack.c.b16 %v1646, %v1645
  %v1691 = vpack.c.b16 %v1648, %v1647
  %v1692 = vpack.c.b16 %v1650, %v1649
  %v1693 = vpack.c.b16 %v1652, %v1651
  %v1694 = vpack.c.b16 %v1654, %v1653
  %v1695 = vpack.c.b16 %v1656, %v1655
  %v1696 = vpack.c.b16 %v1658, %v1657
  %v1697 = vpack.c.b16 %v1660, %v1659
  %v1698 = vpack.c.b16 %v1662, %v1661
  %v1699 = vpack.c.b16 %v1664, %v1663
  %v1700 = vpack.c.b16 %v1666, %v1665
  %v1701 = vpack.c.b16 %v1668, %v1667
  %v1702 = vpack.c.b16 %v1670, %v1669
  %1735 = vst [vmem:[%s5] sm:$0xff] %v1671
  %1736 = vst [vmem:[%s5 + $0x8] sm:$0xff] %v1672
  %1737 = vst [vmem:[%s5 + $0x10] sm:$0xff] %v1673
  %1738 = vst [vmem:[%s5 + $0x18] sm:$0xff] %v1674
  %1739 = vst [vmem:[%s5 + $0x20] sm:$0xff] %v1675
  %1740 = vst [vmem:[%s5 + $0x28] sm:$0xff] %v1676
  %1741 = vst [vmem:[%s5 + $0x30] sm:$0xff] %v1677
  %1742 = vst [vmem:[%s5 + $0x38] sm:$0xff] %v1678
  %1743 = vst [vmem:[%s5 + $0x40] sm:$0xff] %v1679
  %1744 = vst [vmem:[%s5 + $0x48] sm:$0xff] %v1680
  %1745 = vst [vmem:[%s5 + $0x50] sm:$0xff] %v1681
  %1746 = vst [vmem:[%s5 + $0x58] sm:$0xff] %v1682
  %1747 = vst [vmem:[%s5 + $0x60] sm:$0xff] %v1683
  %1748 = vst [vmem:[%s5 + $0x68] sm:$0xff] %v1684
  %1749 = vst [vmem:[%s5 + $0x70] sm:$0xff] %v1685
  %1750 = vst [vmem:[%s5 + $0x78] sm:$0xff] %v1686
  %1751 = vst [vmem:[%s5 + $0x80] sm:$0xff] %v1687
  %1752 = vst [vmem:[%s5 + $0x88] sm:$0xff] %v1688
  %1753 = vst [vmem:[%s5 + $0x90] sm:$0xff] %v1689
  %1754 = vst [vmem:[%s5 + $0x98] sm:$0xff] %v1690
  %1755 = vst [vmem:[%s5 + $0xa0] sm:$0xff] %v1691
  %1756 = vst [vmem:[%s5 + $0xa8] sm:$0xff] %v1692
  %1757 = vst [vmem:[%s5 + $0xb0] sm:$0xff] %v1693
  %1758 = vst [vmem:[%s5 + $0xb8] sm:$0xff] %v1694
  %1759 = vst [vmem:[%s5 + $0xc0] sm:$0xff] %v1695
  %1760 = vst [vmem:[%s5 + $0xc8] sm:$0xff] %v1696
  %1761 = vst [vmem:[%s5 + $0xd0] sm:$0xff] %v1697
  %1762 = vst [vmem:[%s5 + $0xd8] sm:$0xff] %v1698
  %1763 = vst [vmem:[%s5 + $0xe0] sm:$0xff] %v1699
  %1764 = vst [vmem:[%s5 + $0xe8] sm:$0xff] %v1700
  %1765 = vst [vmem:[%s5 + $0xf0] sm:$0xff] %v1701
  %1766 = vst [vmem:[%s5 + $0xf8] sm:$0xff] %v1702
  // Predicated region
  $region22: #{bilstm_forward.7} parent=0 // pred_check
    _
  $region23: #{bilstm_forward.7} parent=0 // pred_check_branch
    %1768 = sbr.rel (0) target = $region25
  $region24: #{bilstm_forward.7} parent=0 // pred_region
    _
  $region25: #{bilstm_forward.7} parent=0 // pred_fallthru
    _
  // Predicated region
  $region26: #{bilstm_forward.7} parent=0 // pred_check
    _
  $region27: #{bilstm_forward.7} parent=0 // pred_check_branch
    %1770 = sbr.rel (0) target = $region29
  $region28: #{bilstm_forward.7} parent=0 // pred_region
    _
  $region29: #{bilstm_forward.7} parent=0 // pred_fallthru
    _

// kernel: bilstm_forward.6
$region0: #{bilstm_forward.6}
  #allocation0 [shape = 'u32[]', space=smem, size = 0x4, offset = 0x4, fixed_abs, tag = 'smem constant byte address 0x4 - core index']
  #allocation1 [shape = 'u32[144,128]{1,0:T(1,128)}', space=vmem, size = 0x12000, scoped, tag = 'internal scratch']
  #allocation2 [shape = 'f32[8,128]{1,0:T(8,128)}', space=vmem, size = 0x1000, scoped, tag = 'scratch operand']
  #allocation3 [shape = 'f32[8,128]{1,0:T(8,128)}', space=vmem, size = 0x1000, scoped, tag = 'scratch operand']
  #allocation4 [shape = 'f32[8,128]{1,0:T(8,128)}', space=vmem, size = 0x1000, scoped, tag = 'scratch operand']
  #allocation5 [shape = 'f32[8,128]{1,0:T(8,128)}', space=vmem, size = 0x1000, scoped, tag = 'scratch operand']
  %s0 = inlined_call_operand.vmem [shape: bf16[8,8,1024], index: 0, kind: input, shape index: {}, may-alias: {0,1}]
  %s1 = inlined_call_operand.vmem [shape: bf16[8,8,1024], index: 1, kind: input, shape index: {}, may-alias: {0,1}]
  %s2 = inlined_call_operand.vmem [shape: bf16[128,512], index: 2, kind: input, shape index: {}]
  %s3 = inlined_call_operand.vmem [shape: bf16[128,512], index: 3, kind: input, shape index: {}]
  %s4 = inlined_call_operand.vmem [shape: bf16[8,8,128], index: 4, kind: output, shape index: {0}]
  %s5 = inlined_call_operand.vmem [shape: bf16[8,8,128], index: 5, kind: output, shape index: {1}]
  %6 = xla_tuple %s4, %s5
  %s7 = sld [smem:[#allocation0]]
  $region84: #{bilstm_forward.6} parent=0
    _
  %s9 = ssub.s32 1, %s7
  %s10 = scalar_select 0, %s9, %s7
  $region1: #{bilstm_forward.6} parent=0
    #allocation6 [shape = 'u8[65536]{0}', space=vmem, size = 0x10000, scoped, tag = 'input window, operand 0, single buffered']
    #allocation7 [shape = 'u8[65536]{0}', space=vmem, size = 0x10000, scoped, tag = 'input window, operand 1, single buffered']
    // Predicated region
    $region2: #{bilstm_forward.6} parent=1 // pred_check
      _
    $region3: #{bilstm_forward.6} parent=1 // pred_check_branch
      %12 = sbr.rel (0) target = $region5
    $region4: #{bilstm_forward.6} parent=1 // pred_region
      // Predicated region
      $region6: #{bilstm_forward.6} parent=4 // pred_check
        _
      $region7: #{bilstm_forward.6} parent=4 // pred_check_branch
        %14 = sbr.rel (0) target = $region9
      $region8: #{bilstm_forward.6} parent=4 // pred_region
        // Predicated region
        $region10: #{bilstm_forward.6} parent=8 // pred_check
          _
        $region11: #{bilstm_forward.6} parent=8 // pred_check_branch
          %16 = sbr.rel (0) target = $region13
        $region12: #{bilstm_forward.6} parent=8 // pred_region
          loop: start=0, step=1, limit=1
          $region14: #{bilstm_forward.6} parent=12 // loop_pre_header
            _
          $region15: #{bilstm_forward.6} parent=12 // loop_header
            %s18 = sphi 0, %s22
            %p19 = scmp.ge.s32.totalorder %s18, 1
            %s23 = sphi %s0, %s0
            %s24 = sphi [#allocation6], [#allocation6]
          $region16: #{bilstm_forward.6} parent=12 // loop_header_branch
            %21 = sbr.rel (%p19) target = $region20
          $region17: #{bilstm_forward.6} parent=12 // loop_body
            %v25 = vld [vmem:[%s23] sm:$0xff]
            %26 = vst [vmem:[%s24] sm:$0xff] %v25
            %v27 = vld [vmem:[%s23 + $0x8] sm:$0xff]
            %28 = vst [vmem:[%s24 + $0x8] sm:$0xff] %v27
            %v29 = vld [vmem:[%s23 + $0x20] sm:$0xff]
            %30 = vst [vmem:[%s24 + $0x10] sm:$0xff] %v29
            %v31 = vld [vmem:[%s23 + $0x28] sm:$0xff]
            %32 = vst [vmem:[%s24 + $0x18] sm:$0xff] %v31
            %v33 = vld [vmem:[%s23 + $0x40] sm:$0xff]
            %34 = vst [vmem:[%s24 + $0x20] sm:$0xff] %v33
            %v35 = vld [vmem:[%s23 + $0x48] sm:$0xff]
            %36 = vst [vmem:[%s24 + $0x28] sm:$0xff] %v35
            %v37 = vld [vmem:[%s23 + $0x60] sm:$0xff]
            %38 = vst [vmem:[%s24 + $0x30] sm:$0xff] %v37
            %v39 = vld [vmem:[%s23 + $0x68] sm:$0xff]
            %40 = vst [vmem:[%s24 + $0x38] sm:$0xff] %v39
            %v41 = vld [vmem:[%s23 + $0x80] sm:$0xff]
            %42 = vst [vmem:[%s24 + $0x40] sm:$0xff] %v41
            %v43 = vld [vmem:[%s23 + $0x88] sm:$0xff]
            %44 = vst [vmem:[%s24 + $0x48] sm:$0xff] %v43
            %v45 = vld [vmem:[%s23 + $0xa0] sm:$0xff]
            %46 = vst [vmem:[%s24 + $0x50] sm:$0xff] %v45
            %v47 = vld [vmem:[%s23 + $0xa8] sm:$0xff]
            %48 = vst [vmem:[%s24 + $0x58] sm:$0xff] %v47
            %v49 = vld [vmem:[%s23 + $0xc0] sm:$0xff]
            %50 = vst [vmem:[%s24 + $0x60] sm:$0xff] %v49
            %v51 = vld [vmem:[%s23 + $0xc8] sm:$0xff]
            %52 = vst [vmem:[%s24 + $0x68] sm:$0xff] %v51
            %v53 = vld [vmem:[%s23 + $0xe0] sm:$0xff]
            %54 = vst [vmem:[%s24 + $0x70] sm:$0xff] %v53
            %v55 = vld [vmem:[%s23 + $0xe8] sm:$0xff]
            %56 = vst [vmem:[%s24 + $0x78] sm:$0xff] %v55
          $region18: #{bilstm_forward.6} parent=12 // loop_footer
            %s22 = sadd.s32 1, %s18
          $region19: #{bilstm_forward.6} parent=12 // loop_footer_branch
            %17 = sbr.rel target = $region15
          $region20: #{bilstm_forward.6} parent=12 // loop_exit
            _
        $region13: #{bilstm_forward.6} parent=8 // pred_fallthru
          _
        // Predicated region
        $region21: #{bilstm_forward.6} parent=8 // pred_check
          _
        $region22: #{bilstm_forward.6} parent=8 // pred_check_branch
          %58 = sbr.rel target = $region24
        $region23: #{bilstm_forward.6} parent=8 // pred_region
          _
        $region24: #{bilstm_forward.6} parent=8 // pred_fallthru
          _
      $region9: #{bilstm_forward.6} parent=4 // pred_fallthru
        _
      %59 = vnop
    $region5: #{bilstm_forward.6} parent=1 // pred_fallthru
      _
    // Predicated region
    $region25: #{bilstm_forward.6} parent=1 // pred_check
      _
    $region26: #{bilstm_forward.6} parent=1 // pred_check_branch
      %61 = sbr.rel (0) target = $region28
    $region27: #{bilstm_forward.6} parent=1 // pred_region
      %s62 = ssub.s32 0, 0
      %s63 = smul.u32 8, %s62
      %s64 = smul.addr %s63, 8
      %s65 = sadd.s32 4, %s64
      %s66 = smul.addr %s65, 4
      %s67 = scalar_lea.vmem %s1, %s66
      // Predicated region
      $region29: #{bilstm_forward.6} parent=27 // pred_check
        _
      $region30: #{bilstm_forward.6} parent=27 // pred_check_branch
        %69 = sbr.rel (0) target = $region32
      $region31: #{bilstm_forward.6} parent=27 // pred_region
        // Predicated region
        $region33: #{bilstm_forward.6} parent=31 // pred_check
          _
        $region34: #{bilstm_forward.6} parent=31 // pred_check_branch
          %71 = sbr.rel (0) target = $region36
        $region35: #{bilstm_forward.6} parent=31 // pred_region
          loop: start=0, step=1, limit=1
          $region37: #{bilstm_forward.6} parent=35 // loop_pre_header
            _
          $region38: #{bilstm_forward.6} parent=35 // loop_header
            %s73 = sphi 0, %s77
            %p74 = scmp.ge.s32.totalorder %s73, 1
            %s78 = sphi %s67, %s67
            %s79 = sphi [#allocation7], [#allocation7]
          $region39: #{bilstm_forward.6} parent=35 // loop_header_branch
            %76 = sbr.rel (%p74) target = $region43
          $region40: #{bilstm_forward.6} parent=35 // loop_body
            %v80 = vld [vmem:[%s78] sm:$0xff]
            %81 = vst [vmem:[%s79] sm:$0xff] %v80
            %v82 = vld [vmem:[%s78 + $0x8] sm:$0xff]
            %83 = vst [vmem:[%s79 + $0x8] sm:$0xff] %v82
            %v84 = vld [vmem:[%s78 + $0x20] sm:$0xff]
            %85 = vst [vmem:[%s79 + $0x10] sm:$0xff] %v84
            %v86 = vld [vmem:[%s78 + $0x28] sm:$0xff]
            %87 = vst [vmem:[%s79 + $0x18] sm:$0xff] %v86
            %v88 = vld [vmem:[%s78 + $0x40] sm:$0xff]
            %89 = vst [vmem:[%s79 + $0x20] sm:$0xff] %v88
            %v90 = vld [vmem:[%s78 + $0x48] sm:$0xff]
            %91 = vst [vmem:[%s79 + $0x28] sm:$0xff] %v90
            %v92 = vld [vmem:[%s78 + $0x60] sm:$0xff]
            %93 = vst [vmem:[%s79 + $0x30] sm:$0xff] %v92
            %v94 = vld [vmem:[%s78 + $0x68] sm:$0xff]
            %95 = vst [vmem:[%s79 + $0x38] sm:$0xff] %v94
            %v96 = vld [vmem:[%s78 + $0x80] sm:$0xff]
            %97 = vst [vmem:[%s79 + $0x40] sm:$0xff] %v96
            %v98 = vld [vmem:[%s78 + $0x88] sm:$0xff]
            %99 = vst [vmem:[%s79 + $0x48] sm:$0xff] %v98
            %v100 = vld [vmem:[%s78 + $0xa0] sm:$0xff]
            %101 = vst [vmem:[%s79 + $0x50] sm:$0xff] %v100
            %v102 = vld [vmem:[%s78 + $0xa8] sm:$0xff]
            %103 = vst [vmem:[%s79 + $0x58] sm:$0xff] %v102
            %v104 = vld [vmem:[%s78 + $0xc0] sm:$0xff]
            %105 = vst [vmem:[%s79 + $0x60] sm:$0xff] %v104
            %v106 = vld [vmem:[%s78 + $0xc8] sm:$0xff]
            %107 = vst [vmem:[%s79 + $0x68] sm:$0xff] %v106
            %v108 = vld [vmem:[%s78 + $0xe0] sm:$0xff]
            %109 = vst [vmem:[%s79 + $0x70] sm:$0xff] %v108
            %v110 = vld [vmem:[%s78 + $0xe8] sm:$0xff]
            %111 = vst [vmem:[%s79 + $0x78] sm:$0xff] %v110
          $region41: #{bilstm_forward.6} parent=35 // loop_footer
            %s77 = sadd.s32 1, %s73
          $region42: #{bilstm_forward.6} parent=35 // loop_footer_branch
            %72 = sbr.rel target = $region38
          $region43: #{bilstm_forward.6} parent=35 // loop_exit
            _
        $region36: #{bilstm_forward.6} parent=31 // pred_fallthru
          _
        // Predicated region
        $region44: #{bilstm_forward.6} parent=31 // pred_check
          _
        $region45: #{bilstm_forward.6} parent=31 // pred_check_branch
          %113 = sbr.rel target = $region47
        $region46: #{bilstm_forward.6} parent=31 // pred_region
          _
        $region47: #{bilstm_forward.6} parent=31 // pred_fallthru
          _
      $region32: #{bilstm_forward.6} parent=27 // pred_fallthru
        _
      %114 = vnop
    $region28: #{bilstm_forward.6} parent=1 // pred_fallthru
      _
    // Predicated region
    $region48: #{bilstm_forward.6} parent=1 // pred_check
      _
    $region49: #{bilstm_forward.6} parent=1 // pred_check_branch
      %116 = sbr.rel (0) target = $region51
    $region50: #{bilstm_forward.6} parent=1 // pred_region
      _
    $region51: #{bilstm_forward.6} parent=1 // pred_fallthru
      _
    // Predicated region
    $region52: #{bilstm_forward.6} parent=1 // pred_check
      _
    $region53: #{bilstm_forward.6} parent=1 // pred_check_branch
      %118 = sbr.rel (0) target = $region55
    $region54: #{bilstm_forward.6} parent=1 // pred_region
      _
    $region55: #{bilstm_forward.6} parent=1 // pred_fallthru
      _
    // Predicated region
    $region56: #{bilstm_forward.6} parent=1 // pred_check
      _
    $region57: #{bilstm_forward.6} parent=1 // pred_check_branch
      %120 = sbr.rel (0) target = $region59
    $region58: #{bilstm_forward.6} parent=1 // pred_region
      _
    $region59: #{bilstm_forward.6} parent=1 // pred_fallthru
      _
    // Predicated region
    $region60: #{bilstm_forward.6} parent=1 // pred_check
      _
    $region61: #{bilstm_forward.6} parent=1 // pred_check_branch
      %122 = sbr.rel (0) target = $region63
    $region62: #{bilstm_forward.6} parent=1 // pred_region
      _
    $region63: #{bilstm_forward.6} parent=1 // pred_fallthru
      _
    %s123 = ssub.s32 0, 0
    %s124 = smul.u32 8, %s123
    %p125 = scmp.lt.s32.totalorder %s124, 7
    %s126 = scalar_select %p125, %s124, 7
    %s127 = smul.addr %s126, 4
    %s128 = scalar_lea.vmem %s5, %s127
    %s129 = ssub.s32 0, 0
    %s130 = smul.u32 8, %s129
    %s131 = ssub.s32 0, 0
    %s132 = smul.u32 8, %s131
    %p133 = scmp.lt.s32.totalorder %s132, 7
    %s134 = scalar_select %p133, %s132, 7
    %s135 = smul.addr %s134, 4
    %s136 = scalar_lea.vmem %s5, %s135
    %s137 = ssub.s32 0, 0
    %s138 = smul.u32 8, %s137
    %p140 = scmp.eq.s32.totalorder 0, 0
    // Predicated region
    $region64: #{bilstm_forward.6} parent=1 // pred_check
      %p141 = pneg %p140
    $region65: #{bilstm_forward.6} parent=1 // pred_check_branch
      %143 = sbr.rel (%p141) target = $region67
    $region66: #{bilstm_forward.6} parent=1 // pred_region
      %144 = vst [vmem:[#allocation2] sm:$0xff] 0.0
      %145 = vst [vmem:[#allocation3] sm:$0xff] 0.0
      %146 = vst [vmem:[#allocation4] sm:$0xff] 0.0
      %147 = vst [vmem:[#allocation5] sm:$0xff] 0.0
    $region67: #{bilstm_forward.6} parent=1 // pred_fallthru
      _
    %v148 = vld [vmem:[%s2] sm:$0xff]
    %v149 = vld [vmem:[%s2 + $0x8] sm:$0xff]
    %v150 = vld [vmem:[%s2 + $0x10] sm:$0xff]
    %v151 = vld [vmem:[%s2 + $0x18] sm:$0xff]
    %v152 = vld [vmem:[%s2 + $0x20] sm:$0xff]
    %v153 = vld [vmem:[%s2 + $0x28] sm:$0xff]
    %v154 = vld [vmem:[%s2 + $0x30] sm:$0xff]
    %v155 = vld [vmem:[%s2 + $0x38] sm:$0xff]
    %v156 = vld [vmem:[%s2 + $0x40] sm:$0xff]
    %v157 = vld [vmem:[%s2 + $0x48] sm:$0xff]
    %v158 = vld [vmem:[%s2 + $0x50] sm:$0xff]
    %v159 = vld [vmem:[%s2 + $0x58] sm:$0xff]
    %v160 = vld [vmem:[%s2 + $0x60] sm:$0xff]
    %v161 = vld [vmem:[%s2 + $0x68] sm:$0xff]
    %v162 = vld [vmem:[%s2 + $0x70] sm:$0xff]
    %v163 = vld [vmem:[%s2 + $0x78] sm:$0xff]
    %v164 = vld [vmem:[%s2 + $0x80] sm:$0xff]
    %v165 = vld [vmem:[%s2 + $0x88] sm:$0xff]
    %v166 = vld [vmem:[%s2 + $0x90] sm:$0xff]
    %v167 = vld [vmem:[%s2 + $0x98] sm:$0xff]
    %v168 = vld [vmem:[%s2 + $0xa0] sm:$0xff]
    %v169 = vld [vmem:[%s2 + $0xa8] sm:$0xff]
    %v170 = vld [vmem:[%s2 + $0xb0] sm:$0xff]
    %v171 = vld [vmem:[%s2 + $0xb8] sm:$0xff]
    %v172 = vld [vmem:[%s2 + $0xc0] sm:$0xff]
    %v173 = vld [vmem:[%s2 + $0xc8] sm:$0xff]
    %v174 = vld [vmem:[%s2 + $0xd0] sm:$0xff]
    %v175 = vld [vmem:[%s2 + $0xd8] sm:$0xff]
    %v176 = vld [vmem:[%s2 + $0xe0] sm:$0xff]
    %v177 = vld [vmem:[%s2 + $0xe8] sm:$0xff]
    %v178 = vld [vmem:[%s2 + $0xf0] sm:$0xff]
    %v179 = vld [vmem:[%s2 + $0xf8] sm:$0xff]
    %v180 = vld [vmem:[%s3] sm:$0xff]
    %v181 = vld [vmem:[%s3 + $0x8] sm:$0xff]
    %v182 = vld [vmem:[%s3 + $0x10] sm:$0xff]
    %v183 = vld [vmem:[%s3 + $0x18] sm:$0xff]
    %v184 = vld [vmem:[%s3 + $0x20] sm:$0xff]
    %v185 = vld [vmem:[%s3 + $0x28] sm:$0xff]
    %v186 = vld [vmem:[%s3 + $0x30] sm:$0xff]
    %v187 = vld [vmem:[%s3 + $0x38] sm:$0xff]
    %v188 = vld [vmem:[%s3 + $0x40] sm:$0xff]
    %v189 = vld [vmem:[%s3 + $0x48] sm:$0xff]
    %v190 = vld [vmem:[%s3 + $0x50] sm:$0xff]
    %v191 = vld [vmem:[%s3 + $0x58] sm:$0xff]
    %v192 = vld [vmem:[%s3 + $0x60] sm:$0xff]
    %v193 = vld [vmem:[%s3 + $0x68] sm:$0xff]
    %v194 = vld [vmem:[%s3 + $0x70] sm:$0xff]
    %v195 = vld [vmem:[%s3 + $0x78] sm:$0xff]
    %v196 = vld [vmem:[%s3 + $0x80] sm:$0xff]
    %v197 = vld [vmem:[%s3 + $0x88] sm:$0xff]
    %v198 = vld [vmem:[%s3 + $0x90] sm:$0xff]
    %v199 = vld [vmem:[%s3 + $0x98] sm:$0xff]
    %v200 = vld [vmem:[%s3 + $0xa0] sm:$0xff]
    %v201 = vld [vmem:[%s3 + $0xa8] sm:$0xff]
    %v202 = vld [vmem:[%s3 + $0xb0] sm:$0xff]
    %v203 = vld [vmem:[%s3 + $0xb8] sm:$0xff]
    %v204 = vld [vmem:[%s3 + $0xc0] sm:$0xff]
    %v205 = vld [vmem:[%s3 + $0xc8] sm:$0xff]
    %v206 = vld [vmem:[%s3 + $0xd0] sm:$0xff]
    %v207 = vld [vmem:[%s3 + $0xd8] sm:$0xff]
    %v208 = vld [vmem:[%s3 + $0xe0] sm:$0xff]
    %v209 = vld [vmem:[%s3 + $0xe8] sm:$0xff]
    %v210 = vld [vmem:[%s3 + $0xf0] sm:$0xff]
    %v211 = vld [vmem:[%s3 + $0xf8] sm:$0xff]
    %v212 = vld [vmem:[#allocation2] sm:$0xff]
    %v213 = vld [vmem:[#allocation3] sm:$0xff]
    %v214 = vld [vmem:[#allocation4] sm:$0xff]
    %v215 = vld [vmem:[#allocation5] sm:$0xff]
    %v216 = vld [vmem:[#allocation6] sm:$0xff]
    %v217 = vld [vmem:[#allocation6 + $0x8] sm:$0xff]
    %v218 = vunpack.c.l.bf16 %v216
    %v219 = vunpack.c.h.bf16 %v216
    %v220 = vunpack.c.l.bf16 %v217
    %v221 = vunpack.c.h.bf16 %v217
    %v222 = vpack.c.bf16 %v212, %v212
    %v255 = vunpack.c.l.b16 %v148
    %v256 = vunpack.c.h.b16 %v148
    %v257 = vunpack.c.l.b16 %v149
    %v258 = vunpack.c.h.b16 %v149
    %v259 = vunpack.c.l.b16 %v150
    %v260 = vunpack.c.h.b16 %v150
    %v261 = vunpack.c.l.b16 %v151
    %v262 = vunpack.c.h.b16 %v151
    %v263 = vunpack.c.l.b16 %v152
    %v264 = vunpack.c.h.b16 %v152
    %v265 = vunpack.c.l.b16 %v153
    %v266 = vunpack.c.h.b16 %v153
    %v267 = vunpack.c.l.b16 %v154
    %v268 = vunpack.c.h.b16 %v154
    %v269 = vunpack.c.l.b16 %v155
    %v270 = vunpack.c.h.b16 %v155
    %v271 = vunpack.c.l.b16 %v156
    %v272 = vunpack.c.h.b16 %v156
    %v273 = vunpack.c.l.b16 %v157
    %v274 = vunpack.c.h.b16 %v157
    %v275 = vunpack.c.l.b16 %v158
    %v276 = vunpack.c.h.b16 %v158
    %v277 = vunpack.c.l.b16 %v159
    %v278 = vunpack.c.h.b16 %v159
    %v279 = vunpack.c.l.b16 %v160
    %v280 = vunpack.c.h.b16 %v160
    %v281 = vunpack.c.l.b16 %v161
    %v282 = vunpack.c.h.b16 %v161
    %v283 = vunpack.c.l.b16 %v162
    %v284 = vunpack.c.h.b16 %v162
    %v285 = vunpack.c.l.b16 %v163
    %v286 = vunpack.c.h.b16 %v163
    %v287 = vunpack.c.l.b16 %v164
    %v288 = vunpack.c.h.b16 %v164
    %v289 = vunpack.c.l.b16 %v165
    %v290 = vunpack.c.h.b16 %v165
    %v291 = vunpack.c.l.b16 %v166
    %v292 = vunpack.c.h.b16 %v166
    %v293 = vunpack.c.l.b16 %v167
    %v294 = vunpack.c.h.b16 %v167
    %v295 = vunpack.c.l.b16 %v168
    %v296 = vunpack.c.h.b16 %v168
    %v297 = vunpack.c.l.b16 %v169
    %v298 = vunpack.c.h.b16 %v169
    %v299 = vunpack.c.l.b16 %v170
    %v300 = vunpack.c.h.b16 %v170
    %v301 = vunpack.c.l.b16 %v171
    %v302 = vunpack.c.h.b16 %v171
    %v303 = vunpack.c.l.b16 %v172
    %v304 = vunpack.c.h.b16 %v172
    %v305 = vunpack.c.l.b16 %v173
    %v306 = vunpack.c.h.b16 %v173
    %v307 = vunpack.c.l.b16 %v174
    %v308 = vunpack.c.h.b16 %v174
    %v309 = vunpack.c.l.b16 %v175
    %v310 = vunpack.c.h.b16 %v175
    %v311 = vunpack.c.l.b16 %v176
    %v312 = vunpack.c.h.b16 %v176
    %v313 = vunpack.c.l.b16 %v177
    %v314 = vunpack.c.h.b16 %v177
    %v315 = vunpack.c.l.b16 %v178
    %v316 = vunpack.c.h.b16 %v178
    %v317 = vunpack.c.l.b16 %v179
    %v318 = vunpack.c.h.b16 %v179
    %v319 = vpack.c.b16 %v259, %v255
    %v320 = vpack.c.b16 %v260, %v256
    %v321 = vpack.c.b16 %v261, %v257
    %v322 = vpack.c.b16 %v262, %v258
    %v323 = vpack.c.b16 %v267, %v263
    %v324 = vpack.c.b16 %v268, %v264
    %v325 = vpack.c.b16 %v269, %v265
    %v326 = vpack.c.b16 %v270, %v266
    %v327 = vpack.c.b16 %v275, %v271
    %v328 = vpack.c.b16 %v276, %v272
    %v329 = vpack.c.b16 %v277, %v273
    %v330 = vpack.c.b16 %v278, %v274
    %v331 = vpack.c.b16 %v283, %v279
    %v332 = vpack.c.b16 %v284, %v280
    %v333 = vpack.c.b16 %v285, %v281
    %v334 = vpack.c.b16 %v286, %v282
    %v335 = vpack.c.b16 %v291, %v287
    %v336 = vpack.c.b16 %v292, %v288
    %v337 = vpack.c.b16 %v293, %v289
    %v338 = vpack.c.b16 %v294, %v290
    %v339 = vpack.c.b16 %v299, %v295
    %v340 = vpack.c.b16 %v300, %v296
    %v341 = vpack.c.b16 %v301, %v297
    %v342 = vpack.c.b16 %v302, %v298
    %v343 = vpack.c.b16 %v307, %v303
    %v344 = vpack.c.b16 %v308, %v304
    %v345 = vpack.c.b16 %v309, %v305
    %v346 = vpack.c.b16 %v310, %v306
    %v347 = vpack.c.b16 %v315, %v311
    %v348 = vpack.c.b16 %v316, %v312
    %v349 = vpack.c.b16 %v317, %v313
    %v350 = vpack.c.b16 %v318, %v314
    %383 = vmatprep.subr.bf16.mxu0 %v348
    %384 = vmatpush1.bf16.msra.mxu0 %v347
    %385 = vmatprep.subr.bf16.mxu0 %v344
    %386 = vmatpush1.bf16.msra.mxu0 %v343
    %387 = vmatprep.subr.bf16.mxu0 %v340
    %388 = vmatpush1.bf16.msra.mxu0 %v339
    %389 = vmatprep.subr.bf16.mxu0 %v336
    %390 = vmatpush1.bf16.msra.mxu0 %v335
    %391 = vmatprep.subr.bf16.mxu0 %v332
    %392 = vmatpush1.bf16.msra.mxu0 %v331
    %393 = vmatprep.subr.bf16.mxu0 %v328
    %394 = vmatpush1.bf16.msra.mxu0 %v327
    %395 = vmatprep.subr.bf16.mxu0 %v324
    %396 = vmatpush1.bf16.msra.mxu0 %v323
    %397 = vmatprep.subr.bf16.mxu0 %v320
    %398 = vmatpush1.bf16.msra.mxu0 %v319
    %399 = vmatprep.subr.bf16.mxu0 0
    %400 = vmatpush2.bf16.msra.mxu0 0
    %401 = vmatprep.subr.bf16.mxu0 0
    %402 = vmatpush2.bf16.msra.mxu0 0
    %403 = vmatprep.subr.bf16.mxu0 0
    %404 = vmatpush2.bf16.msra.mxu0 0
    %405 = vmatprep.subr.bf16.mxu0 0
    %406 = vmatpush2.bf16.msra.mxu0 0
    %407 = vmatprep.subr.bf16.mxu0 0
    %408 = vmatpush2.bf16.msra.mxu0 0
    %409 = vmatprep.subr.bf16.mxu0 0
    %410 = vmatpush2.bf16.msra.mxu0 0
    %411 = vmatprep.subr.bf16.mxu0 0
    %412 = vmatpush2.bf16.msra.mxu0 0
    %413 = vmatprep.subr.bf16.mxu0 0
    %414 = vmatpush2.bf16.msra.mxu0 0
    %415 = vmatprep.mubr.bf16.mxu0 0
    %416 = vmatmul.mubr.bf16.gmra.mxu0 %v222
    %v417 = vpop.f32.mrf.mxu0
    %v418 = vadd.f32 0.0, %v417
    %v419 = vpop.f32.mrf.mxu0
    %v420 = vadd.f32 0.0, %v419
    %v421 = vpop.f32.mrf.mxu0
    %v422 = vpop.f32.mrf.mxu0
    %423 = vdwg.mxu0
    %424 = vmatprep.subr.bf16.mxu0 %v350
    %425 = vmatpush1.bf16.msra.mxu0 %v349
    %426 = vmatprep.subr.bf16.mxu0 %v346
    %427 = vmatpush1.bf16.msra.mxu0 %v345
    %428 = vmatprep.subr.bf16.mxu0 %v342
    %429 = vmatpush1.bf16.msra.mxu0 %v341
    %430 = vmatprep.subr.bf16.mxu0 %v338
    %431 = vmatpush1.bf16.msra.mxu0 %v337
    %432 = vmatprep.subr.bf16.mxu0 %v334
    %433 = vmatpush1.bf16.msra.mxu0 %v333
    %434 = vmatprep.subr.bf16.mxu0 %v330
    %435 = vmatpush1.bf16.msra.mxu0 %v329
    %436 = vmatprep.subr.bf16.mxu0 %v326
    %437 = vmatpush1.bf16.msra.mxu0 %v325
    %438 = vmatprep.subr.bf16.mxu0 %v322
    %439 = vmatpush1.bf16.msra.mxu0 %v321
    %440 = vmatprep.subr.bf16.mxu0 0
    %441 = vmatpush2.bf16.msra.mxu0 0
    %442 = vmatprep.subr.bf16.mxu0 0
    %443 = vmatpush2.bf16.msra.mxu0 0
    %444 = vmatprep.subr.bf16.mxu0 0
    %445 = vmatpush2.bf16.msra.mxu0 0
    %446 = vmatprep.subr.bf16.mxu0 0
    %447 = vmatpush2.bf16.msra.mxu0 0
    %448 = vmatprep.subr.bf16.mxu0 0
    %449 = vmatpush2.bf16.msra.mxu0 0
    %450 = vmatprep.subr.bf16.mxu0 0
    %451 = vmatpush2.bf16.msra.mxu0 0
    %452 = vmatprep.subr.bf16.mxu0 0
    %453 = vmatpush2.bf16.msra.mxu0 0
    %454 = vmatprep.subr.bf16.mxu0 0
    %455 = vmatpush2.bf16.msra.mxu0 0
    %456 = vmatprep.mubr.bf16.mxu0 0
    %457 = vmatmul.mubr.bf16.gmra.mxu0 %v222
    %v458 = vpop.f32.mrf.mxu0
    %v459 = vadd.f32 0.0, %v458
    %v460 = vpop.f32.mrf.mxu0
    %v461 = vadd.f32 0.0, %v460
    %v462 = vpop.f32.mrf.mxu0
    %v463 = vpop.f32.mrf.mxu0
    %464 = vdwg.mxu0
    %v465 = vadd.f32 %v218, %v418
    %v466 = vadd.f32 %v219, %v420
    %v467 = vadd.f32 %v220, %v459
    %v468 = vadd.f32 %v221, %v461
    %s469 = scalar_lea.vmem [#allocation7], 112
    %v470 = vld [vmem:[%s469] sm:$0xff]
    %v471 = vld [vmem:[%s469 + $0x8] sm:$0xff]
    %v472 = vunpack.c.l.bf16 %v470
    %v473 = vunpack.c.h.bf16 %v470
    %v474 = vunpack.c.l.bf16 %v471
    %v475 = vunpack.c.h.bf16 %v471
    %v476 = vpack.c.bf16 %v214, %v214
    %v509 = vunpack.c.l.b16 %v180
    %v510 = vunpack.c.h.b16 %v180
    %v511 = vunpack.c.l.b16 %v181
    %v512 = vunpack.c.h.b16 %v181
    %v513 = vunpack.c.l.b16 %v182
    %v514 = vunpack.c.h.b16 %v182
    %v515 = vunpack.c.l.b16 %v183
    %v516 = vunpack.c.h.b16 %v183
    %v517 = vunpack.c.l.b16 %v184
    %v518 = vunpack.c.h.b16 %v184
    %v519 = vunpack.c.l.b16 %v185
    %v520 = vunpack.c.h.b16 %v185
    %v521 = vunpack.c.l.b16 %v186
    %v522 = vunpack.c.h.b16 %v186
    %v523 = vunpack.c.l.b16 %v187
    %v524 = vunpack.c.h.b16 %v187
    %v525 = vunpack.c.l.b16 %v188
    %v526 = vunpack.c.h.b16 %v188
    %v527 = vunpack.c.l.b16 %v189
    %v528 = vunpack.c.h.b16 %v189
    %v529 = vunpack.c.l.b16 %v190
    %v530 = vunpack.c.h.b16 %v190
    %v531 = vunpack.c.l.b16 %v191
    %v532 = vunpack.c.h.b16 %v191
    %v533 = vunpack.c.l.b16 %v192
    %v534 = vunpack.c.h.b16 %v192
    %v535 = vunpack.c.l.b16 %v193
    %v536 = vunpack.c.h.b16 %v193
    %v537 = vunpack.c.l.b16 %v194
    %v538 = vunpack.c.h.b16 %v194
    %v539 = vunpack.c.l.b16 %v195
    %v540 = vunpack.c.h.b16 %v195
    %v541 = vunpack.c.l.b16 %v196
    %v542 = vunpack.c.h.b16 %v196
    %v543 = vunpack.c.l.b16 %v197
    %v544 = vunpack.c.h.b16 %v197
    %v545 = vunpack.c.l.b16 %v198
    %v546 = vunpack.c.h.b16 %v198
    %v547 = vunpack.c.l.b16 %v199
    %v548 = vunpack.c.h.b16 %v199
    %v549 = vunpack.c.l.b16 %v200
    %v550 = vunpack.c.h.b16 %v200
    %v551 = vunpack.c.l.b16 %v201
    %v552 = vunpack.c.h.b16 %v201
    %v553 = vunpack.c.l.b16 %v202
    %v554 = vunpack.c.h.b16 %v202
    %v555 = vunpack.c.l.b16 %v203
    %v556 = vunpack.c.h.b16 %v203
    %v557 = vunpack.c.l.b16 %v204
    %v558 = vunpack.c.h.b16 %v204
    %v559 = vunpack.c.l.b16 %v205
    %v560 = vunpack.c.h.b16 %v205
    %v561 = vunpack.c.l.b16 %v206
    %v562 = vunpack.c.h.b16 %v206
    %v563 = vunpack.c.l.b16 %v207
    %v564 = vunpack.c.h.b16 %v207
    %v565 = vunpack.c.l.b16 %v208
    %v566 = vunpack.c.h.b16 %v208
    %v567 = vunpack.c.l.b16 %v209
    %v568 = vunpack.c.h.b16 %v209
    %v569 = vunpack.c.l.b16 %v210
    %v570 = vunpack.c.h.b16 %v210
    %v571 = vunpack.c.l.b16 %v211
    %v572 = vunpack.c.h.b16 %v211
    %v573 = vpack.c.b16 %v513, %v509
    %v574 = vpack.c.b16 %v514, %v510
    %v575 = vpack.c.b16 %v515, %v511
    %v576 = vpack.c.b16 %v516, %v512
    %v577 = vpack.c.b16 %v521, %v517
    %v578 = vpack.c.b16 %v522, %v518
    %v579 = vpack.c.b16 %v523, %v519
    %v580 = vpack.c.b16 %v524, %v520
    %v581 = vpack.c.b16 %v529, %v525
    %v582 = vpack.c.b16 %v530, %v526
    %v583 = vpack.c.b16 %v531, %v527
    %v584 = vpack.c.b16 %v532, %v528
    %v585 = vpack.c.b16 %v537, %v533
    %v586 = vpack.c.b16 %v538, %v534
    %v587 = vpack.c.b16 %v539, %v535
    %v588 = vpack.c.b16 %v540, %v536
    %v589 = vpack.c.b16 %v545, %v541
    %v590 = vpack.c.b16 %v546, %v542
    %v591 = vpack.c.b16 %v547, %v543
    %v592 = vpack.c.b16 %v548, %v544
    %v593 = vpack.c.b16 %v553, %v549
    %v594 = vpack.c.b16 %v554, %v550
    %v595 = vpack.c.b16 %v555, %v551
    %v596 = vpack.c.b16 %v556, %v552
    %v597 = vpack.c.b16 %v561, %v557
    %v598 = vpack.c.b16 %v562, %v558
    %v599 = vpack.c.b16 %v563, %v559
    %v600 = vpack.c.b16 %v564, %v560
    %v601 = vpack.c.b16 %v569, %v565
    %v602 = vpack.c.b16 %v570, %v566
    %v603 = vpack.c.b16 %v571, %v567
    %v604 = vpack.c.b16 %v572, %v568
    %637 = vmatprep.subr.bf16.mxu0 %v602
    %638 = vmatpush1.bf16.msra.mxu0 %v601
    %639 = vmatprep.subr.bf16.mxu0 %v598
    %640 = vmatpush1.bf16.msra.mxu0 %v597
    %641 = vmatprep.subr.bf16.mxu0 %v594
    %642 = vmatpush1.bf16.msra.mxu0 %v593
    %643 = vmatprep.subr.bf16.mxu0 %v590
    %644 = vmatpush1.bf16.msra.mxu0 %v589
    %645 = vmatprep.subr.bf16.mxu0 %v586
    %646 = vmatpush1.bf16.msra.mxu0 %v585
    %647 = vmatprep.subr.bf16.mxu0 %v582
    %648 = vmatpush1.bf16.msra.mxu0 %v581
    %649 = vmatprep.subr.bf16.mxu0 %v578
    %650 = vmatpush1.bf16.msra.mxu0 %v577
    %651 = vmatprep.subr.bf16.mxu0 %v574
    %652 = vmatpush1.bf16.msra.mxu0 %v573
    %653 = vmatprep.subr.bf16.mxu0 0
    %654 = vmatpush2.bf16.msra.mxu0 0
    %655 = vmatprep.subr.bf16.mxu0 0
    %656 = vmatpush2.bf16.msra.mxu0 0
    %657 = vmatprep.subr.bf16.mxu0 0
    %658 = vmatpush2.bf16.msra.mxu0 0
    %659 = vmatprep.subr.bf16.mxu0 0
    %660 = vmatpush2.bf16.msra.mxu0 0
    %661 = vmatprep.subr.bf16.mxu0 0
    %662 = vmatpush2.bf16.msra.mxu0 0
    %663 = vmatprep.subr.bf16.mxu0 0
    %664 = vmatpush2.bf16.msra.mxu0 0
    %665 = vmatprep.subr.bf16.mxu0 0
    %666 = vmatpush2.bf16.msra.mxu0 0
    %667 = vmatprep.subr.bf16.mxu0 0
    %668 = vmatpush2.bf16.msra.mxu0 0
    %669 = vmatprep.mubr.bf16.mxu0 0
    %670 = vmatmul.mubr.bf16.gmra.mxu0 %v476
    %v671 = vpop.f32.mrf.mxu0
    %v672 = vadd.f32 0.0, %v671
    %v673 = vpop.f32.mrf.mxu0
    %v674 = vadd.f32 0.0, %v673
    %v675 = vpop.f32.mrf.mxu0
    %v676 = vpop.f32.mrf.mxu0
    %677 = vdwg.mxu0
    %678 = vmatprep.subr.bf16.mxu0 %v604
    %679 = vmatpush1.bf16.msra.mxu0 %v603
    %680 = vmatprep.subr.bf16.mxu0 %v600
    %681 = vmatpush1.bf16.msra.mxu0 %v599
    %682 = vmatprep.subr.bf16.mxu0 %v596
    %683 = vmatpush1.bf16.msra.mxu0 %v595
    %684 = vmatprep.subr.bf16.mxu0 %v592
    %685 = vmatpush1.bf16.msra.mxu0 %v591
    %686 = vmatprep.subr.bf16.mxu0 %v588
    %687 = vmatpush1.bf16.msra.mxu0 %v587
    %688 = vmatprep.subr.bf16.mxu0 %v584
    %689 = vmatpush1.bf16.msra.mxu0 %v583
    %690 = vmatprep.subr.bf16.mxu0 %v580
    %691 = vmatpush1.bf16.msra.mxu0 %v579
    %692 = vmatprep.subr.bf16.mxu0 %v576
    %693 = vmatpush1.bf16.msra.mxu0 %v575
    %694 = vmatprep.subr.bf16.mxu0 0
    %695 = vmatpush2.bf16.msra.mxu0 0
    %696 = vmatprep.subr.bf16.mxu0 0
    %697 = vmatpush2.bf16.msra.mxu0 0
    %698 = vmatprep.subr.bf16.mxu0 0
    %699 = vmatpush2.bf16.msra.mxu0 0
    %700 = vmatprep.subr.bf16.mxu0 0
    %701 = vmatpush2.bf16.msra.mxu0 0
    %702 = vmatprep.subr.bf16.mxu0 0
    %703 = vmatpush2.bf16.msra.mxu0 0
    %704 = vmatprep.subr.bf16.mxu0 0
    %705 = vmatpush2.bf16.msra.mxu0 0
    %706 = vmatprep.subr.bf16.mxu0 0
    %707 = vmatpush2.bf16.msra.mxu0 0
    %708 = vmatprep.subr.bf16.mxu0 0
    %709 = vmatpush2.bf16.msra.mxu0 0
    %710 = vmatprep.mubr.bf16.mxu0 0
    %711 = vmatmul.mubr.bf16.gmra.mxu0 %v476
    %v712 = vpop.f32.mrf.mxu0
    %v713 = vadd.f32 0.0, %v712
    %v714 = vpop.f32.mrf.mxu0
    %v715 = vadd.f32 0.0, %v714
    %v716 = vpop.f32.mrf.mxu0
    %v717 = vpop.f32.mrf.mxu0
    %718 = vdwg.mxu0
    %v719 = vadd.f32 %v472, %v672
    %v720 = vadd.f32 %v473, %v674
    %v721 = vadd.f32 %v474, %v713
    %v722 = vadd.f32 %v475, %v715
    %v723 = vxor.u32 %v465, 2147483648
    %v724 = vxor.u32 %v466, 2147483648
    %v725 = vxor.u32 %v467, 2147483648
    %v726 = vmul.f32 %v723, 1.442695
    %v727 = vpow.pop %v726
    %v728 = vmul.f32 %v724, 1.442695
    %v729 = vpow.pop %v728
    %v730 = vmul.f32 %v725, 1.442695
    %v731 = vpow.pop %v730
    %v732 = vadd.f32 %v727, 1.0
    %v733 = vadd.f32 %v729, 1.0
    %v734 = vadd.f32 %v731, 1.0
    %v735 = vrcp.pop %v732
    %v736 = vmul.f32 1.0, %v735
    %v737 = vrcp.pop %v733
    %v738 = vmul.f32 1.0, %v737
    %v739 = vrcp.pop %v734
    %v740 = vmul.f32 1.0, %v739
    %v741 = vtanh.pop %v468
    %v742 = vmul.f32 %v738, %v213
    %v743 = vmul.f32 %v736, %v741
    %v744 = vadd.f32 %v742, %v743
    %v745 = vtanh.pop %v744
    %v746 = vmul.f32 %v740, %v745
    %v747 = vxor.u32 %v719, 2147483648
    %v748 = vxor.u32 %v720, 2147483648
    %v749 = vxor.u32 %v721, 2147483648
    %v750 = vmul.f32 %v747, 1.442695
    %v751 = vpow.pop %v750
    %v752 = vmul.f32 %v748, 1.442695
    %v753 = vpow.pop %v752
    %v754 = vmul.f32 %v749, 1.442695
    %v755 = vpow.pop %v754
    %v756 = vadd.f32 %v751, 1.0
    %v757 = vadd.f32 %v753, 1.0
    %v758 = vadd.f32 %v755, 1.0
    %v759 = vrcp.pop %v756
    %v760 = vmul.f32 1.0, %v759
    %v761 = vrcp.pop %v757
    %v762 = vmul.f32 1.0, %v761
    %v763 = vrcp.pop %v758
    %v764 = vmul.f32 1.0, %v763
    %v765 = vtanh.pop %v722
    %v766 = vmul.f32 %v762, %v215
    %v767 = vmul.f32 %v760, %v765
    %v768 = vadd.f32 %v766, %v767
    %v769 = vtanh.pop %v768
    %v770 = vmul.f32 %v764, %v769
    %v771 = vpack.c.bf16 %v746, %v746
    %772 = vst [vmem:[%s4] sm:$0xf] %v771
    %v773 = vpack.c.bf16 %v770, %v770
    %s774 = scalar_lea.vmem %s136, 28
    %775 = vst [vmem:[%s774] sm:$0xf] %v773
    %s776 = scalar_lea.vmem [#allocation6], 16
    %v777 = vld [vmem:[%s776] sm:$0xff]
    %v778 = vld [vmem:[%s776 + $0x8] sm:$0xff]
    %v779 = vunpack.c.l.bf16 %v777
    %v780 = vunpack.c.h.bf16 %v777
    %v781 = vunpack.c.l.bf16 %v778
    %v782 = vunpack.c.h.bf16 %v778
    %783 = vmatprep.subr.bf16.mxu0 %v348
    %784 = vmatpush1.bf16.msra.mxu0 %v347
    %785 = vmatprep.subr.bf16.mxu0 %v344
    %786 = vmatpush1.bf16.msra.mxu0 %v343
    %787 = vmatprep.subr.bf16.mxu0 %v340
    %788 = vmatpush1.bf16.msra.mxu0 %v339
    %789 = vmatprep.subr.bf16.mxu0 %v336
    %790 = vmatpush1.bf16.msra.mxu0 %v335
    %791 = vmatprep.subr.bf16.mxu0 %v332
    %792 = vmatpush1.bf16.msra.mxu0 %v331
    %793 = vmatprep.subr.bf16.mxu0 %v328
    %794 = vmatpush1.bf16.msra.mxu0 %v327
    %795 = vmatprep.subr.bf16.mxu0 %v324
    %796 = vmatpush1.bf16.msra.mxu0 %v323
    %797 = vmatprep.subr.bf16.mxu0 %v320
    %798 = vmatpush1.bf16.msra.mxu0 %v319
    %799 = vmatprep.subr.bf16.mxu0 0
    %800 = vmatpush2.bf16.msra.mxu0 0
    %801 = vmatprep.subr.bf16.mxu0 0
    %802 = vmatpush2.bf16.msra.mxu0 0
    %803 = vmatprep.subr.bf16.mxu0 0
    %804 = vmatpush2.bf16.msra.mxu0 0
    %805 = vmatprep.subr.bf16.mxu0 0
    %806 = vmatpush2.bf16.msra.mxu0 0
    %807 = vmatprep.subr.bf16.mxu0 0
    %808 = vmatpush2.bf16.msra.mxu0 0
    %809 = vmatprep.subr.bf16.mxu0 0
    %810 = vmatpush2.bf16.msra.mxu0 0
    %811 = vmatprep.subr.bf16.mxu0 0
    %812 = vmatpush2.bf16.msra.mxu0 0
    %813 = vmatprep.subr.bf16.mxu0 0
    %814 = vmatpush2.bf16.msra.mxu0 0
    %815 = vmatprep.mubr.bf16.mxu0 0
    %816 = vmatmul.mubr.bf16.gmra.mxu0 %v771
    %v817 = vpop.f32.mrf.mxu0
    %v818 = vadd.f32 0.0, %v817
    %v819 = vpop.f32.mrf.mxu0
    %v820 = vadd.f32 0.0, %v819
    %v821 = vpop.f32.mrf.mxu0
    %v822 = vpop.f32.mrf.mxu0
    %823 = vdwg.mxu0
    %824 = vmatprep.subr.bf16.mxu0 %v350
    %825 = vmatpush1.bf16.msra.mxu0 %v349
    %826 = vmatprep.subr.bf16.mxu0 %v346
    %827 = vmatpush1.bf16.msra.mxu0 %v345
    %828 = vmatprep.subr.bf16.mxu0 %v342
    %829 = vmatpush1.bf16.msra.mxu0 %v341
    %830 = vmatprep.subr.bf16.mxu0 %v338
    %831 = vmatpush1.bf16.msra.mxu0 %v337
    %832 = vmatprep.subr.bf16.mxu0 %v334
    %833 = vmatpush1.bf16.msra.mxu0 %v333
    %834 = vmatprep.subr.bf16.mxu0 %v330
    %835 = vmatpush1.bf16.msra.mxu0 %v329
    %836 = vmatprep.subr.bf16.mxu0 %v326
    %837 = vmatpush1.bf16.msra.mxu0 %v325
    %838 = vmatprep.subr.bf16.mxu0 %v322
    %839 = vmatpush1.bf16.msra.mxu0 %v321
    %840 = vmatprep.subr.bf16.mxu0 0
    %841 = vmatpush2.bf16.msra.mxu0 0
    %842 = vmatprep.subr.bf16.mxu0 0
    %843 = vmatpush2.bf16.msra.mxu0 0
    %844 = vmatprep.subr.bf16.mxu0 0
    %845 = vmatpush2.bf16.msra.mxu0 0
    %846 = vmatprep.subr.bf16.mxu0 0
    %847 = vmatpush2.bf16.msra.mxu0 0
    %848 = vmatprep.subr.bf16.mxu0 0
    %849 = vmatpush2.bf16.msra.mxu0 0
    %850 = vmatprep.subr.bf16.mxu0 0
    %851 = vmatpush2.bf16.msra.mxu0 0
    %852 = vmatprep.subr.bf16.mxu0 0
    %853 = vmatpush2.bf16.msra.mxu0 0
    %854 = vmatprep.subr.bf16.mxu0 0
    %855 = vmatpush2.bf16.msra.mxu0 0
    %856 = vmatprep.mubr.bf16.mxu0 0
    %857 = vmatmul.mubr.bf16.gmra.mxu0 %v771
    %v858 = vpop.f32.mrf.mxu0
    %v859 = vadd.f32 0.0, %v858
    %v860 = vpop.f32.mrf.mxu0
    %v861 = vadd.f32 0.0, %v860
    %v862 = vpop.f32.mrf.mxu0
    %v863 = vpop.f32.mrf.mxu0
    %864 = vdwg.mxu0
    %v865 = vadd.f32 %v779, %v818
    %v866 = vadd.f32 %v780, %v820
    %v867 = vadd.f32 %v781, %v859
    %v868 = vadd.f32 %v782, %v861
    %s869 = scalar_lea.vmem [#allocation7], 96
    %v870 = vld [vmem:[%s869] sm:$0xff]
    %v871 = vld [vmem:[%s869 + $0x8] sm:$0xff]
    %v872 = vunpack.c.l.bf16 %v870
    %v873 = vunpack.c.h.bf16 %v870
    %v874 = vunpack.c.l.bf16 %v871
    %v875 = vunpack.c.h.bf16 %v871
    %876 = vmatprep.subr.bf16.mxu0 %v602
    %877 = vmatpush1.bf16.msra.mxu0 %v601
    %878 = vmatprep.subr.bf16.mxu0 %v598
    %879 = vmatpush1.bf16.msra.mxu0 %v597
    %880 = vmatprep.subr.bf16.mxu0 %v594
    %881 = vmatpush1.bf16.msra.mxu0 %v593
    %882 = vmatprep.subr.bf16.mxu0 %v590
    %883 = vmatpush1.bf16.msra.mxu0 %v589
    %884 = vmatprep.subr.bf16.mxu0 %v586
    %885 = vmatpush1.bf16.msra.mxu0 %v585
    %886 = vmatprep.subr.bf16.mxu0 %v582
    %887 = vmatpush1.bf16.msra.mxu0 %v581
    %888 = vmatprep.subr.bf16.mxu0 %v578
    %889 = vmatpush1.bf16.msra.mxu0 %v577
    %890 = vmatprep.subr.bf16.mxu0 %v574
    %891 = vmatpush1.bf16.msra.mxu0 %v573
    %892 = vmatprep.subr.bf16.mxu0 0
    %893 = vmatpush2.bf16.msra.mxu0 0
    %894 = vmatprep.subr.bf16.mxu0 0
    %895 = vmatpush2.bf16.msra.mxu0 0
    %896 = vmatprep.subr.bf16.mxu0 0
    %897 = vmatpush2.bf16.msra.mxu0 0
    %898 = vmatprep.subr.bf16.mxu0 0
    %899 = vmatpush2.bf16.msra.mxu0 0
    %900 = vmatprep.subr.bf16.mxu0 0
    %901 = vmatpush2.bf16.msra.mxu0 0
    %902 = vmatprep.subr.bf16.mxu0 0
    %903 = vmatpush2.bf16.msra.mxu0 0
    %904 = vmatprep.subr.bf16.mxu0 0
    %905 = vmatpush2.bf16.msra.mxu0 0
    %906 = vmatprep.subr.bf16.mxu0 0
    %907 = vmatpush2.bf16.msra.mxu0 0
    %908 = vmatprep.mubr.bf16.mxu0 0
    %909 = vmatmul.mubr.bf16.gmra.mxu0 %v773
    %v910 = vpop.f32.mrf.mxu0
    %v911 = vadd.f32 0.0, %v910
    %v912 = vpop.f32.mrf.mxu0
    %v913 = vadd.f32 0.0, %v912
    %v914 = vpop.f32.mrf.mxu0
    %v915 = vpop.f32.mrf.mxu0
    %916 = vdwg.mxu0
    %917 = vmatprep.subr.bf16.mxu0 %v604
    %918 = vmatpush1.bf16.msra.mxu0 %v603
    %919 = vmatprep.subr.bf16.mxu0 %v600
    %920 = vmatpush1.bf16.msra.mxu0 %v599
    %921 = vmatprep.subr.bf16.mxu0 %v596
    %922 = vmatpush1.bf16.msra.mxu0 %v595
    %923 = vmatprep.subr.bf16.mxu0 %v592
    %924 = vmatpush1.bf16.msra.mxu0 %v591
    %925 = vmatprep.subr.bf16.mxu0 %v588
    %926 = vmatpush1.bf16.msra.mxu0 %v587
    %927 = vmatprep.subr.bf16.mxu0 %v584
    %928 = vmatpush1.bf16.msra.mxu0 %v583
    %929 = vmatprep.subr.bf16.mxu0 %v580
    %930 = vmatpush1.bf16.msra.mxu0 %v579
    %931 = vmatprep.subr.bf16.mxu0 %v576
    %932 = vmatpush1.bf16.msra.mxu0 %v575
    %933 = vmatprep.subr.bf16.mxu0 0
    %934 = vmatpush2.bf16.msra.mxu0 0
    %935 = vmatprep.subr.bf16.mxu0 0
    %936 = vmatpush2.bf16.msra.mxu0 0
    %937 = vmatprep.subr.bf16.mxu0 0
    %938 = vmatpush2.bf16.msra.mxu0 0
    %939 = vmatprep.subr.bf16.mxu0 0
    %940 = vmatpush2.bf16.msra.mxu0 0
    %941 = vmatprep.subr.bf16.mxu0 0
    %942 = vmatpush2.bf16.msra.mxu0 0
    %943 = vmatprep.subr.bf16.mxu0 0
    %944 = vmatpush2.bf16.msra.mxu0 0
    %945 = vmatprep.subr.bf16.mxu0 0
    %946 = vmatpush2.bf16.msra.mxu0 0
    %947 = vmatprep.subr.bf16.mxu0 0
    %948 = vmatpush2.bf16.msra.mxu0 0
    %949 = vmatprep.mubr.bf16.mxu0 0
    %950 = vmatmul.mubr.bf16.gmra.mxu0 %v773
    %v951 = vpop.f32.mrf.mxu0
    %v952 = vadd.f32 0.0, %v951
    %v953 = vpop.f32.mrf.mxu0
    %v954 = vadd.f32 0.0, %v953
    %v955 = vpop.f32.mrf.mxu0
    %v956 = vpop.f32.mrf.mxu0
    %957 = vdwg.mxu0
    %v958 = vadd.f32 %v872, %v911
    %v959 = vadd.f32 %v873, %v913
    %v960 = vadd.f32 %v874, %v952
    %v961 = vadd.f32 %v875, %v954
    %v962 = vxor.u32 %v865, 2147483648
    %v963 = vxor.u32 %v866, 2147483648
    %v964 = vxor.u32 %v867, 2147483648
    %v965 = vmul.f32 %v962, 1.442695
    %v966 = vpow.pop %v965
    %v967 = vmul.f32 %v963, 1.442695
    %v968 = vpow.pop %v967
    %v969 = vmul.f32 %v964, 1.442695
    %v970 = vpow.pop %v969
    %v971 = vadd.f32 %v966, 1.0
    %v972 = vadd.f32 %v968, 1.0
    %v973 = vadd.f32 %v970, 1.0
    %v974 = vrcp.pop %v971
    %v975 = vmul.f32 1.0, %v974
    %v976 = vrcp.pop %v972
    %v977 = vmul.f32 1.0, %v976
    %v978 = vrcp.pop %v973
    %v979 = vmul.f32 1.0, %v978
    %v980 = vtanh.pop %v868
    %v981 = vmul.f32 %v977, %v744
    %v982 = vmul.f32 %v975, %v980
    %v983 = vadd.f32 %v981, %v982
    %v984 = vtanh.pop %v983
    %v985 = vmul.f32 %v979, %v984
    %v986 = vxor.u32 %v958, 2147483648
    %v987 = vxor.u32 %v959, 2147483648
    %v988 = vxor.u32 %v960, 2147483648
    %v989 = vmul.f32 %v986, 1.442695
    %v990 = vpow.pop %v989
    %v991 = vmul.f32 %v987, 1.442695
    %v992 = vpow.pop %v991
    %v993 = vmul.f32 %v988, 1.442695
    %v994 = vpow.pop %v993
    %v995 = vadd.f32 %v990, 1.0
    %v996 = vadd.f32 %v992, 1.0
    %v997 = vadd.f32 %v994, 1.0
    %v998 = vrcp.pop %v995
    %v999 = vmul.f32 1.0, %v998
    %v1000 = vrcp.pop %v996
    %v1001 = vmul.f32 1.0, %v1000
    %v1002 = vrcp.pop %v997
    %v1003 = vmul.f32 1.0, %v1002
    %v1004 = vtanh.pop %v961
    %v1005 = vmul.f32 %v1001, %v768
    %v1006 = vmul.f32 %v999, %v1004
    %v1007 = vadd.f32 %v1005, %v1006
    %v1008 = vtanh.pop %v1007
    %v1009 = vmul.f32 %v1003, %v1008
    %v1010 = vpack.c.bf16 %v985, %v985
    %s1011 = scalar_lea.vmem %s4, 4
    %1012 = vst [vmem:[%s1011] sm:$0xf] %v1010
    %v1013 = vpack.c.bf16 %v1009, %v1009
    %s1014 = scalar_lea.vmem %s136, 24
    %1015 = vst [vmem:[%s1014] sm:$0xf] %v1013
    %s1016 = scalar_lea.vmem [#allocation6], 32
    %v1017 = vld [vmem:[%s1016] sm:$0xff]
    %v1018 = vld [vmem:[%s1016 + $0x8] sm:$0xff]
    %v1019 = vunpack.c.l.bf16 %v1017
    %v1020 = vunpack.c.h.bf16 %v1017
    %v1021 = vunpack.c.l.bf16 %v1018
    %v1022 = vunpack.c.h.bf16 %v1018
    %1023 = vmatprep.subr.bf16.mxu0 %v348
    %1024 = vmatpush1.bf16.msra.mxu0 %v347
    %1025 = vmatprep.subr.bf16.mxu0 %v344
    %1026 = vmatpush1.bf16.msra.mxu0 %v343
    %1027 = vmatprep.subr.bf16.mxu0 %v340
    %1028 = vmatpush1.bf16.msra.mxu0 %v339
    %1029 = vmatprep.subr.bf16.mxu0 %v336
    %1030 = vmatpush1.bf16.msra.mxu0 %v335
    %1031 = vmatprep.subr.bf16.mxu0 %v332
    %1032 = vmatpush1.bf16.msra.mxu0 %v331
    %1033 = vmatprep.subr.bf16.mxu0 %v328
    %1034 = vmatpush1.bf16.msra.mxu0 %v327
    %1035 = vmatprep.subr.bf16.mxu0 %v324
    %1036 = vmatpush1.bf16.msra.mxu0 %v323
    %1037 = vmatprep.subr.bf16.mxu0 %v320
    %1038 = vmatpush1.bf16.msra.mxu0 %v319
    %1039 = vmatprep.subr.bf16.mxu0 0
    %1040 = vmatpush2.bf16.msra.mxu0 0
    %1041 = vmatprep.subr.bf16.mxu0 0
    %1042 = vmatpush2.bf16.msra.mxu0 0
    %1043 = vmatprep.subr.bf16.mxu0 0
    %1044 = vmatpush2.bf16.msra.mxu0 0
    %1045 = vmatprep.subr.bf16.mxu0 0
    %1046 = vmatpush2.bf16.msra.mxu0 0
    %1047 = vmatprep.subr.bf16.mxu0 0
    %1048 = vmatpush2.bf16.msra.mxu0 0
    %1049 = vmatprep.subr.bf16.mxu0 0
    %1050 = vmatpush2.bf16.msra.mxu0 0
    %1051 = vmatprep.subr.bf16.mxu0 0
    %1052 = vmatpush2.bf16.msra.mxu0 0
    %1053 = vmatprep.subr.bf16.mxu0 0
    %1054 = vmatpush2.bf16.msra.mxu0 0
    %1055 = vmatprep.mubr.bf16.mxu0 0
    %1056 = vmatmul.mubr.bf16.gmra.mxu0 %v1010
    %v1057 = vpop.f32.mrf.mxu0
    %v1058 = vadd.f32 0.0, %v1057
    %v1059 = vpop.f32.mrf.mxu0
    %v1060 = vadd.f32 0.0, %v1059
    %v1061 = vpop.f32.mrf.mxu0
    %v1062 = vpop.f32.mrf.mxu0
    %1063 = vdwg.mxu0
    %1064 = vmatprep.subr.bf16.mxu0 %v350
    %1065 = vmatpush1.bf16.msra.mxu0 %v349
    %1066 = vmatprep.subr.bf16.mxu0 %v346
    %1067 = vmatpush1.bf16.msra.mxu0 %v345
    %1068 = vmatprep.subr.bf16.mxu0 %v342
    %1069 = vmatpush1.bf16.msra.mxu0 %v341
    %1070 = vmatprep.subr.bf16.mxu0 %v338
    %1071 = vmatpush1.bf16.msra.mxu0 %v337
    %1072 = vmatprep.subr.bf16.mxu0 %v334
    %1073 = vmatpush1.bf16.msra.mxu0 %v333
    %1074 = vmatprep.subr.bf16.mxu0 %v330
    %1075 = vmatpush1.bf16.msra.mxu0 %v329
    %1076 = vmatprep.subr.bf16.mxu0 %v326
    %1077 = vmatpush1.bf16.msra.mxu0 %v325
    %1078 = vmatprep.subr.bf16.mxu0 %v322
    %1079 = vmatpush1.bf16.msra.mxu0 %v321
    %1080 = vmatprep.subr.bf16.mxu0 0
    %1081 = vmatpush2.bf16.msra.mxu0 0
    %1082 = vmatprep.subr.bf16.mxu0 0
    %1083 = vmatpush2.bf16.msra.mxu0 0
    %1084 = vmatprep.subr.bf16.mxu0 0
    %1085 = vmatpush2.bf16.msra.mxu0 0
    %1086 = vmatprep.subr.bf16.mxu0 0
    %1087 = vmatpush2.bf16.msra.mxu0 0
    %1088 = vmatprep.subr.bf16.mxu0 0
    %1089 = vmatpush2.bf16.msra.mxu0 0
    %1090 = vmatprep.subr.bf16.mxu0 0
    %1091 = vmatpush2.bf16.msra.mxu0 0
    %1092 = vmatprep.subr.bf16.mxu0 0
    %1093 = vmatpush2.bf16.msra.mxu0 0
    %1094 = vmatprep.subr.bf16.mxu0 0
    %1095 = vmatpush2.bf16.msra.mxu0 0
    %1096 = vmatprep.mubr.bf16.mxu0 0
    %1097 = vmatmul.mubr.bf16.gmra.mxu0 %v1010
    %v1098 = vpop.f32.mrf.mxu0
    %v1099 = vadd.f32 0.0, %v1098
    %v1100 = vpop.f32.mrf.mxu0
    %v1101 = vadd.f32 0.0, %v1100
    %v1102 = vpop.f32.mrf.mxu0
    %v1103 = vpop.f32.mrf.mxu0
    %1104 = vdwg.mxu0
    %v1105 = vadd.f32 %v1019, %v1058
    %v1106 = vadd.f32 %v1020, %v1060
    %v1107 = vadd.f32 %v1021, %v1099
    %v1108 = vadd.f32 %v1022, %v1101
    %s1109 = scalar_lea.vmem [#allocation7], 80
    %v1110 = vld [vmem:[%s1109] sm:$0xff]
    %v1111 = vld [vmem:[%s1109 + $0x8] sm:$0xff]
    %v1112 = vunpack.c.l.bf16 %v1110
    %v1113 = vunpack.c.h.bf16 %v1110
    %v1114 = vunpack.c.l.bf16 %v1111
    %v1115 = vunpack.c.h.bf16 %v1111
    %1116 = vmatprep.subr.bf16.mxu0 %v602
    %1117 = vmatpush1.bf16.msra.mxu0 %v601
    %1118 = vmatprep.subr.bf16.mxu0 %v598
    %1119 = vmatpush1.bf16.msra.mxu0 %v597
    %1120 = vmatprep.subr.bf16.mxu0 %v594
    %1121 = vmatpush1.bf16.msra.mxu0 %v593
    %1122 = vmatprep.subr.bf16.mxu0 %v590
    %1123 = vmatpush1.bf16.msra.mxu0 %v589
    %1124 = vmatprep.subr.bf16.mxu0 %v586
    %1125 = vmatpush1.bf16.msra.mxu0 %v585
    %1126 = vmatprep.subr.bf16.mxu0 %v582
    %1127 = vmatpush1.bf16.msra.mxu0 %v581
    %1128 = vmatprep.subr.bf16.mxu0 %v578
    %1129 = vmatpush1.bf16.msra.mxu0 %v577
    %1130 = vmatprep.subr.bf16.mxu0 %v574
    %1131 = vmatpush1.bf16.msra.mxu0 %v573
    %1132 = vmatprep.subr.bf16.mxu0 0
    %1133 = vmatpush2.bf16.msra.mxu0 0
    %1134 = vmatprep.subr.bf16.mxu0 0
    %1135 = vmatpush2.bf16.msra.mxu0 0
    %1136 = vmatprep.subr.bf16.mxu0 0
    %1137 = vmatpush2.bf16.msra.mxu0 0
    %1138 = vmatprep.subr.bf16.mxu0 0
    %1139 = vmatpush2.bf16.msra.mxu0 0
    %1140 = vmatprep.subr.bf16.mxu0 0
    %1141 = vmatpush2.bf16.msra.mxu0 0
    %1142 = vmatprep.subr.bf16.mxu0 0
    %1143 = vmatpush2.bf16.msra.mxu0 0
    %1144 = vmatprep.subr.bf16.mxu0 0
    %1145 = vmatpush2.bf16.msra.mxu0 0
    %1146 = vmatprep.subr.bf16.mxu0 0
    %1147 = vmatpush2.bf16.msra.mxu0 0
    %1148 = vmatprep.mubr.bf16.mxu0 0
    %1149 = vmatmul.mubr.bf16.gmra.mxu0 %v1013
    %v1150 = vpop.f32.mrf.mxu0
    %v1151 = vadd.f32 0.0, %v1150
    %v1152 = vpop.f32.mrf.mxu0
    %v1153 = vadd.f32 0.0, %v1152
    %v1154 = vpop.f32.mrf.mxu0
    %v1155 = vpop.f32.mrf.mxu0
    %1156 = vdwg.mxu0
    %1157 = vmatprep.subr.bf16.mxu0 %v604
    %1158 = vmatpush1.bf16.msra.mxu0 %v603
    %1159 = vmatprep.subr.bf16.mxu0 %v600
    %1160 = vmatpush1.bf16.msra.mxu0 %v599
    %1161 = vmatprep.subr.bf16.mxu0 %v596
    %1162 = vmatpush1.bf16.msra.mxu0 %v595
    %1163 = vmatprep.subr.bf16.mxu0 %v592
    %1164 = vmatpush1.bf16.msra.mxu0 %v591
    %1165 = vmatprep.subr.bf16.mxu0 %v588
    %1166 = vmatpush1.bf16.msra.mxu0 %v587
    %1167 = vmatprep.subr.bf16.mxu0 %v584
    %1168 = vmatpush1.bf16.msra.mxu0 %v583
    %1169 = vmatprep.subr.bf16.mxu0 %v580
    %1170 = vmatpush1.bf16.msra.mxu0 %v579
    %1171 = vmatprep.subr.bf16.mxu0 %v576
    %1172 = vmatpush1.bf16.msra.mxu0 %v575
    %1173 = vmatprep.subr.bf16.mxu0 0
    %1174 = vmatpush2.bf16.msra.mxu0 0
    %1175 = vmatprep.subr.bf16.mxu0 0
    %1176 = vmatpush2.bf16.msra.mxu0 0
    %1177 = vmatprep.subr.bf16.mxu0 0
    %1178 = vmatpush2.bf16.msra.mxu0 0
    %1179 = vmatprep.subr.bf16.mxu0 0
    %1180 = vmatpush2.bf16.msra.mxu0 0
    %1181 = vmatprep.subr.bf16.mxu0 0
    %1182 = vmatpush2.bf16.msra.mxu0 0
    %1183 = vmatprep.subr.bf16.mxu0 0
    %1184 = vmatpush2.bf16.msra.mxu0 0
    %1185 = vmatprep.subr.bf16.mxu0 0
    %1186 = vmatpush2.bf16.msra.mxu0 0
    %1187 = vmatprep.subr.bf16.mxu0 0
    %1188 = vmatpush2.bf16.msra.mxu0 0
    %1189 = vmatprep.mubr.bf16.mxu0 0
    %1190 = vmatmul.mubr.bf16.gmra.mxu0 %v1013
    %v1191 = vpop.f32.mrf.mxu0
    %v1192 = vadd.f32 0.0, %v1191
    %v1193 = vpop.f32.mrf.mxu0
    %v1194 = vadd.f32 0.0, %v1193
    %v1195 = vpop.f32.mrf.mxu0
    %v1196 = vpop.f32.mrf.mxu0
    %1197 = vdwg.mxu0
    %v1198 = vadd.f32 %v1112, %v1151
    %v1199 = vadd.f32 %v1113, %v1153
    %v1200 = vadd.f32 %v1114, %v1192
    %v1201 = vadd.f32 %v1115, %v1194
    %v1202 = vxor.u32 %v1105, 2147483648
    %v1203 = vxor.u32 %v1106, 2147483648
    %v1204 = vxor.u32 %v1107, 2147483648
    %v1205 = vmul.f32 %v1202, 1.442695
    %v1206 = vpow.pop %v1205
    %v1207 = vmul.f32 %v1203, 1.442695
    %v1208 = vpow.pop %v1207
    %v1209 = vmul.f32 %v1204, 1.442695
    %v1210 = vpow.pop %v1209
    %v1211 = vadd.f32 %v1206, 1.0
    %v1212 = vadd.f32 %v1208, 1.0
    %v1213 = vadd.f32 %v1210, 1.0
    %v1214 = vrcp.pop %v1211
    %v1215 = vmul.f32 1.0, %v1214
    %v1216 = vrcp.pop %v1212
    %v1217 = vmul.f32 1.0, %v1216
    %v1218 = vrcp.pop %v1213
    %v1219 = vmul.f32 1.0, %v1218
    %v1220 = vtanh.pop %v1108
    %v1221 = vmul.f32 %v1217, %v983
    %v1222 = vmul.f32 %v1215, %v1220
    %v1223 = vadd.f32 %v1221, %v1222
    %v1224 = vtanh.pop %v1223
    %v1225 = vmul.f32 %v1219, %v1224
    %v1226 = vxor.u32 %v1198, 2147483648
    %v1227 = vxor.u32 %v1199, 2147483648
    %v1228 = vxor.u32 %v1200, 2147483648
    %v1229 = vmul.f32 %v1226, 1.442695
    %v1230 = vpow.pop %v1229
    %v1231 = vmul.f32 %v1227, 1.442695
    %v1232 = vpow.pop %v1231
    %v1233 = vmul.f32 %v1228, 1.442695
    %v1234 = vpow.pop %v1233
    %v1235 = vadd.f32 %v1230, 1.0
    %v1236 = vadd.f32 %v1232, 1.0
    %v1237 = vadd.f32 %v1234, 1.0
    %v1238 = vrcp.pop %v1235
    %v1239 = vmul.f32 1.0, %v1238
    %v1240 = vrcp.pop %v1236
    %v1241 = vmul.f32 1.0, %v1240
    %v1242 = vrcp.pop %v1237
    %v1243 = vmul.f32 1.0, %v1242
    %v1244 = vtanh.pop %v1201
    %v1245 = vmul.f32 %v1241, %v1007
    %v1246 = vmul.f32 %v1239, %v1244
    %v1247 = vadd.f32 %v1245, %v1246
    %v1248 = vtanh.pop %v1247
    %v1249 = vmul.f32 %v1243, %v1248
    %v1250 = vpack.c.bf16 %v1225, %v1225
    %s1251 = scalar_lea.vmem %s4, 8
    %1252 = vst [vmem:[%s1251] sm:$0xf] %v1250
    %v1253 = vpack.c.bf16 %v1249, %v1249
    %s1254 = scalar_lea.vmem %s136, 20
    %1255 = vst [vmem:[%s1254] sm:$0xf] %v1253
    %s1256 = scalar_lea.vmem [#allocation6], 48
    %v1257 = vld [vmem:[%s1256] sm:$0xff]
    %v1258 = vld [vmem:[%s1256 + $0x8] sm:$0xff]
    %v1259 = vunpack.c.l.bf16 %v1257
    %v1260 = vunpack.c.h.bf16 %v1257
    %v1261 = vunpack.c.l.bf16 %v1258
    %v1262 = vunpack.c.h.bf16 %v1258
    %1263 = vmatprep.subr.bf16.mxu0 %v348
    %1264 = vmatpush1.bf16.msra.mxu0 %v347
    %1265 = vmatprep.subr.bf16.mxu0 %v344
    %1266 = vmatpush1.bf16.msra.mxu0 %v343
    %1267 = vmatprep.subr.bf16.mxu0 %v340
    %1268 = vmatpush1.bf16.msra.mxu0 %v339
    %1269 = vmatprep.subr.bf16.mxu0 %v336
    %1270 = vmatpush1.bf16.msra.mxu0 %v335
    %1271 = vmatprep.subr.bf16.mxu0 %v332
    %1272 = vmatpush1.bf16.msra.mxu0 %v331
    %1273 = vmatprep.subr.bf16.mxu0 %v328
    %1274 = vmatpush1.bf16.msra.mxu0 %v327
    %1275 = vmatprep.subr.bf16.mxu0 %v324
    %1276 = vmatpush1.bf16.msra.mxu0 %v323
    %1277 = vmatprep.subr.bf16.mxu0 %v320
    %1278 = vmatpush1.bf16.msra.mxu0 %v319
    %1279 = vmatprep.subr.bf16.mxu0 0
    %1280 = vmatpush2.bf16.msra.mxu0 0
    %1281 = vmatprep.subr.bf16.mxu0 0
    %1282 = vmatpush2.bf16.msra.mxu0 0
    %1283 = vmatprep.subr.bf16.mxu0 0
    %1284 = vmatpush2.bf16.msra.mxu0 0
    %1285 = vmatprep.subr.bf16.mxu0 0
    %1286 = vmatpush2.bf16.msra.mxu0 0
    %1287 = vmatprep.subr.bf16.mxu0 0
    %1288 = vmatpush2.bf16.msra.mxu0 0
    %1289 = vmatprep.subr.bf16.mxu0 0
    %1290 = vmatpush2.bf16.msra.mxu0 0
    %1291 = vmatprep.subr.bf16.mxu0 0
    %1292 = vmatpush2.bf16.msra.mxu0 0
    %1293 = vmatprep.subr.bf16.mxu0 0
    %1294 = vmatpush2.bf16.msra.mxu0 0
    %1295 = vmatprep.mubr.bf16.mxu0 0
    %1296 = vmatmul.mubr.bf16.gmra.mxu0 %v1250
    %v1297 = vpop.f32.mrf.mxu0
    %v1298 = vadd.f32 0.0, %v1297
    %v1299 = vpop.f32.mrf.mxu0
    %v1300 = vadd.f32 0.0, %v1299
    %v1301 = vpop.f32.mrf.mxu0
    %v1302 = vpop.f32.mrf.mxu0
    %1303 = vdwg.mxu0
    %1304 = vmatprep.subr.bf16.mxu0 %v350
    %1305 = vmatpush1.bf16.msra.mxu0 %v349
    %1306 = vmatprep.subr.bf16.mxu0 %v346
    %1307 = vmatpush1.bf16.msra.mxu0 %v345
    %1308 = vmatprep.subr.bf16.mxu0 %v342
    %1309 = vmatpush1.bf16.msra.mxu0 %v341
    %1310 = vmatprep.subr.bf16.mxu0 %v338
    %1311 = vmatpush1.bf16.msra.mxu0 %v337
    %1312 = vmatprep.subr.bf16.mxu0 %v334
    %1313 = vmatpush1.bf16.msra.mxu0 %v333
    %1314 = vmatprep.subr.bf16.mxu0 %v330
    %1315 = vmatpush1.bf16.msra.mxu0 %v329
    %1316 = vmatprep.subr.bf16.mxu0 %v326
    %1317 = vmatpush1.bf16.msra.mxu0 %v325
    %1318 = vmatprep.subr.bf16.mxu0 %v322
    %1319 = vmatpush1.bf16.msra.mxu0 %v321
    %1320 = vmatprep.subr.bf16.mxu0 0
    %1321 = vmatpush2.bf16.msra.mxu0 0
    %1322 = vmatprep.subr.bf16.mxu0 0
    %1323 = vmatpush2.bf16.msra.mxu0 0
    %1324 = vmatprep.subr.bf16.mxu0 0
    %1325 = vmatpush2.bf16.msra.mxu0 0
    %1326 = vmatprep.subr.bf16.mxu0 0
    %1327 = vmatpush2.bf16.msra.mxu0 0
    %1328 = vmatprep.subr.bf16.mxu0 0
    %1329 = vmatpush2.bf16.msra.mxu0 0
    %1330 = vmatprep.subr.bf16.mxu0 0
    %1331 = vmatpush2.bf16.msra.mxu0 0
    %1332 = vmatprep.subr.bf16.mxu0 0
    %1333 = vmatpush2.bf16.msra.mxu0 0
    %1334 = vmatprep.subr.bf16.mxu0 0
    %1335 = vmatpush2.bf16.msra.mxu0 0
    %1336 = vmatprep.mubr.bf16.mxu0 0
    %1337 = vmatmul.mubr.bf16.gmra.mxu0 %v1250
    %v1338 = vpop.f32.mrf.mxu0
    %v1339 = vadd.f32 0.0, %v1338
    %v1340 = vpop.f32.mrf.mxu0
    %v1341 = vadd.f32 0.0, %v1340
    %v1342 = vpop.f32.mrf.mxu0
    %v1343 = vpop.f32.mrf.mxu0
    %1344 = vdwg.mxu0
    %v1345 = vadd.f32 %v1259, %v1298
    %v1346 = vadd.f32 %v1260, %v1300
    %v1347 = vadd.f32 %v1261, %v1339
    %v1348 = vadd.f32 %v1262, %v1341
    %s1349 = scalar_lea.vmem [#allocation7], 64
    %v1350 = vld [vmem:[%s1349] sm:$0xff]
    %v1351 = vld [vmem:[%s1349 + $0x8] sm:$0xff]
    %v1352 = vunpack.c.l.bf16 %v1350
    %v1353 = vunpack.c.h.bf16 %v1350
    %v1354 = vunpack.c.l.bf16 %v1351
    %v1355 = vunpack.c.h.bf16 %v1351
    %1356 = vmatprep.subr.bf16.mxu0 %v602
    %1357 = vmatpush1.bf16.msra.mxu0 %v601
    %1358 = vmatprep.subr.bf16.mxu0 %v598
    %1359 = vmatpush1.bf16.msra.mxu0 %v597
    %1360 = vmatprep.subr.bf16.mxu0 %v594
    %1361 = vmatpush1.bf16.msra.mxu0 %v593
    %1362 = vmatprep.subr.bf16.mxu0 %v590
    %1363 = vmatpush1.bf16.msra.mxu0 %v589
    %1364 = vmatprep.subr.bf16.mxu0 %v586
    %1365 = vmatpush1.bf16.msra.mxu0 %v585
    %1366 = vmatprep.subr.bf16.mxu0 %v582
    %1367 = vmatpush1.bf16.msra.mxu0 %v581
    %1368 = vmatprep.subr.bf16.mxu0 %v578
    %1369 = vmatpush1.bf16.msra.mxu0 %v577
    %1370 = vmatprep.subr.bf16.mxu0 %v574
    %1371 = vmatpush1.bf16.msra.mxu0 %v573
    %1372 = vmatprep.subr.bf16.mxu0 0
    %1373 = vmatpush2.bf16.msra.mxu0 0
    %1374 = vmatprep.subr.bf16.mxu0 0
    %1375 = vmatpush2.bf16.msra.mxu0 0
    %1376 = vmatprep.subr.bf16.mxu0 0
    %1377 = vmatpush2.bf16.msra.mxu0 0
    %1378 = vmatprep.subr.bf16.mxu0 0
    %1379 = vmatpush2.bf16.msra.mxu0 0
    %1380 = vmatprep.subr.bf16.mxu0 0
    %1381 = vmatpush2.bf16.msra.mxu0 0
    %1382 = vmatprep.subr.bf16.mxu0 0
    %1383 = vmatpush2.bf16.msra.mxu0 0
    %1384 = vmatprep.subr.bf16.mxu0 0
    %1385 = vmatpush2.bf16.msra.mxu0 0
    %1386 = vmatprep.subr.bf16.mxu0 0
    %1387 = vmatpush2.bf16.msra.mxu0 0
    %1388 = vmatprep.mubr.bf16.mxu0 0
    %1389 = vmatmul.mubr.bf16.gmra.mxu0 %v1253
    %v1390 = vpop.f32.mrf.mxu0
    %v1391 = vadd.f32 0.0, %v1390
    %v1392 = vpop.f32.mrf.mxu0
    %v1393 = vadd.f32 0.0, %v1392
    %v1394 = vpop.f32.mrf.mxu0
    %v1395 = vpop.f32.mrf.mxu0
    %1396 = vdwg.mxu0
    %1397 = vmatprep.subr.bf16.mxu0 %v604
    %1398 = vmatpush1.bf16.msra.mxu0 %v603
    %1399 = vmatprep.subr.bf16.mxu0 %v600
    %1400 = vmatpush1.bf16.msra.mxu0 %v599
    %1401 = vmatprep.subr.bf16.mxu0 %v596
    %1402 = vmatpush1.bf16.msra.mxu0 %v595
    %1403 = vmatprep.subr.bf16.mxu0 %v592
    %1404 = vmatpush1.bf16.msra.mxu0 %v591
    %1405 = vmatprep.subr.bf16.mxu0 %v588
    %1406 = vmatpush1.bf16.msra.mxu0 %v587
    %1407 = vmatprep.subr.bf16.mxu0 %v584
    %1408 = vmatpush1.bf16.msra.mxu0 %v583
    %1409 = vmatprep.subr.bf16.mxu0 %v580
    %1410 = vmatpush1.bf16.msra.mxu0 %v579
    %1411 = vmatprep.subr.bf16.mxu0 %v576
    %1412 = vmatpush1.bf16.msra.mxu0 %v575
    %1413 = vmatprep.subr.bf16.mxu0 0
    %1414 = vmatpush2.bf16.msra.mxu0 0
    %1415 = vmatprep.subr.bf16.mxu0 0
    %1416 = vmatpush2.bf16.msra.mxu0 0
    %1417 = vmatprep.subr.bf16.mxu0 0
    %1418 = vmatpush2.bf16.msra.mxu0 0
    %1419 = vmatprep.subr.bf16.mxu0 0
    %1420 = vmatpush2.bf16.msra.mxu0 0
    %1421 = vmatprep.subr.bf16.mxu0 0
    %1422 = vmatpush2.bf16.msra.mxu0 0
    %1423 = vmatprep.subr.bf16.mxu0 0
    %1424 = vmatpush2.bf16.msra.mxu0 0
    %1425 = vmatprep.subr.bf16.mxu0 0
    %1426 = vmatpush2.bf16.msra.mxu0 0
    %1427 = vmatprep.subr.bf16.mxu0 0
    %1428 = vmatpush2.bf16.msra.mxu0 0
    %1429 = vmatprep.mubr.bf16.mxu0 0
    %1430 = vmatmul.mubr.bf16.gmra.mxu0 %v1253
    %v1431 = vpop.f32.mrf.mxu0
    %v1432 = vadd.f32 0.0, %v1431
    %v1433 = vpop.f32.mrf.mxu0
    %v1434 = vadd.f32 0.0, %v1433
    %v1435 = vpop.f32.mrf.mxu0
    %v1436 = vpop.f32.mrf.mxu0
    %1437 = vdwg.mxu0
    %v1438 = vadd.f32 %v1352, %v1391
    %v1439 = vadd.f32 %v1353, %v1393
    %v1440 = vadd.f32 %v1354, %v1432
    %v1441 = vadd.f32 %v1355, %v1434
    %v1442 = vxor.u32 %v1345, 2147483648
    %v1443 = vxor.u32 %v1346, 2147483648
    %v1444 = vxor.u32 %v1347, 2147483648
    %v1445 = vmul.f32 %v1442, 1.442695
    %v1446 = vpow.pop %v1445
    %v1447 = vmul.f32 %v1443, 1.442695
    %v1448 = vpow.pop %v1447
    %v1449 = vmul.f32 %v1444, 1.442695
    %v1450 = vpow.pop %v1449
    %v1451 = vadd.f32 %v1446, 1.0
    %v1452 = vadd.f32 %v1448, 1.0
    %v1453 = vadd.f32 %v1450, 1.0
    %v1454 = vrcp.pop %v1451
    %v1455 = vmul.f32 1.0, %v1454
    %v1456 = vrcp.pop %v1452
    %v1457 = vmul.f32 1.0, %v1456
    %v1458 = vrcp.pop %v1453
    %v1459 = vmul.f32 1.0, %v1458
    %v1460 = vtanh.pop %v1348
    %v1461 = vmul.f32 %v1457, %v1223
    %v1462 = vmul.f32 %v1455, %v1460
    %v1463 = vadd.f32 %v1461, %v1462
    %v1464 = vtanh.pop %v1463
    %v1465 = vmul.f32 %v1459, %v1464
    %v1466 = vxor.u32 %v1438, 2147483648
    %v1467 = vxor.u32 %v1439, 2147483648
    %v1468 = vxor.u32 %v1440, 2147483648
    %v1469 = vmul.f32 %v1466, 1.442695
    %v1470 = vpow.pop %v1469
    %v1471 = vmul.f32 %v1467, 1.442695
    %v1472 = vpow.pop %v1471
    %v1473 = vmul.f32 %v1468, 1.442695
    %v1474 = vpow.pop %v1473
    %v1475 = vadd.f32 %v1470, 1.0
    %v1476 = vadd.f32 %v1472, 1.0
    %v1477 = vadd.f32 %v1474, 1.0
    %v1478 = vrcp.pop %v1475
    %v1479 = vmul.f32 1.0, %v1478
    %v1480 = vrcp.pop %v1476
    %v1481 = vmul.f32 1.0, %v1480
    %v1482 = vrcp.pop %v1477
    %v1483 = vmul.f32 1.0, %v1482
    %v1484 = vtanh.pop %v1441
    %v1485 = vmul.f32 %v1481, %v1247
    %v1486 = vmul.f32 %v1479, %v1484
    %v1487 = vadd.f32 %v1485, %v1486
    %v1488 = vtanh.pop %v1487
    %v1489 = vmul.f32 %v1483, %v1488
    %v1490 = vpack.c.bf16 %v1465, %v1465
    %s1491 = scalar_lea.vmem %s4, 12
    %1492 = vst [vmem:[%s1491] sm:$0xf] %v1490
    %v1493 = vpack.c.bf16 %v1489, %v1489
    %s1494 = scalar_lea.vmem %s136, 16
    %1495 = vst [vmem:[%s1494] sm:$0xf] %v1493
    %s1496 = scalar_lea.vmem [#allocation6], 64
    %v1497 = vld [vmem:[%s1496] sm:$0xff]
    %v1498 = vld [vmem:[%s1496 + $0x8] sm:$0xff]
    %v1499 = vunpack.c.l.bf16 %v1497
    %v1500 = vunpack.c.h.bf16 %v1497
    %v1501 = vunpack.c.l.bf16 %v1498
    %v1502 = vunpack.c.h.bf16 %v1498
    %1503 = vmatprep.subr.bf16.mxu0 %v348
    %1504 = vmatpush1.bf16.msra.mxu0 %v347
    %1505 = vmatprep.subr.bf16.mxu0 %v344
    %1506 = vmatpush1.bf16.msra.mxu0 %v343
    %1507 = vmatprep.subr.bf16.mxu0 %v340
    %1508 = vmatpush1.bf16.msra.mxu0 %v339
    %1509 = vmatprep.subr.bf16.mxu0 %v336
    %1510 = vmatpush1.bf16.msra.mxu0 %v335
    %1511 = vmatprep.subr.bf16.mxu0 %v332
    %1512 = vmatpush1.bf16.msra.mxu0 %v331
    %1513 = vmatprep.subr.bf16.mxu0 %v328
    %1514 = vmatpush1.bf16.msra.mxu0 %v327
    %1515 = vmatprep.subr.bf16.mxu0 %v324
    %1516 = vmatpush1.bf16.msra.mxu0 %v323
    %1517 = vmatprep.subr.bf16.mxu0 %v320
    %1518 = vmatpush1.bf16.msra.mxu0 %v319
    %1519 = vmatprep.subr.bf16.mxu0 0
    %1520 = vmatpush2.bf16.msra.mxu0 0
    %1521 = vmatprep.subr.bf16.mxu0 0
    %1522 = vmatpush2.bf16.msra.mxu0 0
    %1523 = vmatprep.subr.bf16.mxu0 0
    %1524 = vmatpush2.bf16.msra.mxu0 0
    %1525 = vmatprep.subr.bf16.mxu0 0
    %1526 = vmatpush2.bf16.msra.mxu0 0
    %1527 = vmatprep.subr.bf16.mxu0 0
    %1528 = vmatpush2.bf16.msra.mxu0 0
    %1529 = vmatprep.subr.bf16.mxu0 0
    %1530 = vmatpush2.bf16.msra.mxu0 0
    %1531 = vmatprep.subr.bf16.mxu0 0
    %1532 = vmatpush2.bf16.msra.mxu0 0
    %1533 = vmatprep.subr.bf16.mxu0 0
    %1534 = vmatpush2.bf16.msra.mxu0 0
    %1535 = vmatprep.mubr.bf16.mxu0 0
    %1536 = vmatmul.mubr.bf16.gmra.mxu0 %v1490
    %v1537 = vpop.f32.mrf.mxu0
    %v1538 = vadd.f32 0.0, %v1537
    %v1539 = vpop.f32.mrf.mxu0
    %v1540 = vadd.f32 0.0, %v1539
    %v1541 = vpop.f32.mrf.mxu0
    %v1542 = vpop.f32.mrf.mxu0
    %1543 = vdwg.mxu0
    %1544 = vmatprep.subr.bf16.mxu0 %v350
    %1545 = vmatpush1.bf16.msra.mxu0 %v349
    %1546 = vmatprep.subr.bf16.mxu0 %v346
    %1547 = vmatpush1.bf16.msra.mxu0 %v345
    %1548 = vmatprep.subr.bf16.mxu0 %v342
    %1549 = vmatpush1.bf16.msra.mxu0 %v341
    %1550 = vmatprep.subr.bf16.mxu0 %v338
    %1551 = vmatpush1.bf16.msra.mxu0 %v337
    %1552 = vmatprep.subr.bf16.mxu0 %v334
    %1553 = vmatpush1.bf16.msra.mxu0 %v333
    %1554 = vmatprep.subr.bf16.mxu0 %v330
    %1555 = vmatpush1.bf16.msra.mxu0 %v329
    %1556 = vmatprep.subr.bf16.mxu0 %v326
    %1557 = vmatpush1.bf16.msra.mxu0 %v325
    %1558 = vmatprep.subr.bf16.mxu0 %v322
    %1559 = vmatpush1.bf16.msra.mxu0 %v321
    %1560 = vmatprep.subr.bf16.mxu0 0
    %1561 = vmatpush2.bf16.msra.mxu0 0
    %1562 = vmatprep.subr.bf16.mxu0 0
    %1563 = vmatpush2.bf16.msra.mxu0 0
    %1564 = vmatprep.subr.bf16.mxu0 0
    %1565 = vmatpush2.bf16.msra.mxu0 0
    %1566 = vmatprep.subr.bf16.mxu0 0
    %1567 = vmatpush2.bf16.msra.mxu0 0
    %1568 = vmatprep.subr.bf16.mxu0 0
    %1569 = vmatpush2.bf16.msra.mxu0 0
    %1570 = vmatprep.subr.bf16.mxu0 0
    %1571 = vmatpush2.bf16.msra.mxu0 0
    %1572 = vmatprep.subr.bf16.mxu0 0
    %1573 = vmatpush2.bf16.msra.mxu0 0
    %1574 = vmatprep.subr.bf16.mxu0 0
    %1575 = vmatpush2.bf16.msra.mxu0 0
    %1576 = vmatprep.mubr.bf16.mxu0 0
    %1577 = vmatmul.mubr.bf16.gmra.mxu0 %v1490
    %v1578 = vpop.f32.mrf.mxu0
    %v1579 = vadd.f32 0.0, %v1578
    %v1580 = vpop.f32.mrf.mxu0
    %v1581 = vadd.f32 0.0, %v1580
    %v1582 = vpop.f32.mrf.mxu0
    %v1583 = vpop.f32.mrf.mxu0
    %1584 = vdwg.mxu0
    %v1585 = vadd.f32 %v1499, %v1538
    %v1586 = vadd.f32 %v1500, %v1540
    %v1587 = vadd.f32 %v1501, %v1579
    %v1588 = vadd.f32 %v1502, %v1581
    %s1589 = scalar_lea.vmem [#allocation7], 48
    %v1590 = vld [vmem:[%s1589] sm:$0xff]
    %v1591 = vld [vmem:[%s1589 + $0x8] sm:$0xff]
    %v1592 = vunpack.c.l.bf16 %v1590
    %v1593 = vunpack.c.h.bf16 %v1590
    %v1594 = vunpack.c.l.bf16 %v1591
    %v1595 = vunpack.c.h.bf16 %v1591
    %1596 = vmatprep.subr.bf16.mxu0 %v602
    %1597 = vmatpush1.bf16.msra.mxu0 %v601
    %1598 = vmatprep.subr.bf16.mxu0 %v598
    %1599 = vmatpush1.bf16.msra.mxu0 %v597
    %1600 = vmatprep.subr.bf16.mxu0 %v594
    %1601 = vmatpush1.bf16.msra.mxu0 %v593
    %1602 = vmatprep.subr.bf16.mxu0 %v590
    %1603 = vmatpush1.bf16.msra.mxu0 %v589
    %1604 = vmatprep.subr.bf16.mxu0 %v586
    %1605 = vmatpush1.bf16.msra.mxu0 %v585
    %1606 = vmatprep.subr.bf16.mxu0 %v582
    %1607 = vmatpush1.bf16.msra.mxu0 %v581
    %1608 = vmatprep.subr.bf16.mxu0 %v578
    %1609 = vmatpush1.bf16.msra.mxu0 %v577
    %1610 = vmatprep.subr.bf16.mxu0 %v574
    %1611 = vmatpush1.bf16.msra.mxu0 %v573
    %1612 = vmatprep.subr.bf16.mxu0 0
    %1613 = vmatpush2.bf16.msra.mxu0 0
    %1614 = vmatprep.subr.bf16.mxu0 0
    %1615 = vmatpush2.bf16.msra.mxu0 0
    %1616 = vmatprep.subr.bf16.mxu0 0
    %1617 = vmatpush2.bf16.msra.mxu0 0
    %1618 = vmatprep.subr.bf16.mxu0 0
    %1619 = vmatpush2.bf16.msra.mxu0 0
    %1620 = vmatprep.subr.bf16.mxu0 0
    %1621 = vmatpush2.bf16.msra.mxu0 0
    %1622 = vmatprep.subr.bf16.mxu0 0
    %1623 = vmatpush2.bf16.msra.mxu0 0
    %1624 = vmatprep.subr.bf16.mxu0 0
    %1625 = vmatpush2.bf16.msra.mxu0 0
    %1626 = vmatprep.subr.bf16.mxu0 0
    %1627 = vmatpush2.bf16.msra.mxu0 0
    %1628 = vmatprep.mubr.bf16.mxu0 0
    %1629 = vmatmul.mubr.bf16.gmra.mxu0 %v1493
    %v1630 = vpop.f32.mrf.mxu0
    %v1631 = vadd.f32 0.0, %v1630
    %v1632 = vpop.f32.mrf.mxu0
    %v1633 = vadd.f32 0.0, %v1632
    %v1634 = vpop.f32.mrf.mxu0
    %v1635 = vpop.f32.mrf.mxu0
    %1636 = vdwg.mxu0
    %1637 = vmatprep.subr.bf16.mxu0 %v604
    %1638 = vmatpush1.bf16.msra.mxu0 %v603
    %1639 = vmatprep.subr.bf16.mxu0 %v600
    %1640 = vmatpush1.bf16.msra.mxu0 %v599
    %1641 = vmatprep.subr.bf16.mxu0 %v596
    %1642 = vmatpush1.bf16.msra.mxu0 %v595
    %1643 = vmatprep.subr.bf16.mxu0 %v592
    %1644 = vmatpush1.bf16.msra.mxu0 %v591
    %1645 = vmatprep.subr.bf16.mxu0 %v588
    %1646 = vmatpush1.bf16.msra.mxu0 %v587
    %1647 = vmatprep.subr.bf16.mxu0 %v584
    %1648 = vmatpush1.bf16.msra.mxu0 %v583
    %1649 = vmatprep.subr.bf16.mxu0 %v580
    %1650 = vmatpush1.bf16.msra.mxu0 %v579
    %1651 = vmatprep.subr.bf16.mxu0 %v576
    %1652 = vmatpush1.bf16.msra.mxu0 %v575
    %1653 = vmatprep.subr.bf16.mxu0 0
    %1654 = vmatpush2.bf16.msra.mxu0 0
    %1655 = vmatprep.subr.bf16.mxu0 0
    %1656 = vmatpush2.bf16.msra.mxu0 0
    %1657 = vmatprep.subr.bf16.mxu0 0
    %1658 = vmatpush2.bf16.msra.mxu0 0
    %1659 = vmatprep.subr.bf16.mxu0 0
    %1660 = vmatpush2.bf16.msra.mxu0 0
    %1661 = vmatprep.subr.bf16.mxu0 0
    %1662 = vmatpush2.bf16.msra.mxu0 0
    %1663 = vmatprep.subr.bf16.mxu0 0
    %1664 = vmatpush2.bf16.msra.mxu0 0
    %1665 = vmatprep.subr.bf16.mxu0 0
    %1666 = vmatpush2.bf16.msra.mxu0 0
    %1667 = vmatprep.subr.bf16.mxu0 0
    %1668 = vmatpush2.bf16.msra.mxu0 0
    %1669 = vmatprep.mubr.bf16.mxu0 0
    %1670 = vmatmul.mubr.bf16.gmra.mxu0 %v1493
    %v1671 = vpop.f32.mrf.mxu0
    %v1672 = vadd.f32 0.0, %v1671
    %v1673 = vpop.f32.mrf.mxu0
    %v1674 = vadd.f32 0.0, %v1673
    %v1675 = vpop.f32.mrf.mxu0
    %v1676 = vpop.f32.mrf.mxu0
    %1677 = vdwg.mxu0
    %v1678 = vadd.f32 %v1592, %v1631
    %v1679 = vadd.f32 %v1593, %v1633
    %v1680 = vadd.f32 %v1594, %v1672
    %v1681 = vadd.f32 %v1595, %v1674
    %v1682 = vxor.u32 %v1585, 2147483648
    %v1683 = vxor.u32 %v1586, 2147483648
    %v1684 = vxor.u32 %v1587, 2147483648
    %v1685 = vmul.f32 %v1682, 1.442695
    %v1686 = vpow.pop %v1685
    %v1687 = vmul.f32 %v1683, 1.442695
    %v1688 = vpow.pop %v1687
    %v1689 = vmul.f32 %v1684, 1.442695
    %v1690 = vpow.pop %v1689
    %v1691 = vadd.f32 %v1686, 1.0
    %v1692 = vadd.f32 %v1688, 1.0
    %v1693 = vadd.f32 %v1690, 1.0
    %v1694 = vrcp.pop %v1691
    %v1695 = vmul.f32 1.0, %v1694
    %v1696 = vrcp.pop %v1692
    %v1697 = vmul.f32 1.0, %v1696
    %v1698 = vrcp.pop %v1693
    %v1699 = vmul.f32 1.0, %v1698
    %v1700 = vtanh.pop %v1588
    %v1701 = vmul.f32 %v1697, %v1463
    %v1702 = vmul.f32 %v1695, %v1700
    %v1703 = vadd.f32 %v1701, %v1702
    %v1704 = vtanh.pop %v1703
    %v1705 = vmul.f32 %v1699, %v1704
    %v1706 = vxor.u32 %v1678, 2147483648
    %v1707 = vxor.u32 %v1679, 2147483648
    %v1708 = vxor.u32 %v1680, 2147483648
    %v1709 = vmul.f32 %v1706, 1.442695
    %v1710 = vpow.pop %v1709
    %v1711 = vmul.f32 %v1707, 1.442695
    %v1712 = vpow.pop %v1711
    %v1713 = vmul.f32 %v1708, 1.442695
    %v1714 = vpow.pop %v1713
    %v1715 = vadd.f32 %v1710, 1.0
    %v1716 = vadd.f32 %v1712, 1.0
    %v1717 = vadd.f32 %v1714, 1.0
    %v1718 = vrcp.pop %v1715
    %v1719 = vmul.f32 1.0, %v1718
    %v1720 = vrcp.pop %v1716
    %v1721 = vmul.f32 1.0, %v1720
    %v1722 = vrcp.pop %v1717
    %v1723 = vmul.f32 1.0, %v1722
    %v1724 = vtanh.pop %v1681
    %v1725 = vmul.f32 %v1721, %v1487
    %v1726 = vmul.f32 %v1719, %v1724
    %v1727 = vadd.f32 %v1725, %v1726
    %v1728 = vtanh.pop %v1727
    %v1729 = vmul.f32 %v1723, %v1728
    %v1730 = vpack.c.bf16 %v1705, %v1705
    %s1731 = scalar_lea.vmem %s4, 16
    %1732 = vst [vmem:[%s1731] sm:$0xf] %v1730
    %v1733 = vpack.c.bf16 %v1729, %v1729
    %s1734 = scalar_lea.vmem %s136, 12
    %1735 = vst [vmem:[%s1734] sm:$0xf] %v1733
    %s1736 = scalar_lea.vmem [#allocation6], 80
    %v1737 = vld [vmem:[%s1736] sm:$0xff]
    %v1738 = vld [vmem:[%s1736 + $0x8] sm:$0xff]
    %v1739 = vunpack.c.l.bf16 %v1737
    %v1740 = vunpack.c.h.bf16 %v1737
    %v1741 = vunpack.c.l.bf16 %v1738
    %v1742 = vunpack.c.h.bf16 %v1738
    %1743 = vmatprep.subr.bf16.mxu0 %v348
    %1744 = vmatpush1.bf16.msra.mxu0 %v347
    %1745 = vmatprep.subr.bf16.mxu0 %v344
    %1746 = vmatpush1.bf16.msra.mxu0 %v343
    %1747 = vmatprep.subr.bf16.mxu0 %v340
    %1748 = vmatpush1.bf16.msra.mxu0 %v339
    %1749 = vmatprep.subr.bf16.mxu0 %v336
    %1750 = vmatpush1.bf16.msra.mxu0 %v335
    %1751 = vmatprep.subr.bf16.mxu0 %v332
    %1752 = vmatpush1.bf16.msra.mxu0 %v331
    %1753 = vmatprep.subr.bf16.mxu0 %v328
    %1754 = vmatpush1.bf16.msra.mxu0 %v327
    %1755 = vmatprep.subr.bf16.mxu0 %v324
    %1756 = vmatpush1.bf16.msra.mxu0 %v323
    %1757 = vmatprep.subr.bf16.mxu0 %v320
    %1758 = vmatpush1.bf16.msra.mxu0 %v319
    %1759 = vmatprep.subr.bf16.mxu0 0
    %1760 = vmatpush2.bf16.msra.mxu0 0
    %1761 = vmatprep.subr.bf16.mxu0 0
    %1762 = vmatpush2.bf16.msra.mxu0 0
    %1763 = vmatprep.subr.bf16.mxu0 0
    %1764 = vmatpush2.bf16.msra.mxu0 0
    %1765 = vmatprep.subr.bf16.mxu0 0
    %1766 = vmatpush2.bf16.msra.mxu0 0
    %1767 = vmatprep.subr.bf16.mxu0 0
    %1768 = vmatpush2.bf16.msra.mxu0 0
    %1769 = vmatprep.subr.bf16.mxu0 0
    %1770 = vmatpush2.bf16.msra.mxu0 0
    %1771 = vmatprep.subr.bf16.mxu0 0
    %1772 = vmatpush2.bf16.msra.mxu0 0
    %1773 = vmatprep.subr.bf16.mxu0 0
    %1774 = vmatpush2.bf16.msra.mxu0 0
    %1775 = vmatprep.mubr.bf16.mxu0 0
    %1776 = vmatmul.mubr.bf16.gmra.mxu0 %v1730
    %v1777 = vpop.f32.mrf.mxu0
    %v1778 = vadd.f32 0.0, %v1777
    %v1779 = vpop.f32.mrf.mxu0
    %v1780 = vadd.f32 0.0, %v1779
    %v1781 = vpop.f32.mrf.mxu0
    %v1782 = vpop.f32.mrf.mxu0
    %1783 = vdwg.mxu0
    %1784 = vmatprep.subr.bf16.mxu0 %v350
    %1785 = vmatpush1.bf16.msra.mxu0 %v349
    %1786 = vmatprep.subr.bf16.mxu0 %v346
    %1787 = vmatpush1.bf16.msra.mxu0 %v345
    %1788 = vmatprep.subr.bf16.mxu0 %v342
    %1789 = vmatpush1.bf16.msra.mxu0 %v341
    %1790 = vmatprep.subr.bf16.mxu0 %v338
    %1791 = vmatpush1.bf16.msra.mxu0 %v337
    %1792 = vmatprep.subr.bf16.mxu0 %v334
    %1793 = vmatpush1.bf16.msra.mxu0 %v333
    %1794 = vmatprep.subr.bf16.mxu0 %v330
    %1795 = vmatpush1.bf16.msra.mxu0 %v329
    %1796 = vmatprep.subr.bf16.mxu0 %v326
    %1797 = vmatpush1.bf16.msra.mxu0 %v325
    %1798 = vmatprep.subr.bf16.mxu0 %v322
    %1799 = vmatpush1.bf16.msra.mxu0 %v321
    %1800 = vmatprep.subr.bf16.mxu0 0
    %1801 = vmatpush2.bf16.msra.mxu0 0
    %1802 = vmatprep.subr.bf16.mxu0 0
    %1803 = vmatpush2.bf16.msra.mxu0 0
    %1804 = vmatprep.subr.bf16.mxu0 0
    %1805 = vmatpush2.bf16.msra.mxu0 0
    %1806 = vmatprep.subr.bf16.mxu0 0
    %1807 = vmatpush2.bf16.msra.mxu0 0
    %1808 = vmatprep.subr.bf16.mxu0 0
    %1809 = vmatpush2.bf16.msra.mxu0 0
    %1810 = vmatprep.subr.bf16.mxu0 0
    %1811 = vmatpush2.bf16.msra.mxu0 0
    %1812 = vmatprep.subr.bf16.mxu0 0
    %1813 = vmatpush2.bf16.msra.mxu0 0
    %1814 = vmatprep.subr.bf16.mxu0 0
    %1815 = vmatpush2.bf16.msra.mxu0 0
    %1816 = vmatprep.mubr.bf16.mxu0 0
    %1817 = vmatmul.mubr.bf16.gmra.mxu0 %v1730
    %v1818 = vpop.f32.mrf.mxu0
    %v1819 = vadd.f32 0.0, %v1818
    %v1820 = vpop.f32.mrf.mxu0
    %v1821 = vadd.f32 0.0, %v1820
    %v1822 = vpop.f32.mrf.mxu0
    %v1823 = vpop.f32.mrf.mxu0
    %1824 = vdwg.mxu0
    %v1825 = vadd.f32 %v1739, %v1778
    %v1826 = vadd.f32 %v1740, %v1780
    %v1827 = vadd.f32 %v1741, %v1819
    %v1828 = vadd.f32 %v1742, %v1821
    %s1829 = scalar_lea.vmem [#allocation7], 32
    %v1830 = vld [vmem:[%s1829] sm:$0xff]
    %v1831 = vld [vmem:[%s1829 + $0x8] sm:$0xff]
    %v1832 = vunpack.c.l.bf16 %v1830
    %v1833 = vunpack.c.h.bf16 %v1830
    %v1834 = vunpack.c.l.bf16 %v1831
    %v1835 = vunpack.c.h.bf16 %v1831
    %1836 = vmatprep.subr.bf16.mxu0 %v602
    %1837 = vmatpush1.bf16.msra.mxu0 %v601
    %1838 = vmatprep.subr.bf16.mxu0 %v598
    %1839 = vmatpush1.bf16.msra.mxu0 %v597
    %1840 = vmatprep.subr.bf16.mxu0 %v594
    %1841 = vmatpush1.bf16.msra.mxu0 %v593
    %1842 = vmatprep.subr.bf16.mxu0 %v590
    %1843 = vmatpush1.bf16.msra.mxu0 %v589
    %1844 = vmatprep.subr.bf16.mxu0 %v586
    %1845 = vmatpush1.bf16.msra.mxu0 %v585
    %1846 = vmatprep.subr.bf16.mxu0 %v582
    %1847 = vmatpush1.bf16.msra.mxu0 %v581
    %1848 = vmatprep.subr.bf16.mxu0 %v578
    %1849 = vmatpush1.bf16.msra.mxu0 %v577
    %1850 = vmatprep.subr.bf16.mxu0 %v574
    %1851 = vmatpush1.bf16.msra.mxu0 %v573
    %1852 = vmatprep.subr.bf16.mxu0 0
    %1853 = vmatpush2.bf16.msra.mxu0 0
    %1854 = vmatprep.subr.bf16.mxu0 0
    %1855 = vmatpush2.bf16.msra.mxu0 0
    %1856 = vmatprep.subr.bf16.mxu0 0
    %1857 = vmatpush2.bf16.msra.mxu0 0
    %1858 = vmatprep.subr.bf16.mxu0 0
    %1859 = vmatpush2.bf16.msra.mxu0 0
    %1860 = vmatprep.subr.bf16.mxu0 0
    %1861 = vmatpush2.bf16.msra.mxu0 0
    %1862 = vmatprep.subr.bf16.mxu0 0
    %1863 = vmatpush2.bf16.msra.mxu0 0
    %1864 = vmatprep.subr.bf16.mxu0 0
    %1865 = vmatpush2.bf16.msra.mxu0 0
    %1866 = vmatprep.subr.bf16.mxu0 0
    %1867 = vmatpush2.bf16.msra.mxu0 0
    %1868 = vmatprep.mubr.bf16.mxu0 0
    %1869 = vmatmul.mubr.bf16.gmra.mxu0 %v1733
    %v1870 = vpop.f32.mrf.mxu0
    %v1871 = vadd.f32 0.0, %v1870
    %v1872 = vpop.f32.mrf.mxu0
    %v1873 = vadd.f32 0.0, %v1872
    %v1874 = vpop.f32.mrf.mxu0
    %v1875 = vpop.f32.mrf.mxu0
    %1876 = vdwg.mxu0
    %1877 = vmatprep.subr.bf16.mxu0 %v604
    %1878 = vmatpush1.bf16.msra.mxu0 %v603
    %1879 = vmatprep.subr.bf16.mxu0 %v600
    %1880 = vmatpush1.bf16.msra.mxu0 %v599
    %1881 = vmatprep.subr.bf16.mxu0 %v596
    %1882 = vmatpush1.bf16.msra.mxu0 %v595
    %1883 = vmatprep.subr.bf16.mxu0 %v592
    %1884 = vmatpush1.bf16.msra.mxu0 %v591
    %1885 = vmatprep.subr.bf16.mxu0 %v588
    %1886 = vmatpush1.bf16.msra.mxu0 %v587
    %1887 = vmatprep.subr.bf16.mxu0 %v584
    %1888 = vmatpush1.bf16.msra.mxu0 %v583
    %1889 = vmatprep.subr.bf16.mxu0 %v580
    %1890 = vmatpush1.bf16.msra.mxu0 %v579
    %1891 = vmatprep.subr.bf16.mxu0 %v576
    %1892 = vmatpush1.bf16.msra.mxu0 %v575
    %1893 = vmatprep.subr.bf16.mxu0 0
    %1894 = vmatpush2.bf16.msra.mxu0 0
    %1895 = vmatprep.subr.bf16.mxu0 0
    %1896 = vmatpush2.bf16.msra.mxu0 0
    %1897 = vmatprep.subr.bf16.mxu0 0
    %1898 = vmatpush2.bf16.msra.mxu0 0
    %1899 = vmatprep.subr.bf16.mxu0 0
    %1900 = vmatpush2.bf16.msra.mxu0 0
    %1901 = vmatprep.subr.bf16.mxu0 0
    %1902 = vmatpush2.bf16.msra.mxu0 0
    %1903 = vmatprep.subr.bf16.mxu0 0
    %1904 = vmatpush2.bf16.msra.mxu0 0
    %1905 = vmatprep.subr.bf16.mxu0 0
    %1906 = vmatpush2.bf16.msra.mxu0 0
    %1907 = vmatprep.subr.bf16.mxu0 0
    %1908 = vmatpush2.bf16.msra.mxu0 0
    %1909 = vmatprep.mubr.bf16.mxu0 0
    %1910 = vmatmul.mubr.bf16.gmra.mxu0 %v1733
    %v1911 = vpop.f32.mrf.mxu0
    %v1912 = vadd.f32 0.0, %v1911
    %v1913 = vpop.f32.mrf.mxu0
    %v1914 = vadd.f32 0.0, %v1913
    %v1915 = vpop.f32.mrf.mxu0
    %v1916 = vpop.f32.mrf.mxu0
    %1917 = vdwg.mxu0
    %v1918 = vadd.f32 %v1832, %v1871
    %v1919 = vadd.f32 %v1833, %v1873
    %v1920 = vadd.f32 %v1834, %v1912
    %v1921 = vadd.f32 %v1835, %v1914
    %v1922 = vxor.u32 %v1825, 2147483648
    %v1923 = vxor.u32 %v1826, 2147483648
    %v1924 = vxor.u32 %v1827, 2147483648
    %v1925 = vmul.f32 %v1922, 1.442695
    %v1926 = vpow.pop %v1925
    %v1927 = vmul.f32 %v1923, 1.442695
    %v1928 = vpow.pop %v1927
    %v1929 = vmul.f32 %v1924, 1.442695
    %v1930 = vpow.pop %v1929
    %v1931 = vadd.f32 %v1926, 1.0
    %v1932 = vadd.f32 %v1928, 1.0
    %v1933 = vadd.f32 %v1930, 1.0
    %v1934 = vrcp.pop %v1931
    %v1935 = vmul.f32 1.0, %v1934
    %v1936 = vrcp.pop %v1932
    %v1937 = vmul.f32 1.0, %v1936
    %v1938 = vrcp.pop %v1933
    %v1939 = vmul.f32 1.0, %v1938
    %v1940 = vtanh.pop %v1828
    %v1941 = vmul.f32 %v1937, %v1703
    %v1942 = vmul.f32 %v1935, %v1940
    %v1943 = vadd.f32 %v1941, %v1942
    %v1944 = vtanh.pop %v1943
    %v1945 = vmul.f32 %v1939, %v1944
    %v1946 = vxor.u32 %v1918, 2147483648
    %v1947 = vxor.u32 %v1919, 2147483648
    %v1948 = vxor.u32 %v1920, 2147483648
    %v1949 = vmul.f32 %v1946, 1.442695
    %v1950 = vpow.pop %v1949
    %v1951 = vmul.f32 %v1947, 1.442695
    %v1952 = vpow.pop %v1951
    %v1953 = vmul.f32 %v1948, 1.442695
    %v1954 = vpow.pop %v1953
    %v1955 = vadd.f32 %v1950, 1.0
    %v1956 = vadd.f32 %v1952, 1.0
    %v1957 = vadd.f32 %v1954, 1.0
    %v1958 = vrcp.pop %v1955
    %v1959 = vmul.f32 1.0, %v1958
    %v1960 = vrcp.pop %v1956
    %v1961 = vmul.f32 1.0, %v1960
    %v1962 = vrcp.pop %v1957
    %v1963 = vmul.f32 1.0, %v1962
    %v1964 = vtanh.pop %v1921
    %v1965 = vmul.f32 %v1961, %v1727
    %v1966 = vmul.f32 %v1959, %v1964
    %v1967 = vadd.f32 %v1965, %v1966
    %v1968 = vtanh.pop %v1967
    %v1969 = vmul.f32 %v1963, %v1968
    %v1970 = vpack.c.bf16 %v1945, %v1945
    %s1971 = scalar_lea.vmem %s4, 20
    %1972 = vst [vmem:[%s1971] sm:$0xf] %v1970
    %v1973 = vpack.c.bf16 %v1969, %v1969
    %s1974 = scalar_lea.vmem %s136, 8
    %1975 = vst [vmem:[%s1974] sm:$0xf] %v1973
    %s1976 = scalar_lea.vmem [#allocation6], 96
    %v1977 = vld [vmem:[%s1976] sm:$0xff]
    %v1978 = vld [vmem:[%s1976 + $0x8] sm:$0xff]
    %v1979 = vunpack.c.l.bf16 %v1977
    %v1980 = vunpack.c.h.bf16 %v1977
    %v1981 = vunpack.c.l.bf16 %v1978
    %v1982 = vunpack.c.h.bf16 %v1978
    %1983 = vmatprep.subr.bf16.mxu0 %v348
    %1984 = vmatpush1.bf16.msra.mxu0 %v347
    %1985 = vmatprep.subr.bf16.mxu0 %v344
    %1986 = vmatpush1.bf16.msra.mxu0 %v343
    %1987 = vmatprep.subr.bf16.mxu0 %v340
    %1988 = vmatpush1.bf16.msra.mxu0 %v339
    %1989 = vmatprep.subr.bf16.mxu0 %v336
    %1990 = vmatpush1.bf16.msra.mxu0 %v335
    %1991 = vmatprep.subr.bf16.mxu0 %v332
    %1992 = vmatpush1.bf16.msra.mxu0 %v331
    %1993 = vmatprep.subr.bf16.mxu0 %v328
    %1994 = vmatpush1.bf16.msra.mxu0 %v327
    %1995 = vmatprep.subr.bf16.mxu0 %v324
    %1996 = vmatpush1.bf16.msra.mxu0 %v323
    %1997 = vmatprep.subr.bf16.mxu0 %v320
    %1998 = vmatpush1.bf16.msra.mxu0 %v319
    %1999 = vmatprep.subr.bf16.mxu0 0
    %2000 = vmatpush2.bf16.msra.mxu0 0
    %2001 = vmatprep.subr.bf16.mxu0 0
    %2002 = vmatpush2.bf16.msra.mxu0 0
    %2003 = vmatprep.subr.bf16.mxu0 0
    %2004 = vmatpush2.bf16.msra.mxu0 0
    %2005 = vmatprep.subr.bf16.mxu0 0
    %2006 = vmatpush2.bf16.msra.mxu0 0
    %2007 = vmatprep.subr.bf16.mxu0 0
    %2008 = vmatpush2.bf16.msra.mxu0 0
    %2009 = vmatprep.subr.bf16.mxu0 0
    %2010 = vmatpush2.bf16.msra.mxu0 0
    %2011 = vmatprep.subr.bf16.mxu0 0
    %2012 = vmatpush2.bf16.msra.mxu0 0
    %2013 = vmatprep.subr.bf16.mxu0 0
    %2014 = vmatpush2.bf16.msra.mxu0 0
    %2015 = vmatprep.mubr.bf16.mxu0 0
    %2016 = vmatmul.mubr.bf16.gmra.mxu0 %v1970
    %v2017 = vpop.f32.mrf.mxu0
    %v2018 = vadd.f32 0.0, %v2017
    %v2019 = vpop.f32.mrf.mxu0
    %v2020 = vadd.f32 0.0, %v2019
    %v2021 = vpop.f32.mrf.mxu0
    %v2022 = vpop.f32.mrf.mxu0
    %2023 = vdwg.mxu0
    %2024 = vmatprep.subr.bf16.mxu0 %v350
    %2025 = vmatpush1.bf16.msra.mxu0 %v349
    %2026 = vmatprep.subr.bf16.mxu0 %v346
    %2027 = vmatpush1.bf16.msra.mxu0 %v345
    %2028 = vmatprep.subr.bf16.mxu0 %v342
    %2029 = vmatpush1.bf16.msra.mxu0 %v341
    %2030 = vmatprep.subr.bf16.mxu0 %v338
    %2031 = vmatpush1.bf16.msra.mxu0 %v337
    %2032 = vmatprep.subr.bf16.mxu0 %v334
    %2033 = vmatpush1.bf16.msra.mxu0 %v333
    %2034 = vmatprep.subr.bf16.mxu0 %v330
    %2035 = vmatpush1.bf16.msra.mxu0 %v329
    %2036 = vmatprep.subr.bf16.mxu0 %v326
    %2037 = vmatpush1.bf16.msra.mxu0 %v325
    %2038 = vmatprep.subr.bf16.mxu0 %v322
    %2039 = vmatpush1.bf16.msra.mxu0 %v321
    %2040 = vmatprep.subr.bf16.mxu0 0
    %2041 = vmatpush2.bf16.msra.mxu0 0
    %2042 = vmatprep.subr.bf16.mxu0 0
    %2043 = vmatpush2.bf16.msra.mxu0 0
    %2044 = vmatprep.subr.bf16.mxu0 0
    %2045 = vmatpush2.bf16.msra.mxu0 0
    %2046 = vmatprep.subr.bf16.mxu0 0
    %2047 = vmatpush2.bf16.msra.mxu0 0
    %2048 = vmatprep.subr.bf16.mxu0 0
    %2049 = vmatpush2.bf16.msra.mxu0 0
    %2050 = vmatprep.subr.bf16.mxu0 0
    %2051 = vmatpush2.bf16.msra.mxu0 0
    %2052 = vmatprep.subr.bf16.mxu0 0
    %2053 = vmatpush2.bf16.msra.mxu0 0
    %2054 = vmatprep.subr.bf16.mxu0 0
    %2055 = vmatpush2.bf16.msra.mxu0 0
    %2056 = vmatprep.mubr.bf16.mxu0 0
    %2057 = vmatmul.mubr.bf16.gmra.mxu0 %v1970
    %v2058 = vpop.f32.mrf.mxu0
    %v2059 = vadd.f32 0.0, %v2058
    %v2060 = vpop.f32.mrf.mxu0
    %v2061 = vadd.f32 0.0, %v2060
    %v2062 = vpop.f32.mrf.mxu0
    %v2063 = vpop.f32.mrf.mxu0
    %2064 = vdwg.mxu0
    %v2065 = vadd.f32 %v1979, %v2018
    %v2066 = vadd.f32 %v1980, %v2020
    %v2067 = vadd.f32 %v1981, %v2059
    %v2068 = vadd.f32 %v1982, %v2061
    %s2069 = scalar_lea.vmem [#allocation7], 16
    %v2070 = vld [vmem:[%s2069] sm:$0xff]
    %v2071 = vld [vmem:[%s2069 + $0x8] sm:$0xff]
    %v2072 = vunpack.c.l.bf16 %v2070
    %v2073 = vunpack.c.h.bf16 %v2070
    %v2074 = vunpack.c.l.bf16 %v2071
    %v2075 = vunpack.c.h.bf16 %v2071
    %2076 = vmatprep.subr.bf16.mxu0 %v602
    %2077 = vmatpush1.bf16.msra.mxu0 %v601
    %2078 = vmatprep.subr.bf16.mxu0 %v598
    %2079 = vmatpush1.bf16.msra.mxu0 %v597
    %2080 = vmatprep.subr.bf16.mxu0 %v594
    %2081 = vmatpush1.bf16.msra.mxu0 %v593
    %2082 = vmatprep.subr.bf16.mxu0 %v590
    %2083 = vmatpush1.bf16.msra.mxu0 %v589
    %2084 = vmatprep.subr.bf16.mxu0 %v586
    %2085 = vmatpush1.bf16.msra.mxu0 %v585
    %2086 = vmatprep.subr.bf16.mxu0 %v582
    %2087 = vmatpush1.bf16.msra.mxu0 %v581
    %2088 = vmatprep.subr.bf16.mxu0 %v578
    %2089 = vmatpush1.bf16.msra.mxu0 %v577
    %2090 = vmatprep.subr.bf16.mxu0 %v574
    %2091 = vmatpush1.bf16.msra.mxu0 %v573
    %2092 = vmatprep.subr.bf16.mxu0 0
    %2093 = vmatpush2.bf16.msra.mxu0 0
    %2094 = vmatprep.subr.bf16.mxu0 0
    %2095 = vmatpush2.bf16.msra.mxu0 0
    %2096 = vmatprep.subr.bf16.mxu0 0
    %2097 = vmatpush2.bf16.msra.mxu0 0
    %2098 = vmatprep.subr.bf16.mxu0 0
    %2099 = vmatpush2.bf16.msra.mxu0 0
    %2100 = vmatprep.subr.bf16.mxu0 0
    %2101 = vmatpush2.bf16.msra.mxu0 0
    %2102 = vmatprep.subr.bf16.mxu0 0
    %2103 = vmatpush2.bf16.msra.mxu0 0
    %2104 = vmatprep.subr.bf16.mxu0 0
    %2105 = vmatpush2.bf16.msra.mxu0 0
    %2106 = vmatprep.subr.bf16.mxu0 0
    %2107 = vmatpush2.bf16.msra.mxu0 0
    %2108 = vmatprep.mubr.bf16.mxu0 0
    %2109 = vmatmul.mubr.bf16.gmra.mxu0 %v1973
    %v2110 = vpop.f32.mrf.mxu0
    %v2111 = vadd.f32 0.0, %v2110
    %v2112 = vpop.f32.mrf.mxu0
    %v2113 = vadd.f32 0.0, %v2112
    %v2114 = vpop.f32.mrf.mxu0
    %v2115 = vpop.f32.mrf.mxu0
    %2116 = vdwg.mxu0
    %2117 = vmatprep.subr.bf16.mxu0 %v604
    %2118 = vmatpush1.bf16.msra.mxu0 %v603
    %2119 = vmatprep.subr.bf16.mxu0 %v600
    %2120 = vmatpush1.bf16.msra.mxu0 %v599
    %2121 = vmatprep.subr.bf16.mxu0 %v596
    %2122 = vmatpush1.bf16.msra.mxu0 %v595
    %2123 = vmatprep.subr.bf16.mxu0 %v592
    %2124 = vmatpush1.bf16.msra.mxu0 %v591
    %2125 = vmatprep.subr.bf16.mxu0 %v588
    %2126 = vmatpush1.bf16.msra.mxu0 %v587
    %2127 = vmatprep.subr.bf16.mxu0 %v584
    %2128 = vmatpush1.bf16.msra.mxu0 %v583
    %2129 = vmatprep.subr.bf16.mxu0 %v580
    %2130 = vmatpush1.bf16.msra.mxu0 %v579
    %2131 = vmatprep.subr.bf16.mxu0 %v576
    %2132 = vmatpush1.bf16.msra.mxu0 %v575
    %2133 = vmatprep.subr.bf16.mxu0 0
    %2134 = vmatpush2.bf16.msra.mxu0 0
    %2135 = vmatprep.subr.bf16.mxu0 0
    %2136 = vmatpush2.bf16.msra.mxu0 0
    %2137 = vmatprep.subr.bf16.mxu0 0
    %2138 = vmatpush2.bf16.msra.mxu0 0
    %2139 = vmatprep.subr.bf16.mxu0 0
    %2140 = vmatpush2.bf16.msra.mxu0 0
    %2141 = vmatprep.subr.bf16.mxu0 0
    %2142 = vmatpush2.bf16.msra.mxu0 0
    %2143 = vmatprep.subr.bf16.mxu0 0
    %2144 = vmatpush2.bf16.msra.mxu0 0
    %2145 = vmatprep.subr.bf16.mxu0 0
    %2146 = vmatpush2.bf16.msra.mxu0 0
    %2147 = vmatprep.subr.bf16.mxu0 0
    %2148 = vmatpush2.bf16.msra.mxu0 0
    %2149 = vmatprep.mubr.bf16.mxu0 0
    %2150 = vmatmul.mubr.bf16.gmra.mxu0 %v1973
    %v2151 = vpop.f32.mrf.mxu0
    %v2152 = vadd.f32 0.0, %v2151
    %v2153 = vpop.f32.mrf.mxu0
    %v2154 = vadd.f32 0.0, %v2153
    %v2155 = vpop.f32.mrf.mxu0
    %v2156 = vpop.f32.mrf.mxu0
    %2157 = vdwg.mxu0
    %v2158 = vadd.f32 %v2072, %v2111
    %v2159 = vadd.f32 %v2073, %v2113
    %v2160 = vadd.f32 %v2074, %v2152
    %v2161 = vadd.f32 %v2075, %v2154
    %v2162 = vxor.u32 %v2065, 2147483648
    %v2163 = vxor.u32 %v2066, 2147483648
    %v2164 = vxor.u32 %v2067, 2147483648
    %v2165 = vmul.f32 %v2162, 1.442695
    %v2166 = vpow.pop %v2165
    %v2167 = vmul.f32 %v2163, 1.442695
    %v2168 = vpow.pop %v2167
    %v2169 = vmul.f32 %v2164, 1.442695
    %v2170 = vpow.pop %v2169
    %v2171 = vadd.f32 %v2166, 1.0
    %v2172 = vadd.f32 %v2168, 1.0
    %v2173 = vadd.f32 %v2170, 1.0
    %v2174 = vrcp.pop %v2171
    %v2175 = vmul.f32 1.0, %v2174
    %v2176 = vrcp.pop %v2172
    %v2177 = vmul.f32 1.0, %v2176
    %v2178 = vrcp.pop %v2173
    %v2179 = vmul.f32 1.0, %v2178
    %v2180 = vtanh.pop %v2068
    %v2181 = vmul.f32 %v2177, %v1943
    %v2182 = vmul.f32 %v2175, %v2180
    %v2183 = vadd.f32 %v2181, %v2182
    %v2184 = vtanh.pop %v2183
    %v2185 = vmul.f32 %v2179, %v2184
    %v2186 = vxor.u32 %v2158, 2147483648
    %v2187 = vxor.u32 %v2159, 2147483648
    %v2188 = vxor.u32 %v2160, 2147483648
    %v2189 = vmul.f32 %v2186, 1.442695
    %v2190 = vpow.pop %v2189
    %v2191 = vmul.f32 %v2187, 1.442695
    %v2192 = vpow.pop %v2191
    %v2193 = vmul.f32 %v2188, 1.442695
    %v2194 = vpow.pop %v2193
    %v2195 = vadd.f32 %v2190, 1.0
    %v2196 = vadd.f32 %v2192, 1.0
    %v2197 = vadd.f32 %v2194, 1.0
    %v2198 = vrcp.pop %v2195
    %v2199 = vmul.f32 1.0, %v2198
    %v2200 = vrcp.pop %v2196
    %v2201 = vmul.f32 1.0, %v2200
    %v2202 = vrcp.pop %v2197
    %v2203 = vmul.f32 1.0, %v2202
    %v2204 = vtanh.pop %v2161
    %v2205 = vmul.f32 %v2201, %v1967
    %v2206 = vmul.f32 %v2199, %v2204
    %v2207 = vadd.f32 %v2205, %v2206
    %v2208 = vtanh.pop %v2207
    %v2209 = vmul.f32 %v2203, %v2208
    %v2210 = vpack.c.bf16 %v2185, %v2185
    %s2211 = scalar_lea.vmem %s4, 24
    %2212 = vst [vmem:[%s2211] sm:$0xf] %v2210
    %v2213 = vpack.c.bf16 %v2209, %v2209
    %s2214 = scalar_lea.vmem %s136, 4
    %2215 = vst [vmem:[%s2214] sm:$0xf] %v2213
    %s2216 = scalar_lea.vmem [#allocation6], 112
    %v2217 = vld [vmem:[%s2216] sm:$0xff]
    %v2218 = vld [vmem:[%s2216 + $0x8] sm:$0xff]
    %v2219 = vunpack.c.l.bf16 %v2217
    %v2220 = vunpack.c.h.bf16 %v2217
    %v2221 = vunpack.c.l.bf16 %v2218
    %v2222 = vunpack.c.h.bf16 %v2218
    %2223 = vmatprep.subr.bf16.mxu0 %v348
    %2224 = vmatpush1.bf16.msra.mxu0 %v347
    %2225 = vmatprep.subr.bf16.mxu0 %v344
    %2226 = vmatpush1.bf16.msra.mxu0 %v343
    %2227 = vmatprep.subr.bf16.mxu0 %v340
    %2228 = vmatpush1.bf16.msra.mxu0 %v339
    %2229 = vmatprep.subr.bf16.mxu0 %v336
    %2230 = vmatpush1.bf16.msra.mxu0 %v335
    %2231 = vmatprep.subr.bf16.mxu0 %v332
    %2232 = vmatpush1.bf16.msra.mxu0 %v331
    %2233 = vmatprep.subr.bf16.mxu0 %v328
    %2234 = vmatpush1.bf16.msra.mxu0 %v327
    %2235 = vmatprep.subr.bf16.mxu0 %v324
    %2236 = vmatpush1.bf16.msra.mxu0 %v323
    %2237 = vmatprep.subr.bf16.mxu0 %v320
    %2238 = vmatpush1.bf16.msra.mxu0 %v319
    %2239 = vmatprep.subr.bf16.mxu0 0
    %2240 = vmatpush2.bf16.msra.mxu0 0
    %2241 = vmatprep.subr.bf16.mxu0 0
    %2242 = vmatpush2.bf16.msra.mxu0 0
    %2243 = vmatprep.subr.bf16.mxu0 0
    %2244 = vmatpush2.bf16.msra.mxu0 0
    %2245 = vmatprep.subr.bf16.mxu0 0
    %2246 = vmatpush2.bf16.msra.mxu0 0
    %2247 = vmatprep.subr.bf16.mxu0 0
    %2248 = vmatpush2.bf16.msra.mxu0 0
    %2249 = vmatprep.subr.bf16.mxu0 0
    %2250 = vmatpush2.bf16.msra.mxu0 0
    %2251 = vmatprep.subr.bf16.mxu0 0
    %2252 = vmatpush2.bf16.msra.mxu0 0
    %2253 = vmatprep.subr.bf16.mxu0 0
    %2254 = vmatpush2.bf16.msra.mxu0 0
    %2255 = vmatprep.mubr.bf16.mxu0 0
    %2256 = vmatmul.mubr.bf16.gmra.mxu0 %v2210
    %v2257 = vpop.f32.mrf.mxu0
    %v2258 = vadd.f32 0.0, %v2257
    %v2259 = vpop.f32.mrf.mxu0
    %v2260 = vadd.f32 0.0, %v2259
    %v2261 = vpop.f32.mrf.mxu0
    %v2262 = vpop.f32.mrf.mxu0
    %2263 = vdwg.mxu0
    %2264 = vmatprep.subr.bf16.mxu0 %v350
    %2265 = vmatpush1.bf16.msra.mxu0 %v349
    %2266 = vmatprep.subr.bf16.mxu0 %v346
    %2267 = vmatpush1.bf16.msra.mxu0 %v345
    %2268 = vmatprep.subr.bf16.mxu0 %v342
    %2269 = vmatpush1.bf16.msra.mxu0 %v341
    %2270 = vmatprep.subr.bf16.mxu0 %v338
    %2271 = vmatpush1.bf16.msra.mxu0 %v337
    %2272 = vmatprep.subr.bf16.mxu0 %v334
    %2273 = vmatpush1.bf16.msra.mxu0 %v333
    %2274 = vmatprep.subr.bf16.mxu0 %v330
    %2275 = vmatpush1.bf16.msra.mxu0 %v329
    %2276 = vmatprep.subr.bf16.mxu0 %v326
    %2277 = vmatpush1.bf16.msra.mxu0 %v325
    %2278 = vmatprep.subr.bf16.mxu0 %v322
    %2279 = vmatpush1.bf16.msra.mxu0 %v321
    %2280 = vmatprep.subr.bf16.mxu0 0
    %2281 = vmatpush2.bf16.msra.mxu0 0
    %2282 = vmatprep.subr.bf16.mxu0 0
    %2283 = vmatpush2.bf16.msra.mxu0 0
    %2284 = vmatprep.subr.bf16.mxu0 0
    %2285 = vmatpush2.bf16.msra.mxu0 0
    %2286 = vmatprep.subr.bf16.mxu0 0
    %2287 = vmatpush2.bf16.msra.mxu0 0
    %2288 = vmatprep.subr.bf16.mxu0 0
    %2289 = vmatpush2.bf16.msra.mxu0 0
    %2290 = vmatprep.subr.bf16.mxu0 0
    %2291 = vmatpush2.bf16.msra.mxu0 0
    %2292 = vmatprep.subr.bf16.mxu0 0
    %2293 = vmatpush2.bf16.msra.mxu0 0
    %2294 = vmatprep.subr.bf16.mxu0 0
    %2295 = vmatpush2.bf16.msra.mxu0 0
    %2296 = vmatprep.mubr.bf16.mxu0 0
    %2297 = vmatmul.mubr.bf16.gmra.mxu0 %v2210
    %v2298 = vpop.f32.mrf.mxu0
    %v2299 = vadd.f32 0.0, %v2298
    %v2300 = vpop.f32.mrf.mxu0
    %v2301 = vadd.f32 0.0, %v2300
    %v2302 = vpop.f32.mrf.mxu0
    %v2303 = vpop.f32.mrf.mxu0
    %2304 = vdwg.mxu0
    %v2305 = vadd.f32 %v2219, %v2258
    %v2306 = vadd.f32 %v2220, %v2260
    %v2307 = vadd.f32 %v2221, %v2299
    %v2308 = vadd.f32 %v2222, %v2301
    %v2309 = vld [vmem:[#allocation7] sm:$0xff]
    %v2310 = vld [vmem:[#allocation7 + $0x8] sm:$0xff]
    %v2311 = vunpack.c.l.bf16 %v2309
    %v2312 = vunpack.c.h.bf16 %v2309
    %v2313 = vunpack.c.l.bf16 %v2310
    %v2314 = vunpack.c.h.bf16 %v2310
    %2315 = vmatprep.subr.bf16.mxu0 %v602
    %2316 = vmatpush1.bf16.msra.mxu0 %v601
    %2317 = vmatprep.subr.bf16.mxu0 %v598
    %2318 = vmatpush1.bf16.msra.mxu0 %v597
    %2319 = vmatprep.subr.bf16.mxu0 %v594
    %2320 = vmatpush1.bf16.msra.mxu0 %v593
    %2321 = vmatprep.subr.bf16.mxu0 %v590
    %2322 = vmatpush1.bf16.msra.mxu0 %v589
    %2323 = vmatprep.subr.bf16.mxu0 %v586
    %2324 = vmatpush1.bf16.msra.mxu0 %v585
    %2325 = vmatprep.subr.bf16.mxu0 %v582
    %2326 = vmatpush1.bf16.msra.mxu0 %v581
    %2327 = vmatprep.subr.bf16.mxu0 %v578
    %2328 = vmatpush1.bf16.msra.mxu0 %v577
    %2329 = vmatprep.subr.bf16.mxu0 %v574
    %2330 = vmatpush1.bf16.msra.mxu0 %v573
    %2331 = vmatprep.subr.bf16.mxu0 0
    %2332 = vmatpush2.bf16.msra.mxu0 0
    %2333 = vmatprep.subr.bf16.mxu0 0
    %2334 = vmatpush2.bf16.msra.mxu0 0
    %2335 = vmatprep.subr.bf16.mxu0 0
    %2336 = vmatpush2.bf16.msra.mxu0 0
    %2337 = vmatprep.subr.bf16.mxu0 0
    %2338 = vmatpush2.bf16.msra.mxu0 0
    %2339 = vmatprep.subr.bf16.mxu0 0
    %2340 = vmatpush2.bf16.msra.mxu0 0
    %2341 = vmatprep.subr.bf16.mxu0 0
    %2342 = vmatpush2.bf16.msra.mxu0 0
    %2343 = vmatprep.subr.bf16.mxu0 0
    %2344 = vmatpush2.bf16.msra.mxu0 0
    %2345 = vmatprep.subr.bf16.mxu0 0
    %2346 = vmatpush2.bf16.msra.mxu0 0
    %2347 = vmatprep.mubr.bf16.mxu0 0
    %2348 = vmatmul.mubr.bf16.gmra.mxu0 %v2213
    %v2349 = vpop.f32.mrf.mxu0
    %v2350 = vadd.f32 0.0, %v2349
    %v2351 = vpop.f32.mrf.mxu0
    %v2352 = vadd.f32 0.0, %v2351
    %v2353 = vpop.f32.mrf.mxu0
    %v2354 = vpop.f32.mrf.mxu0
    %2355 = vdwg.mxu0
    %2356 = vmatprep.subr.bf16.mxu0 %v604
    %2357 = vmatpush1.bf16.msra.mxu0 %v603
    %2358 = vmatprep.subr.bf16.mxu0 %v600
    %2359 = vmatpush1.bf16.msra.mxu0 %v599
    %2360 = vmatprep.subr.bf16.mxu0 %v596
    %2361 = vmatpush1.bf16.msra.mxu0 %v595
    %2362 = vmatprep.subr.bf16.mxu0 %v592
    %2363 = vmatpush1.bf16.msra.mxu0 %v591
    %2364 = vmatprep.subr.bf16.mxu0 %v588
    %2365 = vmatpush1.bf16.msra.mxu0 %v587
    %2366 = vmatprep.subr.bf16.mxu0 %v584
    %2367 = vmatpush1.bf16.msra.mxu0 %v583
    %2368 = vmatprep.subr.bf16.mxu0 %v580
    %2369 = vmatpush1.bf16.msra.mxu0 %v579
    %2370 = vmatprep.subr.bf16.mxu0 %v576
    %2371 = vmatpush1.bf16.msra.mxu0 %v575
    %2372 = vmatprep.subr.bf16.mxu0 0
    %2373 = vmatpush2.bf16.msra.mxu0 0
    %2374 = vmatprep.subr.bf16.mxu0 0
    %2375 = vmatpush2.bf16.msra.mxu0 0
    %2376 = vmatprep.subr.bf16.mxu0 0
    %2377 = vmatpush2.bf16.msra.mxu0 0
    %2378 = vmatprep.subr.bf16.mxu0 0
    %2379 = vmatpush2.bf16.msra.mxu0 0
    %2380 = vmatprep.subr.bf16.mxu0 0
    %2381 = vmatpush2.bf16.msra.mxu0 0
    %2382 = vmatprep.subr.bf16.mxu0 0
    %2383 = vmatpush2.bf16.msra.mxu0 0
    %2384 = vmatprep.subr.bf16.mxu0 0
    %2385 = vmatpush2.bf16.msra.mxu0 0
    %2386 = vmatprep.subr.bf16.mxu0 0
    %2387 = vmatpush2.bf16.msra.mxu0 0
    %2388 = vmatprep.mubr.bf16.mxu0 0
    %2389 = vmatmul.mubr.bf16.gmra.mxu0 %v2213
    %v2390 = vpop.f32.mrf.mxu0
    %v2391 = vadd.f32 0.0, %v2390
    %v2392 = vpop.f32.mrf.mxu0
    %v2393 = vadd.f32 0.0, %v2392
    %v2394 = vpop.f32.mrf.mxu0
    %v2395 = vpop.f32.mrf.mxu0
    %2396 = vdwg.mxu0
    %v2397 = vadd.f32 %v2311, %v2350
    %v2398 = vadd.f32 %v2312, %v2352
    %v2399 = vadd.f32 %v2313, %v2391
    %v2400 = vadd.f32 %v2314, %v2393
    %v2401 = vxor.u32 %v2305, 2147483648
    %v2402 = vxor.u32 %v2306, 2147483648
    %v2403 = vxor.u32 %v2307, 2147483648
    %v2404 = vmul.f32 %v2401, 1.442695
    %v2405 = vpow.pop %v2404
    %v2406 = vmul.f32 %v2402, 1.442695
    %v2407 = vpow.pop %v2406
    %v2408 = vmul.f32 %v2403, 1.442695
    %v2409 = vpow.pop %v2408
    %v2410 = vadd.f32 %v2405, 1.0
    %v2411 = vadd.f32 %v2407, 1.0
    %v2412 = vadd.f32 %v2409, 1.0
    %v2413 = vrcp.pop %v2410
    %v2414 = vmul.f32 1.0, %v2413
    %v2415 = vrcp.pop %v2411
    %v2416 = vmul.f32 1.0, %v2415
    %v2417 = vrcp.pop %v2412
    %v2418 = vmul.f32 1.0, %v2417
    %v2419 = vtanh.pop %v2308
    %v2420 = vmul.f32 %v2416, %v2183
    %v2421 = vmul.f32 %v2414, %v2419
    %v2422 = vadd.f32 %v2420, %v2421
    %v2423 = vtanh.pop %v2422
    %v2424 = vmul.f32 %v2418, %v2423
    %v2425 = vxor.u32 %v2397, 2147483648
    %v2426 = vxor.u32 %v2398, 2147483648
    %v2427 = vxor.u32 %v2399, 2147483648
    %v2428 = vmul.f32 %v2425, 1.442695
    %v2429 = vpow.pop %v2428
    %v2430 = vmul.f32 %v2426, 1.442695
    %v2431 = vpow.pop %v2430
    %v2432 = vmul.f32 %v2427, 1.442695
    %v2433 = vpow.pop %v2432
    %v2434 = vadd.f32 %v2429, 1.0
    %v2435 = vadd.f32 %v2431, 1.0
    %v2436 = vadd.f32 %v2433, 1.0
    %v2437 = vrcp.pop %v2434
    %v2438 = vmul.f32 1.0, %v2437
    %v2439 = vrcp.pop %v2435
    %v2440 = vmul.f32 1.0, %v2439
    %v2441 = vrcp.pop %v2436
    %v2442 = vmul.f32 1.0, %v2441
    %v2443 = vtanh.pop %v2400
    %v2444 = vmul.f32 %v2440, %v2207
    %v2445 = vmul.f32 %v2438, %v2443
    %v2446 = vadd.f32 %v2444, %v2445
    %v2447 = vtanh.pop %v2446
    %v2448 = vmul.f32 %v2442, %v2447
    %v2449 = vpack.c.bf16 %v2424, %v2424
    %s2450 = scalar_lea.vmem %s4, 28
    %2451 = vst [vmem:[%s2450] sm:$0xf] %v2449
    %v2452 = vpack.c.bf16 %v2448, %v2448
    %2453 = vst [vmem:[%s136] sm:$0xf] %v2452
    %2454 = vst [vmem:[#allocation2] sm:$0xff] %v2424
    %2455 = vst [vmem:[#allocation3] sm:$0xff] %v2422
    %2456 = vst [vmem:[#allocation4] sm:$0xff] %v2448
    %2457 = vst [vmem:[#allocation5] sm:$0xff] %v2446
    %s2458 = ssub.s32 0, 0
    %s2459 = smul.u32 8, %s2458
    %p2460 = scmp.lt.s32.totalorder %s2459, 7
    %s2461 = scalar_select %p2460, %s2459, 7
    %s2462 = smul.addr %s2461, 4
    %s2463 = scalar_lea.vmem %s5, %s2462
    // Predicated region
    $region68: #{bilstm_forward.6} parent=1 // pred_check
      _
    $region69: #{bilstm_forward.6} parent=1 // pred_check_branch
      %2465 = sbr.rel (0) target = $region71
    $region70: #{bilstm_forward.6} parent=1 // pred_region
      _
    $region71: #{bilstm_forward.6} parent=1 // pred_fallthru
      _
    // Predicated region
    $region72: #{bilstm_forward.6} parent=1 // pred_check
      _
    $region73: #{bilstm_forward.6} parent=1 // pred_check_branch
      %2467 = sbr.rel (0) target = $region75
    $region74: #{bilstm_forward.6} parent=1 // pred_region
      %s2468 = ssub.s32 0, 0
      %s2469 = smul.u32 8, %s2468
    $region75: #{bilstm_forward.6} parent=1 // pred_fallthru
      _
    // Predicated region
    $region76: #{bilstm_forward.6} parent=1 // pred_check
      _
    $region77: #{bilstm_forward.6} parent=1 // pred_check_branch
      %2471 = sbr.rel (0) target = $region79
    $region78: #{bilstm_forward.6} parent=1 // pred_region
      _
    $region79: #{bilstm_forward.6} parent=1 // pred_fallthru
      _
    // Predicated region
    $region80: #{bilstm_forward.6} parent=1 // pred_check
      _
    $region81: #{bilstm_forward.6} parent=1 // pred_check_branch
      %2473 = sbr.rel (0) target = $region83
    $region82: #{bilstm_forward.6} parent=1 // pred_region
      %s2474 = ssub.s32 0, 0
      %s2475 = smul.u32 8, %s2474
      %p2476 = scmp.lt.s32.totalorder %s2475, 7
      %s2477 = scalar_select %p2476, %s2475, 7
      %s2478 = smul.addr %s2477, 4
      %s2479 = scalar_lea.vmem %s5, %s2478
    $region83: #{bilstm_forward.6} parent=1 // pred_fallthru
      _

</llo_original>
